<compile_context>
chip_gen: v6e
topology: v6e:2x2x1
jax: 0.10.0
libtpu: 0.0.40
codegen_flags: <defaults>
</compile_context>

<pallas_src>
import functools

import jax
import jax.numpy as jnp
from jax import lax
from jax.experimental import pallas as pl
from jax.experimental.pallas import tpu as pltpu

BN_EPS = 1e-5
_LANE = 128


def _round_up(n, m):
    return ((n + m - 1) // m) * m


# --------------------------------------------------------------------------------------
# Kernel bodies
# --------------------------------------------------------------------------------------

def _epilogue(c_pad, acc, w2_ref, b2_ref, out_ref):
    """acc: (B, Nf) f32 = x @ [Wc | Wa | Ws1] + fused bias.  Writes the packed output."""
    out_ref[:, : 2 * c_pad] = acc[:, : 2 * c_pad]            # [pred_pad | aux_pad]

    # ---- selector tail (all f32): ReLU -> BatchNorm1d (batch stats) -> fc2 -> sigmoid ----
    h = jnp.maximum(acc[:, 2 * c_pad:], 0.0)                 # (B, D_pad)
    mean = jnp.mean(h, axis=0, keepdims=True)                # global batch statistics
    cen = h - mean
    var = jnp.mean(cen * cen, axis=0, keepdims=True)         # biased variance
    x_hat = cen * lax.rsqrt(var + BN_EPS)
    # fc2 has N == 1: VPU multiply + lane reduction; BN affine + fc2 bias folded into
    # w2_ref / b2_ref by fuse_params().
    s = jnp.sum(x_hat * w2_ref[...], axis=-1, keepdims=True) + b2_ref[...]
    sel = 1.0 / (1.0 + jnp.exp(-s))                          # sigmoid (exact)
    out_ref[:, 2 * c_pad:] = jnp.broadcast_to(sel, (sel.shape[0], _LANE))


def _fused_single_kernel(c_pad, x_ref, w_ref, bias_ref, w2_ref, b2_ref, out_ref):
    """Single-shot path: whole fused matmul in one MXU pass, no accumulator scratch."""
    acc = jnp.dot(x_ref[...], w_ref[...],
                  preferred_element_type=jnp.float32) + bias_ref[...]
    _epilogue(c_pad, acc, w2_ref, b2_ref, out_ref)


def _fused_ktiled_kernel(c_pad, x_ref, w_ref, bias_ref, w2_ref, b2_ref, out_ref, acc_ref):
    """K-tiled path for large D: f32 VMEM accumulator over a 1-D reduction grid."""
    k = pl.program_id(0)

    @pl.when(k == 0)
    def _init():
        acc_ref[...] = jnp.zeros_like(acc_ref)

    acc_ref[...] += jnp.dot(x_ref[...], w_ref[...], preferred_element_type=jnp.float32)

    @pl.when(k == pl.num_programs(0) - 1)
    def _finalize():
        _epilogue(c_pad, acc_ref[...] + bias_ref[...], w2_ref, b2_ref, out_ref)


# --------------------------------------------------------------------------------------
# VMEM planning (generation-aware)
# --------------------------------------------------------------------------------------

def _vmem_capacity_bytes():
    try:
        cap = getattr(pltpu.get_tpu_info(), "vmem_capacity_bytes", None)
        if cap:
            return int(cap)
    except Exception:
        pass
    return 64 << 20          # conservative default (v7x physical VMEM per TC)


def _vmem_plan(B, d_pad, c_pad, force_tk=None):
    """Returns (tk, vmem_limit_bytes).  tk is None for the single-shot fast path."""
    nf = 2 * c_pad + d_pad
    out_w = 2 * c_pad + _LANE

    cap = _vmem_capacity_bytes()
    vmem_limit = min(cap * 3 // 4, 64 << 20)      # explicit scoped limit (below physical)
    budget = vmem_limit - (4 << 20)               # headroom for pipeline internals

    if force_tk is not None:
        return force_tk, vmem_limit

    # Residents: fused bias row, folded fc2 row/bias, output block.
    fixed = nf * 4 + d_pad * 4 + 4 + B * out_w * 4

    # Single-shot working set: full bf16 x + full bf16 fused RHS.
    single = fixed + B * d_pad * 2 + d_pad * nf * 2
    if single <= budget:
        return None, vmem_limit

    # K-tiled working set: (B, Nf) f32 accumulator + double-buffered bf16 x / weight tiles.
    for tk in (2048, 1024, 512, 256, 128):
        if tk <= d_pad and d_pad % tk == 0:
            need = fixed + B * nf * 4 + 2 * (B * tk * 2 + tk * nf * 2)
            if need <= budget:
                return tk, vmem_limit
    # Fallback (very large D): smallest K tile.  N-tiling of the fused RHS would bound
    # this further; see NOTE at top of file.
    return 128, vmem_limit


# --------------------------------------------------------------------------------------
# One-time parameter fusion (call ONCE, cache the result — not per forward)
# --------------------------------------------------------------------------------------

def fuse_params(params):
    f32 = jnp.float32
    D, C = params["wc"].shape
    D_pad = _round_up(D, _LANE)
    C_pad = _round_up(C, _LANE)

    def pad2(a, rows, cols):
        return jnp.pad(a, ((0, rows - a.shape[0]), (0, cols - a.shape[1])))

    # Fused bf16 RHS [Wc | Wa | Ws1] and fused f32 bias row [bc | ba | bs1].
    w_fused = jnp.concatenate(
        [pad2(params["wc"].astype(f32), D_pad, C_pad),
         pad2(params["wa"].astype(f32), D_pad, C_pad),
         pad2(params["ws1"].astype(f32), D_pad, D_pad)],
        axis=1).astype(jnp.bfloat16)
    bias_fused = jnp.concatenate(
        [pad2(params["bc"].astype(f32), 1, C_pad),
         pad2(params["ba"].astype(f32), 1, C_pad),
         pad2(params["bs1"].astype(f32), 1, D_pad)],
        axis=1)

    # Fold BN affine + fc2 bias into the fc2 weight row (exact algebraic identity):
    #   s = x_hat @ (gamma * w2) + (beta @ w2 + b2)
    w2_row = params["ws2"].astype(f32).T                       # (1, D)
    w2_eff = pad2(params["gamma"].astype(f32) * w2_row, 1, D_pad)
    b2_eff = (jnp.sum(params["beta"].astype(f32) * w2_row)
              + params["bs2"].astype(f32)[0, 0]).reshape(1, 1)

    return {"w_fused": w_fused, "bias_fused": bias_fused,
            "w2_eff": w2_eff, "b2_eff": b2_eff}


# --------------------------------------------------------------------------------------
# Forward
# --------------------------------------------------------------------------------------

def selectivenet_forward(x_nchw, fused, *, num_classes, _force_tk=None):
    """SelectiveNet forward. Returns (prediction_out, selection_out, auxiliary_out)."""
    B = x_nchw.shape[0]
    D = 1
    for s in x_nchw.shape[1:]:
        D *= s

    D_pad, Nf = fused["w_fused"].shape
    C_pad = (Nf - D_pad) // 2
    out_w = 2 * C_pad + _LANE
    f32 = jnp.float32

    # features(x) == identity stand-in; flatten -> pad -> bf16 in one fused step
    # (no intermediate f32 materialization).
    x_pad = jnp.pad(x_nchw.reshape(B, D),
                    ((0, 0), (0, D_pad - D))).astype(jnp.bfloat16)

    tk, vmem_limit = _vmem_plan(B, D_pad, C_pad, force_tk=_force_tk)

    cost = pl.CostEstimate(
        flops=2 * B * D_pad * Nf,
        transcendentals=B + D_pad,
        bytes_accessed=(B * D_pad * 2 + D_pad * Nf * 2 + B * out_w * 4
                        + Nf * 4 + D_pad * 4 + 4))

    args = (x_pad, fused["w_fused"], fused["bias_fused"],
            fused["w2_eff"], fused["b2_eff"])

    if tk is None:
        # Single-shot fast path: whole working set resident, no grid / accumulator.
        packed = pl.pallas_call(
            functools.partial(_fused_single_kernel, C_pad),
            out_shape=jax.ShapeDtypeStruct((B, out_w), f32),
            cost_estimate=cost,
            compiler_params=pltpu.CompilerParams(vmem_limit_bytes=vmem_limit),
        )(*args)
    else:
        k_steps = D_pad // tk
        packed = pl.pallas_call(
            functools.partial(_fused_ktiled_kernel, C_pad),
            out_shape=jax.ShapeDtypeStruct((B, out_w), f32),
            grid=(k_steps,),
            in_specs=[
                pl.BlockSpec((B, tk), lambda k: (0, k)),       # x K-tile
                pl.BlockSpec((tk, Nf), lambda k: (k, 0)),      # fused weight K-tile
                pl.BlockSpec((1, Nf), lambda k: (0, 0)),       # fused bias row (resident)
                pl.BlockSpec((1, D_pad), lambda k: (0, 0)),    # folded fc2 weight row
                pl.BlockSpec((1, 1), lambda k: (0, 0)),        # folded fc2 bias
            ],
            out_specs=pl.BlockSpec((B, out_w), lambda k: (0, 0)),
            scratch_shapes=[pltpu.VMEM((B, Nf), jnp.float32)],
            compiler_params=pltpu.CompilerParams(
                dimension_semantics=("arbitrary",),            # K axis is a reduction
                vmem_limit_bytes=vmem_limit),
            cost_estimate=cost,
        )(*args)

    C = num_classes
    pred = packed[:, :C]
    aux = packed[:, C_pad:C_pad + C]
    sel = packed[:, 2 * C_pad:2 * C_pad + 1]
    return pred, sel, aux


# --------------------------------------------------------------------------------------
# Deterministic init matching SelectiveNet._initialize_weights
# --------------------------------------------------------------------------------------

def init_params(key, dim_features, num_classes):
    """Linear: weight ~ N(0, 0.01), bias = 0.  BatchNorm1d: weight = 1, bias = 0."""
    k1, k2, k3, k4 = jax.random.split(key, 4)
    D, C = dim_features, num_classes
    std = 0.01
    return {
        # classifier Linear(D, C)  (stored transposed: (in, out))
        "wc": jax.random.normal(k1, (D, C), jnp.float32) * std,
        "bc": jnp.zeros((1, C), jnp.float32),
        # selector Linear(D, D)
        "ws1": jax.random.normal(k2, (D, D), jnp.float32) * std,
        "bs1": jnp.zeros((1, D), jnp.float32),
        # selector BatchNorm1d(D)
        "gamma": jnp.ones((1, D), jnp.float32),
        "beta": jnp.zeros((1, D), jnp.float32),
        # selector Linear(D, 1)
        "ws2": jax.random.normal(k3, (D, 1), jnp.float32) * std,
        "bs2": jnp.zeros((1, 1), jnp.float32),
        # aux classifier Linear(D, C)
        "wa": jax.random.normal(k4, (D, C), jnp.float32) * std,
        "ba": jnp.zeros((1, C), jnp.float32),
    }


if __name__ == "__main__":
    key = jax.random.PRNGKey(0)
    kx, kp = jax.random.split(key)

    # Small NCHW input consistent with a conv-body network: (batch=2, C=4, H=16, W=16)
    B, Cin, H, W = 2, 4, 16, 16
    x = jax.random.normal(kx, (B, Cin, H, W), jnp.float32)

    dim_features = Cin * H * W          # 1024 (identity features + flatten)
    num_classes = 10

    params = init_params(kp, dim_features, num_classes)

    # One-time fusion (cached); NOT rebuilt per forward call.
    fused = fuse_params(params)
    jax.block_until_ready(fused)

    fwd = jax.jit(functools.partial(selectivenet_forward, num_classes=num_classes))
    pred, sel, aux = fwd(x, fused)
    jax.block_until_ready((pred, sel, aux))

    assert pred.shape == (B, num_classes)
    assert sel.shape == (B, 1)
    assert aux.shape == (B, num_classes)
    assert bool(jnp.all((sel >= 0.0) & (sel <= 1.0)))
    assert bool(jnp.all(jnp.isfinite(pred))) and bool(jnp.all(jnp.isfinite(aux)))

    # Also exercise the K-tiled accumulator path (used automatically for large D) and
    # check it agrees with the single-shot fast path.
    fwd_tiled = jax.jit(functools.partial(
        selectivenet_forward, num_classes=num_classes, _force_tk=256))
    pred_t, sel_t, aux_t = fwd_tiled(x, fused)
    jax.block_until_ready((pred_t, sel_t, aux_t))
    assert bool(jnp.allclose(pred, pred_t, atol=1e-3, rtol=1e-3))
    assert bool(jnp.allclose(aux, aux_t, atol=1e-3, rtol=1e-3))
    assert bool(jnp.allclose(sel, sel_t, atol=1e-3, rtol=1e-3))

    print("KERNEL_OK")
</pallas_src>

<mosaic_0001>
module attributes {stable_mosaic.version = 11 : i64} {
  func.func @_fused_single_kernel(%arg0: memref<2x1024xbf16, #tpu.memory_space<vmem>>, %arg1: memref<1024x1280xbf16, #tpu.memory_space<vmem>>, %arg2: memref<1x1280xf32, #tpu.memory_space<vmem>>, %arg3: memref<1x1024xf32, #tpu.memory_space<vmem>>, %arg4: memref<1x1xf32, #tpu.memory_space<vmem>>, %arg5: memref<2x384xf32, #tpu.memory_space<vmem>>) attributes {dimension_semantics = [], scalar_prefetch = 0 : i64, scratch_operands = 0 : i64, tpu.core_type = #tpu.core_type<tc>} {
    %c0 = arith.constant 0 : index
    %c0_0 = arith.constant 0 : index
    %0 = vector.load %arg0[%c0, %c0_0] : memref<2x1024xbf16, #tpu.memory_space<vmem>>, vector<2x1024xbf16>
    %c0_1 = arith.constant 0 : index
    %c0_2 = arith.constant 0 : index
    %1 = vector.load %arg1[%c0_1, %c0_2] : memref<1024x1280xbf16, #tpu.memory_space<vmem>>, vector<1024x1280xbf16>
    %cst = arith.constant dense<0.000000e+00> : vector<2x1280xf32>
    %2 = tpu.matmul %0, %1, %cst {dimension_numbers = #tpu.dot_dimension_numbers<[1], [0], [0], [1], [0, 0, 1, 1], [], []>} : vector<2x1024xbf16>, vector<1024x1280xbf16>, vector<2x1280xf32> -> vector<2x1280xf32>
    %c0_3 = arith.constant 0 : index
    %c0_4 = arith.constant 0 : index
    %3 = vector.load %arg2[%c0_3, %c0_4] : memref<1x1280xf32, #tpu.memory_space<vmem>>, vector<1x1280xf32>
    %4 = vector.broadcast %3 : vector<1x1280xf32> to vector<2x1280xf32>
    %5 = arith.addf %2, %4 : vector<2x1280xf32>
    %6 = vector.extract_strided_slice %5 {offsets = [0, 0], sizes = [2, 256], strides = [1, 1]} : vector<2x1280xf32> to vector<2x256xf32>
    %c0_5 = arith.constant 0 : index
    %c0_6 = arith.constant 0 : index
    %7 = vector.load %arg5[%c0_5, %c0_6] : memref<2x384xf32, #tpu.memory_space<vmem>>, vector<2x256xf32>
    tpu.vector_store %arg5[%c0_5, %c0_6], %6 {strides = array<i32>} : memref<2x384xf32, #tpu.memory_space<vmem>>, vector<2x256xf32>,
    %8 = vector.extract_strided_slice %5 {offsets = [0, 256], sizes = [2, 1024], strides = [1, 1]} : vector<2x1280xf32> to vector<2x1024xf32>
    %cst_7 = arith.constant 0.000000e+00 : f32
    %9 = vector.broadcast %cst_7 : f32 to vector<2x1024xf32>
    %10 = arith.maximumf %8, %9 : vector<2x1024xf32>
    %cst_8 = arith.constant dense<0.000000e+00> : vector<1024xf32>
    %11 = vector.multi_reduction <add>, %10, %cst_8 [0] : vector<2x1024xf32> to vector<1024xf32>
    %12 = vector.shape_cast %11 : vector<1024xf32> to vector<1x1024xf32>
    %cst_9 = arith.constant 2.000000e+00 : f32
    %13 = vector.broadcast %cst_9 : f32 to vector<1x1024xf32>
    %14 = arith.divf %12, %13 : vector<1x1024xf32>
    %15 = vector.broadcast %14 : vector<1x1024xf32> to vector<2x1024xf32>
    %16 = arith.subf %10, %15 : vector<2x1024xf32>
    %17 = arith.mulf %16, %16 : vector<2x1024xf32>
    %cst_10 = arith.constant dense<0.000000e+00> : vector<1024xf32>
    %18 = vector.multi_reduction <add>, %17, %cst_10 [0] : vector<2x1024xf32> to vector<1024xf32>
    %19 = vector.shape_cast %18 : vector<1024xf32> to vector<1x1024xf32>
    %cst_11 = arith.constant 2.000000e+00 : f32
    %20 = vector.broadcast %cst_11 : f32 to vector<1x1024xf32>
    %21 = arith.divf %19, %20 : vector<1x1024xf32>
    %cst_12 = arith.constant 9.99999974E-6 : f32
    %22 = vector.broadcast %cst_12 : f32 to vector<1x1024xf32>
    %23 = arith.addf %21, %22 : vector<1x1024xf32>
    %24 = math.rsqrt %23 : vector<1x1024xf32>
    %25 = vector.broadcast %24 : vector<1x1024xf32> to vector<2x1024xf32>
    %26 = arith.mulf %16, %25 : vector<2x1024xf32>
    %c0_13 = arith.constant 0 : index
    %c0_14 = arith.constant 0 : index
    %27 = vector.load %arg3[%c0_13, %c0_14] : memref<1x1024xf32, #tpu.memory_space<vmem>>, vector<1x1024xf32>
    %28 = vector.broadcast %27 : vector<1x1024xf32> to vector<2x1024xf32>
    %29 = arith.mulf %26, %28 : vector<2x1024xf32>
    %cst_15 = arith.constant dense<0.000000e+00> : vector<2xf32>
    %30 = vector.multi_reduction <add>, %29, %cst_15 [1] : vector<2x1024xf32> to vector<2xf32>
    %31 = vector.shape_cast %30 : vector<2xf32> to vector<2x1xf32>
    %c0_16 = arith.constant 0 : index
    %c0_17 = arith.constant 0 : index
    %32 = vector.load %arg4[%c0_16, %c0_17] : memref<1x1xf32, #tpu.memory_space<vmem>>, vector<1x1xf32>
    %33 = vector.broadcast %32 : vector<1x1xf32> to vector<2x1xf32>
    %34 = arith.addf %31, %33 : vector<2x1xf32>
    %cst_18 = arith.constant 0.000000e+00 : f32
    %35 = vector.broadcast %cst_18 : f32 to vector<2x1xf32>
    %36 = arith.subf %35, %34 : vector<2x1xf32>
    %37 = math.exp %36 : vector<2x1xf32>
    %cst_19 = arith.constant 1.000000e+00 : f32
    %38 = vector.broadcast %cst_19 : f32 to vector<2x1xf32>
    %39 = arith.addf %38, %37 : vector<2x1xf32>
    %cst_20 = arith.constant 1.000000e+00 : f32
    %40 = vector.broadcast %cst_20 : f32 to vector<2x1xf32>
    %41 = arith.divf %40, %39 : vector<2x1xf32>
    %42 = vector.shape_cast %41 : vector<2x1xf32> to vector<2x1xf32>
    %43 = vector.broadcast %42 : vector<2x1xf32> to vector<2x128xf32>
    %c0_21 = arith.constant 0 : index
    %c256 = arith.constant 256 : index
    %44 = vector.load %arg5[%c0_21, %c256] : memref<2x384xf32, #tpu.memory_space<vmem>>, vector<2x128xf32>
    tpu.vector_store %arg5[%c0_21, %c256], %43 {strides = array<i32>} : memref<2x384xf32, #tpu.memory_space<vmem>>, vector<2x128xf32>,
    return
  }
}

</mosaic_0001>

<llo_original>
// kernel: selectivenet_forward.1
$region0: #{selectivenet_forward.1}
  #allocation0 [shape = 'u32[]', space=smem, size = 0x4, offset = 0x4, fixed_abs, tag = 'smem constant byte address 0x4 - core index']
  #allocation1 [shape = 'u32[144,128]{1,0:T(1,128)}', space=vmem, size = 0x12000, scoped, tag = 'internal scratch']
  #allocation2 [shape = 'f32[1,1]{1,0:T(1,128)S(1)}', space=vmem, size = 0x200, scoped, tag = 'scoped memory for selectivenet_forward.1']
  %s0 = inlined_call_operand.vmem [shape: bf16[2,1024], index: 0, kind: input, shape index: {}]
  %s1 = inlined_call_operand.hbm [shape: bf16[1024,1280], index: 1, kind: input, shape index: {}]
  %s2 = inlined_call_operand.hbm [shape: f32[1,1280], index: 2, kind: input, shape index: {}]
  %s3 = inlined_call_operand.hbm [shape: f32[1,1024], index: 3, kind: input, shape index: {}]
  %s4 = inlined_call_operand.<no memory space> [shape: f32[1,1], index: 4, kind: input, shape index: {}]
  %s5 = inlined_call_operand.vmem [shape: f32[2,384], index: 5, kind: output, shape index: {}]
  %s6 = sld [smem:[#allocation0]]
  $region42: #{selectivenet_forward.1} parent=0
    _
  %s8 = ssub.s32 1, %s6
  %s9 = scalar_select 0, %s8, %s6
  %v10 = vstv %s4
  %11 = vst [vmem:[#allocation2] sm:$0x1] %v10
  $region1: #{selectivenet_forward.1} parent=0
    #allocation3 [shape = 'u8[2621440]{0}', space=vmem, size = 0x280000, scoped, tag = 'input window, operand 1, single buffered']
    #allocation4 [shape = 's32[1]{0}', space=sflag, size = 0x4, scoped, tag = 'scoped memory for selectivenet_forward.1']
    #allocation5 [shape = 'u8[5120]{0}', space=vmem, size = 0x1400, scoped, tag = 'input window, operand 2, single buffered']
    #allocation6 [shape = 's32[1]{0}', space=sflag, size = 0x4, scoped, tag = 'scoped memory for selectivenet_forward.1']
    #allocation7 [shape = 'u8[4096]{0}', space=vmem, size = 0x1000, scoped, tag = 'input window, operand 3, single buffered']
    %12 = vsyncpa [#allocation4], 0
    %13 = vsyncpa [#allocation6], 0
    // Predicated region
    $region2: #{selectivenet_forward.1} parent=1 // pred_check
      _
    $region3: #{selectivenet_forward.1} parent=1 // pred_check_branch
      %15 = sbr.rel (0) target = $region5
    $region4: #{selectivenet_forward.1} parent=1 // pred_region
      _
    $region5: #{selectivenet_forward.1} parent=1 // pred_fallthru
      _
    // Predicated region
    $region6: #{selectivenet_forward.1} parent=1 // pred_check
      _
    $region7: #{selectivenet_forward.1} parent=1 // pred_check_branch
      %17 = sbr.rel (0) target = $region9
    $region8: #{selectivenet_forward.1} parent=1 // pred_region
      %s19 = ssub.s32 81920, 81920
      %20 = vsyncadd [#allocation4], %s19
      %s21 = sshll.u32 [#allocation3], 4
      %s22 = int_to_ptr.vmem [resolvable:$true] %s21
      %27 = dma.hbm_to_vmem [thread:$0]  %s1, 81920, %s22, [#allocation4], 640, 640, 40
    $region9: #{selectivenet_forward.1} parent=1 // pred_fallthru
      _
    // Predicated region
    $region10: #{selectivenet_forward.1} parent=1 // pred_check
      _
    $region11: #{selectivenet_forward.1} parent=1 // pred_check_branch
      %29 = sbr.rel (0) target = $region13
    $region12: #{selectivenet_forward.1} parent=1 // pred_region
      %s31 = ssub.s32 160, 160
      %32 = vsyncadd [#allocation6], %s31
      %s34 = sshll.u32 [#allocation5], 4
      %s35 = int_to_ptr.vmem [resolvable:$true] %s34
      %37 = dma.hbm_to_vmem [thread:$0]  %s2, 160, %s35, [#allocation6]
    $region13: #{selectivenet_forward.1} parent=1 // pred_fallthru
      _
    // Predicated region
    $region14: #{selectivenet_forward.1} parent=1 // pred_check
      _
    $region15: #{selectivenet_forward.1} parent=1 // pred_check_branch
      %39 = sbr.rel (0) target = $region17
    $region16: #{selectivenet_forward.1} parent=1 // pred_region
      %s41 = ssub.s32 128, 128
      %42 = vsyncadd [#allocation6], %s41
      %s44 = sshll.u32 [#allocation7], 4
      %s45 = int_to_ptr.vmem [resolvable:$true] %s44
      %47 = dma.hbm_to_vmem [thread:$0]  %s3, 128, %s45, [#allocation6]
    $region17: #{selectivenet_forward.1} parent=1 // pred_fallthru
      _
    // Predicated region
    $region18: #{selectivenet_forward.1} parent=1 // pred_check
      _
    $region19: #{selectivenet_forward.1} parent=1 // pred_check_branch
      %49 = sbr.rel (0) target = $region21
    $region20: #{selectivenet_forward.1} parent=1 // pred_region
      _
    $region21: #{selectivenet_forward.1} parent=1 // pred_fallthru
      _
    // Predicated region
    $region22: #{selectivenet_forward.1} parent=1 // pred_check
      _
    $region23: #{selectivenet_forward.1} parent=1 // pred_check_branch
      %51 = sbr.rel (0) target = $region25
    $region24: #{selectivenet_forward.1} parent=1 // pred_region
      %52 = dma.done [#allocation4], 81920
    $region25: #{selectivenet_forward.1} parent=1 // pred_fallthru
      _
    // Predicated region
    $region26: #{selectivenet_forward.1} parent=1 // pred_check
      _
    $region27: #{selectivenet_forward.1} parent=1 // pred_check_branch
      %54 = sbr.rel (0) target = $region29
    $region28: #{selectivenet_forward.1} parent=1 // pred_region
      %55 = dma.done [#allocation6], 160
    $region29: #{selectivenet_forward.1} parent=1 // pred_fallthru
      _
    // Predicated region
    $region30: #{selectivenet_forward.1} parent=1 // pred_check
      _
    $region31: #{selectivenet_forward.1} parent=1 // pred_check_branch
      %57 = sbr.rel (0) target = $region33
    $region32: #{selectivenet_forward.1} parent=1 // pred_region
      %58 = dma.done [#allocation6], 128
    $region33: #{selectivenet_forward.1} parent=1 // pred_fallthru
      _
    %v59 = vld [vmem:[%s0] sm:$0xff]
    %v60 = vld [vmem:[#allocation3] sm:$0xff]
    %v61 = vld [vmem:[#allocation3 + $0x8] sm:$0xff]
    %v62 = vld [vmem:[#allocation3 + $0x10] sm:$0xff]
    %v63 = vld [vmem:[#allocation3 + $0x18] sm:$0xff]
    %v64 = vld [vmem:[#allocation3 + $0x20] sm:$0xff]
    %v65 = vld [vmem:[#allocation3 + $0x28] sm:$0xff]
    %v66 = vld [vmem:[#allocation3 + $0x30] sm:$0xff]
    %v67 = vld [vmem:[#allocation3 + $0x38] sm:$0xff]
    %v68 = vld [vmem:[#allocation3 + $0x40] sm:$0xff]
    %v69 = vld [vmem:[#allocation3 + $0x48] sm:$0xff]
    %v70 = vld [vmem:[#allocation3 + $0x50] sm:$0xff]
    %v71 = vld [vmem:[#allocation3 + $0x58] sm:$0xff]
    %v72 = vld [vmem:[#allocation3 + $0x60] sm:$0xff]
    %v73 = vld [vmem:[#allocation3 + $0x68] sm:$0xff]
    %v74 = vld [vmem:[#allocation3 + $0x70] sm:$0xff]
    %v75 = vld [vmem:[#allocation3 + $0x78] sm:$0xff]
    %v76 = vld [vmem:[#allocation3 + $0x80] sm:$0xff]
    %v77 = vld [vmem:[#allocation3 + $0x88] sm:$0xff]
    %v78 = vld [vmem:[#allocation3 + $0x90] sm:$0xff]
    %v79 = vld [vmem:[#allocation3 + $0x98] sm:$0xff]
    %v80 = vld [vmem:[#allocation3 + $0xa0] sm:$0xff]
    %v81 = vld [vmem:[#allocation3 + $0xa8] sm:$0xff]
    %v82 = vld [vmem:[#allocation3 + $0xb0] sm:$0xff]
    %v83 = vld [vmem:[#allocation3 + $0xb8] sm:$0xff]
    %v84 = vld [vmem:[#allocation3 + $0xc0] sm:$0xff]
    %v85 = vld [vmem:[#allocation3 + $0xc8] sm:$0xff]
    %v86 = vld [vmem:[#allocation3 + $0xd0] sm:$0xff]
    %v87 = vld [vmem:[#allocation3 + $0xd8] sm:$0xff]
    %v88 = vld [vmem:[#allocation3 + $0xe0] sm:$0xff]
    %v89 = vld [vmem:[#allocation3 + $0xe8] sm:$0xff]
    %v90 = vld [vmem:[#allocation3 + $0xf0] sm:$0xff]
    %v91 = vld [vmem:[#allocation3 + $0xf8] sm:$0xff]
    %v92 = vld [vmem:[#allocation3 + $0x100] sm:$0xff]
    %v93 = vld [vmem:[#allocation3 + $0x108] sm:$0xff]
    %v94 = vld [vmem:[#allocation3 + $0x110] sm:$0xff]
    %v95 = vld [vmem:[#allocation3 + $0x118] sm:$0xff]
    %v96 = vld [vmem:[#allocation3 + $0x120] sm:$0xff]
    %v97 = vld [vmem:[#allocation3 + $0x128] sm:$0xff]
    %v98 = vld [vmem:[#allocation3 + $0x130] sm:$0xff]
    %v99 = vld [vmem:[#allocation3 + $0x138] sm:$0xff]
    %v100 = vld [vmem:[#allocation3 + $0x140] sm:$0xff]
    %v101 = vld [vmem:[#allocation3 + $0x148] sm:$0xff]
    %v102 = vld [vmem:[#allocation3 + $0x150] sm:$0xff]
    %v103 = vld [vmem:[#allocation3 + $0x158] sm:$0xff]
    %v104 = vld [vmem:[#allocation3 + $0x160] sm:$0xff]
    %v105 = vld [vmem:[#allocation3 + $0x168] sm:$0xff]
    %v106 = vld [vmem:[#allocation3 + $0x170] sm:$0xff]
    %v107 = vld [vmem:[#allocation3 + $0x178] sm:$0xff]
    %v108 = vld [vmem:[#allocation3 + $0x180] sm:$0xff]
    %v109 = vld [vmem:[#allocation3 + $0x188] sm:$0xff]
    %v110 = vld [vmem:[#allocation3 + $0x190] sm:$0xff]
    %v111 = vld [vmem:[#allocation3 + $0x198] sm:$0xff]
    %v112 = vld [vmem:[#allocation3 + $0x1a0] sm:$0xff]
    %v113 = vld [vmem:[#allocation3 + $0x1a8] sm:$0xff]
    %v114 = vld [vmem:[#allocation3 + $0x1b0] sm:$0xff]
    %v115 = vld [vmem:[#allocation3 + $0x1b8] sm:$0xff]
    %v116 = vld [vmem:[#allocation3 + $0x1c0] sm:$0xff]
    %v117 = vld [vmem:[#allocation3 + $0x1c8] sm:$0xff]
    %v118 = vld [vmem:[#allocation3 + $0x1d0] sm:$0xff]
    %v119 = vld [vmem:[#allocation3 + $0x1d8] sm:$0xff]
    %v120 = vld [vmem:[#allocation3 + $0x1e0] sm:$0xff]
    %v121 = vld [vmem:[#allocation3 + $0x1e8] sm:$0xff]
    %v122 = vld [vmem:[#allocation3 + $0x1f0] sm:$0xff]
    %v123 = vld [vmem:[#allocation3 + $0x1f8] sm:$0xff]
    %v124 = vld [vmem:[#allocation3 + $0x200] sm:$0xff]
    %v125 = vld [vmem:[#allocation3 + $0x208] sm:$0xff]
    %v126 = vld [vmem:[#allocation3 + $0x210] sm:$0xff]
    %v127 = vld [vmem:[#allocation3 + $0x218] sm:$0xff]
    %v128 = vld [vmem:[#allocation3 + $0x220] sm:$0xff]
    %v129 = vld [vmem:[#allocation3 + $0x228] sm:$0xff]
    %v130 = vld [vmem:[#allocation3 + $0x230] sm:$0xff]
    %v131 = vld [vmem:[#allocation3 + $0x238] sm:$0xff]
    %v132 = vld [vmem:[#allocation3 + $0x240] sm:$0xff]
    %v133 = vld [vmem:[#allocation3 + $0x248] sm:$0xff]
    %v134 = vld [vmem:[#allocation3 + $0x250] sm:$0xff]
    %v135 = vld [vmem:[#allocation3 + $0x258] sm:$0xff]
    %v136 = vld [vmem:[#allocation3 + $0x260] sm:$0xff]
    %v137 = vld [vmem:[#allocation3 + $0x268] sm:$0xff]
    %v138 = vld [vmem:[#allocation3 + $0x270] sm:$0xff]
    %v139 = vld [vmem:[#allocation3 + $0x278] sm:$0xff]
    %v140 = vld [vmem:[#allocation3 + $0x280] sm:$0xff]
    %v141 = vld [vmem:[#allocation3 + $0x288] sm:$0xff]
    %v142 = vld [vmem:[#allocation3 + $0x290] sm:$0xff]
    %v143 = vld [vmem:[#allocation3 + $0x298] sm:$0xff]
    %v144 = vld [vmem:[#allocation3 + $0x2a0] sm:$0xff]
    %v145 = vld [vmem:[#allocation3 + $0x2a8] sm:$0xff]
    %v146 = vld [vmem:[#allocation3 + $0x2b0] sm:$0xff]
    %v147 = vld [vmem:[#allocation3 + $0x2b8] sm:$0xff]
    %v148 = vld [vmem:[#allocation3 + $0x2c0] sm:$0xff]
    %v149 = vld [vmem:[#allocation3 + $0x2c8] sm:$0xff]
    %v150 = vld [vmem:[#allocation3 + $0x2d0] sm:$0xff]
    %v151 = vld [vmem:[#allocation3 + $0x2d8] sm:$0xff]
    %v152 = vld [vmem:[#allocation3 + $0x2e0] sm:$0xff]
    %v153 = vld [vmem:[#allocation3 + $0x2e8] sm:$0xff]
    %v154 = vld [vmem:[#allocation3 + $0x2f0] sm:$0xff]
    %v155 = vld [vmem:[#allocation3 + $0x2f8] sm:$0xff]
    %v156 = vld [vmem:[#allocation3 + $0x300] sm:$0xff]
    %v157 = vld [vmem:[#allocation3 + $0x308] sm:$0xff]
    %v158 = vld [vmem:[#allocation3 + $0x310] sm:$0xff]
    %v159 = vld [vmem:[#allocation3 + $0x318] sm:$0xff]
    %v160 = vld [vmem:[#allocation3 + $0x320] sm:$0xff]
    %v161 = vld [vmem:[#allocation3 + $0x328] sm:$0xff]
    %v162 = vld [vmem:[#allocation3 + $0x330] sm:$0xff]
    %v163 = vld [vmem:[#allocation3 + $0x338] sm:$0xff]
    %v164 = vld [vmem:[#allocation3 + $0x340] sm:$0xff]
    %v165 = vld [vmem:[#allocation3 + $0x348] sm:$0xff]
    %v166 = vld [vmem:[#allocation3 + $0x350] sm:$0xff]
    %v167 = vld [vmem:[#allocation3 + $0x358] sm:$0xff]
    %v168 = vld [vmem:[#allocation3 + $0x360] sm:$0xff]
    %v169 = vld [vmem:[#allocation3 + $0x368] sm:$0xff]
    %v170 = vld [vmem:[#allocation3 + $0x370] sm:$0xff]
    %v171 = vld [vmem:[#allocation3 + $0x378] sm:$0xff]
    %v172 = vld [vmem:[#allocation3 + $0x380] sm:$0xff]
    %v173 = vld [vmem:[#allocation3 + $0x388] sm:$0xff]
    %v174 = vld [vmem:[#allocation3 + $0x390] sm:$0xff]
    %v175 = vld [vmem:[#allocation3 + $0x398] sm:$0xff]
    %v176 = vld [vmem:[#allocation3 + $0x3a0] sm:$0xff]
    %v177 = vld [vmem:[#allocation3 + $0x3a8] sm:$0xff]
    %v178 = vld [vmem:[#allocation3 + $0x3b0] sm:$0xff]
    %v179 = vld [vmem:[#allocation3 + $0x3b8] sm:$0xff]
    %v180 = vld [vmem:[#allocation3 + $0x3c0] sm:$0xff]
    %v181 = vld [vmem:[#allocation3 + $0x3c8] sm:$0xff]
    %v182 = vld [vmem:[#allocation3 + $0x3d0] sm:$0xff]
    %v183 = vld [vmem:[#allocation3 + $0x3d8] sm:$0xff]
    %v184 = vld [vmem:[#allocation3 + $0x3e0] sm:$0xff]
    %v185 = vld [vmem:[#allocation3 + $0x3e8] sm:$0xff]
    %v186 = vld [vmem:[#allocation3 + $0x3f0] sm:$0xff]
    %v187 = vld [vmem:[#allocation3 + $0x3f8] sm:$0xff]
    %v188 = vld [vmem:[#allocation3 + $0x400] sm:$0xff]
    %v189 = vld [vmem:[#allocation3 + $0x408] sm:$0xff]
    %v190 = vld [vmem:[#allocation3 + $0x410] sm:$0xff]
    %v191 = vld [vmem:[#allocation3 + $0x418] sm:$0xff]
    %v192 = vld [vmem:[#allocation3 + $0x420] sm:$0xff]
    %v193 = vld [vmem:[#allocation3 + $0x428] sm:$0xff]
    %v194 = vld [vmem:[#allocation3 + $0x430] sm:$0xff]
    %v195 = vld [vmem:[#allocation3 + $0x438] sm:$0xff]
    %v196 = vld [vmem:[#allocation3 + $0x440] sm:$0xff]
    %v197 = vld [vmem:[#allocation3 + $0x448] sm:$0xff]
    %v198 = vld [vmem:[#allocation3 + $0x450] sm:$0xff]
    %v199 = vld [vmem:[#allocation3 + $0x458] sm:$0xff]
    %v200 = vld [vmem:[#allocation3 + $0x460] sm:$0xff]
    %v201 = vld [vmem:[#allocation3 + $0x468] sm:$0xff]
    %v202 = vld [vmem:[#allocation3 + $0x470] sm:$0xff]
    %v203 = vld [vmem:[#allocation3 + $0x478] sm:$0xff]
    %v204 = vld [vmem:[#allocation3 + $0x480] sm:$0xff]
    %v205 = vld [vmem:[#allocation3 + $0x488] sm:$0xff]
    %v206 = vld [vmem:[#allocation3 + $0x490] sm:$0xff]
    %v207 = vld [vmem:[#allocation3 + $0x498] sm:$0xff]
    %v208 = vld [vmem:[#allocation3 + $0x4a0] sm:$0xff]
    %v209 = vld [vmem:[#allocation3 + $0x4a8] sm:$0xff]
    %v210 = vld [vmem:[#allocation3 + $0x4b0] sm:$0xff]
    %v211 = vld [vmem:[#allocation3 + $0x4b8] sm:$0xff]
    %v212 = vld [vmem:[#allocation3 + $0x4c0] sm:$0xff]
    %v213 = vld [vmem:[#allocation3 + $0x4c8] sm:$0xff]
    %v214 = vld [vmem:[#allocation3 + $0x4d0] sm:$0xff]
    %v215 = vld [vmem:[#allocation3 + $0x4d8] sm:$0xff]
    %v216 = vld [vmem:[#allocation3 + $0x4e0] sm:$0xff]
    %v217 = vld [vmem:[#allocation3 + $0x4e8] sm:$0xff]
    %v218 = vld [vmem:[#allocation3 + $0x4f0] sm:$0xff]
    %v219 = vld [vmem:[#allocation3 + $0x4f8] sm:$0xff]
    %v220 = vld [vmem:[#allocation3 + $0x500] sm:$0xff]
    %v221 = vld [vmem:[#allocation3 + $0x508] sm:$0xff]
    %v222 = vld [vmem:[#allocation3 + $0x510] sm:$0xff]
    %v223 = vld [vmem:[#allocation3 + $0x518] sm:$0xff]
    %v224 = vld [vmem:[#allocation3 + $0x520] sm:$0xff]
    %v225 = vld [vmem:[#allocation3 + $0x528] sm:$0xff]
    %v226 = vld [vmem:[#allocation3 + $0x530] sm:$0xff]
    %v227 = vld [vmem:[#allocation3 + $0x538] sm:$0xff]
    %v228 = vld [vmem:[#allocation3 + $0x540] sm:$0xff]
    %v229 = vld [vmem:[#allocation3 + $0x548] sm:$0xff]
    %v230 = vld [vmem:[#allocation3 + $0x550] sm:$0xff]
    %v231 = vld [vmem:[#allocation3 + $0x558] sm:$0xff]
    %v232 = vld [vmem:[#allocation3 + $0x560] sm:$0xff]
    %v233 = vld [vmem:[#allocation3 + $0x568] sm:$0xff]
    %v234 = vld [vmem:[#allocation3 + $0x570] sm:$0xff]
    %v235 = vld [vmem:[#allocation3 + $0x578] sm:$0xff]
    %v236 = vld [vmem:[#allocation3 + $0x580] sm:$0xff]
    %v237 = vld [vmem:[#allocation3 + $0x588] sm:$0xff]
    %v238 = vld [vmem:[#allocation3 + $0x590] sm:$0xff]
    %v239 = vld [vmem:[#allocation3 + $0x598] sm:$0xff]
    %v240 = vld [vmem:[#allocation3 + $0x5a0] sm:$0xff]
    %v241 = vld [vmem:[#allocation3 + $0x5a8] sm:$0xff]
    %v242 = vld [vmem:[#allocation3 + $0x5b0] sm:$0xff]
    %v243 = vld [vmem:[#allocation3 + $0x5b8] sm:$0xff]
    %v244 = vld [vmem:[#allocation3 + $0x5c0] sm:$0xff]
    %v245 = vld [vmem:[#allocation3 + $0x5c8] sm:$0xff]
    %v246 = vld [vmem:[#allocation3 + $0x5d0] sm:$0xff]
    %v247 = vld [vmem:[#allocation3 + $0x5d8] sm:$0xff]
    %v248 = vld [vmem:[#allocation3 + $0x5e0] sm:$0xff]
    %v249 = vld [vmem:[#allocation3 + $0x5e8] sm:$0xff]
    %v250 = vld [vmem:[#allocation3 + $0x5f0] sm:$0xff]
    %v251 = vld [vmem:[#allocation3 + $0x5f8] sm:$0xff]
    %v252 = vld [vmem:[#allocation3 + $0x600] sm:$0xff]
    %v253 = vld [vmem:[#allocation3 + $0x608] sm:$0xff]
    %v254 = vld [vmem:[#allocation3 + $0x610] sm:$0xff]
    %v255 = vld [vmem:[#allocation3 + $0x618] sm:$0xff]
    %v256 = vld [vmem:[#allocation3 + $0x620] sm:$0xff]
    %v257 = vld [vmem:[#allocation3 + $0x628] sm:$0xff]
    %v258 = vld [vmem:[#allocation3 + $0x630] sm:$0xff]
    %v259 = vld [vmem:[#allocation3 + $0x638] sm:$0xff]
    %v260 = vld [vmem:[#allocation3 + $0x640] sm:$0xff]
    %v261 = vld [vmem:[#allocation3 + $0x648] sm:$0xff]
    %v262 = vld [vmem:[#allocation3 + $0x650] sm:$0xff]
    %v263 = vld [vmem:[#allocation3 + $0x658] sm:$0xff]
    %v264 = vld [vmem:[#allocation3 + $0x660] sm:$0xff]
    %v265 = vld [vmem:[#allocation3 + $0x668] sm:$0xff]
    %v266 = vld [vmem:[#allocation3 + $0x670] sm:$0xff]
    %v267 = vld [vmem:[#allocation3 + $0x678] sm:$0xff]
    %v268 = vld [vmem:[#allocation3 + $0x680] sm:$0xff]
    %v269 = vld [vmem:[#allocation3 + $0x688] sm:$0xff]
    %v270 = vld [vmem:[#allocation3 + $0x690] sm:$0xff]
    %v271 = vld [vmem:[#allocation3 + $0x698] sm:$0xff]
    %v272 = vld [vmem:[#allocation3 + $0x6a0] sm:$0xff]
    %v273 = vld [vmem:[#allocation3 + $0x6a8] sm:$0xff]
    %v274 = vld [vmem:[#allocation3 + $0x6b0] sm:$0xff]
    %v275 = vld [vmem:[#allocation3 + $0x6b8] sm:$0xff]
    %v276 = vld [vmem:[#allocation3 + $0x6c0] sm:$0xff]
    %v277 = vld [vmem:[#allocation3 + $0x6c8] sm:$0xff]
    %v278 = vld [vmem:[#allocation3 + $0x6d0] sm:$0xff]
    %v279 = vld [vmem:[#allocation3 + $0x6d8] sm:$0xff]
    %v280 = vld [vmem:[#allocation3 + $0x6e0] sm:$0xff]
    %v281 = vld [vmem:[#allocation3 + $0x6e8] sm:$0xff]
    %v282 = vld [vmem:[#allocation3 + $0x6f0] sm:$0xff]
    %v283 = vld [vmem:[#allocation3 + $0x6f8] sm:$0xff]
    %v284 = vld [vmem:[#allocation3 + $0x700] sm:$0xff]
    %v285 = vld [vmem:[#allocation3 + $0x708] sm:$0xff]
    %v286 = vld [vmem:[#allocation3 + $0x710] sm:$0xff]
    %v287 = vld [vmem:[#allocation3 + $0x718] sm:$0xff]
    %v288 = vld [vmem:[#allocation3 + $0x720] sm:$0xff]
    %v289 = vld [vmem:[#allocation3 + $0x728] sm:$0xff]
    %v290 = vld [vmem:[#allocation3 + $0x730] sm:$0xff]
    %v291 = vld [vmem:[#allocation3 + $0x738] sm:$0xff]
    %v292 = vld [vmem:[#allocation3 + $0x740] sm:$0xff]
    %v293 = vld [vmem:[#allocation3 + $0x748] sm:$0xff]
    %v294 = vld [vmem:[#allocation3 + $0x750] sm:$0xff]
    %v295 = vld [vmem:[#allocation3 + $0x758] sm:$0xff]
    %v296 = vld [vmem:[#allocation3 + $0x760] sm:$0xff]
    %v297 = vld [vmem:[#allocation3 + $0x768] sm:$0xff]
    %v298 = vld [vmem:[#allocation3 + $0x770] sm:$0xff]
    %v299 = vld [vmem:[#allocation3 + $0x778] sm:$0xff]
    %v300 = vld [vmem:[#allocation3 + $0x780] sm:$0xff]
    %v301 = vld [vmem:[#allocation3 + $0x788] sm:$0xff]
    %v302 = vld [vmem:[#allocation3 + $0x790] sm:$0xff]
    %v303 = vld [vmem:[#allocation3 + $0x798] sm:$0xff]
    %v304 = vld [vmem:[#allocation3 + $0x7a0] sm:$0xff]
    %v305 = vld [vmem:[#allocation3 + $0x7a8] sm:$0xff]
    %v306 = vld [vmem:[#allocation3 + $0x7b0] sm:$0xff]
    %v307 = vld [vmem:[#allocation3 + $0x7b8] sm:$0xff]
    %v308 = vld [vmem:[#allocation3 + $0x7c0] sm:$0xff]
    %v309 = vld [vmem:[#allocation3 + $0x7c8] sm:$0xff]
    %v310 = vld [vmem:[#allocation3 + $0x7d0] sm:$0xff]
    %v311 = vld [vmem:[#allocation3 + $0x7d8] sm:$0xff]
    %v312 = vld [vmem:[#allocation3 + $0x7e0] sm:$0xff]
    %v313 = vld [vmem:[#allocation3 + $0x7e8] sm:$0xff]
    %v314 = vld [vmem:[#allocation3 + $0x7f0] sm:$0xff]
    %v315 = vld [vmem:[#allocation3 + $0x7f8] sm:$0xff]
    %v316 = vld [vmem:[#allocation3 + $0x800] sm:$0xff]
    %v317 = vld [vmem:[#allocation3 + $0x808] sm:$0xff]
    %v318 = vld [vmem:[#allocation3 + $0x810] sm:$0xff]
    %v319 = vld [vmem:[#allocation3 + $0x818] sm:$0xff]
    %v320 = vld [vmem:[#allocation3 + $0x820] sm:$0xff]
    %v321 = vld [vmem:[#allocation3 + $0x828] sm:$0xff]
    %v322 = vld [vmem:[#allocation3 + $0x830] sm:$0xff]
    %v323 = vld [vmem:[#allocation3 + $0x838] sm:$0xff]
    %v324 = vld [vmem:[#allocation3 + $0x840] sm:$0xff]
    %v325 = vld [vmem:[#allocation3 + $0x848] sm:$0xff]
    %v326 = vld [vmem:[#allocation3 + $0x850] sm:$0xff]
    %v327 = vld [vmem:[#allocation3 + $0x858] sm:$0xff]
    %v328 = vld [vmem:[#allocation3 + $0x860] sm:$0xff]
    %v329 = vld [vmem:[#allocation3 + $0x868] sm:$0xff]
    %v330 = vld [vmem:[#allocation3 + $0x870] sm:$0xff]
    %v331 = vld [vmem:[#allocation3 + $0x878] sm:$0xff]
    %v332 = vld [vmem:[#allocation3 + $0x880] sm:$0xff]
    %v333 = vld [vmem:[#allocation3 + $0x888] sm:$0xff]
    %v334 = vld [vmem:[#allocation3 + $0x890] sm:$0xff]
    %v335 = vld [vmem:[#allocation3 + $0x898] sm:$0xff]
    %v336 = vld [vmem:[#allocation3 + $0x8a0] sm:$0xff]
    %v337 = vld [vmem:[#allocation3 + $0x8a8] sm:$0xff]
    %v338 = vld [vmem:[#allocation3 + $0x8b0] sm:$0xff]
    %v339 = vld [vmem:[#allocation3 + $0x8b8] sm:$0xff]
    %v340 = vld [vmem:[#allocation3 + $0x8c0] sm:$0xff]
    %v341 = vld [vmem:[#allocation3 + $0x8c8] sm:$0xff]
    %v342 = vld [vmem:[#allocation3 + $0x8d0] sm:$0xff]
    %v343 = vld [vmem:[#allocation3 + $0x8d8] sm:$0xff]
    %v344 = vld [vmem:[#allocation3 + $0x8e0] sm:$0xff]
    %v345 = vld [vmem:[#allocation3 + $0x8e8] sm:$0xff]
    %v346 = vld [vmem:[#allocation3 + $0x8f0] sm:$0xff]
    %v347 = vld [vmem:[#allocation3 + $0x8f8] sm:$0xff]
    %v348 = vld [vmem:[#allocation3 + $0x900] sm:$0xff]
    %v349 = vld [vmem:[#allocation3 + $0x908] sm:$0xff]
    %v350 = vld [vmem:[#allocation3 + $0x910] sm:$0xff]
    %v351 = vld [vmem:[#allocation3 + $0x918] sm:$0xff]
    %v352 = vld [vmem:[#allocation3 + $0x920] sm:$0xff]
    %v353 = vld [vmem:[#allocation3 + $0x928] sm:$0xff]
    %v354 = vld [vmem:[#allocation3 + $0x930] sm:$0xff]
    %v355 = vld [vmem:[#allocation3 + $0x938] sm:$0xff]
    %v356 = vld [vmem:[#allocation3 + $0x940] sm:$0xff]
    %v357 = vld [vmem:[#allocation3 + $0x948] sm:$0xff]
    %v358 = vld [vmem:[#allocation3 + $0x950] sm:$0xff]
    %v359 = vld [vmem:[#allocation3 + $0x958] sm:$0xff]
    %v360 = vld [vmem:[#allocation3 + $0x960] sm:$0xff]
    %v361 = vld [vmem:[#allocation3 + $0x968] sm:$0xff]
    %v362 = vld [vmem:[#allocation3 + $0x970] sm:$0xff]
    %v363 = vld [vmem:[#allocation3 + $0x978] sm:$0xff]
    %v364 = vld [vmem:[#allocation3 + $0x980] sm:$0xff]
    %v365 = vld [vmem:[#allocation3 + $0x988] sm:$0xff]
    %v366 = vld [vmem:[#allocation3 + $0x990] sm:$0xff]
    %v367 = vld [vmem:[#allocation3 + $0x998] sm:$0xff]
    %v368 = vld [vmem:[#allocation3 + $0x9a0] sm:$0xff]
    %v369 = vld [vmem:[#allocation3 + $0x9a8] sm:$0xff]
    %v370 = vld [vmem:[#allocation3 + $0x9b0] sm:$0xff]
    %v371 = vld [vmem:[#allocation3 + $0x9b8] sm:$0xff]
    %v372 = vld [vmem:[#allocation3 + $0x9c0] sm:$0xff]
    %v373 = vld [vmem:[#allocation3 + $0x9c8] sm:$0xff]
    %v374 = vld [vmem:[#allocation3 + $0x9d0] sm:$0xff]
    %v375 = vld [vmem:[#allocation3 + $0x9d8] sm:$0xff]
    %v376 = vld [vmem:[#allocation3 + $0x9e0] sm:$0xff]
    %v377 = vld [vmem:[#allocation3 + $0x9e8] sm:$0xff]
    %v378 = vld [vmem:[#allocation3 + $0x9f0] sm:$0xff]
    %v379 = vld [vmem:[#allocation3 + $0x9f8] sm:$0xff]
    %v380 = vld [vmem:[#allocation3 + $0xa00] sm:$0xff]
    %v381 = vld [vmem:[#allocation3 + $0xa08] sm:$0xff]
    %v382 = vld [vmem:[#allocation3 + $0xa10] sm:$0xff]
    %v383 = vld [vmem:[#allocation3 + $0xa18] sm:$0xff]
    %v384 = vld [vmem:[#allocation3 + $0xa20] sm:$0xff]
    %v385 = vld [vmem:[#allocation3 + $0xa28] sm:$0xff]
    %v386 = vld [vmem:[#allocation3 + $0xa30] sm:$0xff]
    %v387 = vld [vmem:[#allocation3 + $0xa38] sm:$0xff]
    %v388 = vld [vmem:[#allocation3 + $0xa40] sm:$0xff]
    %v389 = vld [vmem:[#allocation3 + $0xa48] sm:$0xff]
    %v390 = vld [vmem:[#allocation3 + $0xa50] sm:$0xff]
    %v391 = vld [vmem:[#allocation3 + $0xa58] sm:$0xff]
    %v392 = vld [vmem:[#allocation3 + $0xa60] sm:$0xff]
    %v393 = vld [vmem:[#allocation3 + $0xa68] sm:$0xff]
    %v394 = vld [vmem:[#allocation3 + $0xa70] sm:$0xff]
    %v395 = vld [vmem:[#allocation3 + $0xa78] sm:$0xff]
    %v396 = vld [vmem:[#allocation3 + $0xa80] sm:$0xff]
    %v397 = vld [vmem:[#allocation3 + $0xa88] sm:$0xff]
    %v398 = vld [vmem:[#allocation3 + $0xa90] sm:$0xff]
    %v399 = vld [vmem:[#allocation3 + $0xa98] sm:$0xff]
    %v400 = vld [vmem:[#allocation3 + $0xaa0] sm:$0xff]
    %v401 = vld [vmem:[#allocation3 + $0xaa8] sm:$0xff]
    %v402 = vld [vmem:[#allocation3 + $0xab0] sm:$0xff]
    %v403 = vld [vmem:[#allocation3 + $0xab8] sm:$0xff]
    %v404 = vld [vmem:[#allocation3 + $0xac0] sm:$0xff]
    %v405 = vld [vmem:[#allocation3 + $0xac8] sm:$0xff]
    %v406 = vld [vmem:[#allocation3 + $0xad0] sm:$0xff]
    %v407 = vld [vmem:[#allocation3 + $0xad8] sm:$0xff]
    %v408 = vld [vmem:[#allocation3 + $0xae0] sm:$0xff]
    %v409 = vld [vmem:[#allocation3 + $0xae8] sm:$0xff]
    %v410 = vld [vmem:[#allocation3 + $0xaf0] sm:$0xff]
    %v411 = vld [vmem:[#allocation3 + $0xaf8] sm:$0xff]
    %v412 = vld [vmem:[#allocation3 + $0xb00] sm:$0xff]
    %v413 = vld [vmem:[#allocation3 + $0xb08] sm:$0xff]
    %v414 = vld [vmem:[#allocation3 + $0xb10] sm:$0xff]
    %v415 = vld [vmem:[#allocation3 + $0xb18] sm:$0xff]
    %v416 = vld [vmem:[#allocation3 + $0xb20] sm:$0xff]
    %v417 = vld [vmem:[#allocation3 + $0xb28] sm:$0xff]
    %v418 = vld [vmem:[#allocation3 + $0xb30] sm:$0xff]
    %v419 = vld [vmem:[#allocation3 + $0xb38] sm:$0xff]
    %v420 = vld [vmem:[#allocation3 + $0xb40] sm:$0xff]
    %v421 = vld [vmem:[#allocation3 + $0xb48] sm:$0xff]
    %v422 = vld [vmem:[#allocation3 + $0xb50] sm:$0xff]
    %v423 = vld [vmem:[#allocation3 + $0xb58] sm:$0xff]
    %v424 = vld [vmem:[#allocation3 + $0xb60] sm:$0xff]
    %v425 = vld [vmem:[#allocation3 + $0xb68] sm:$0xff]
    %v426 = vld [vmem:[#allocation3 + $0xb70] sm:$0xff]
    %v427 = vld [vmem:[#allocation3 + $0xb78] sm:$0xff]
    %v428 = vld [vmem:[#allocation3 + $0xb80] sm:$0xff]
    %v429 = vld [vmem:[#allocation3 + $0xb88] sm:$0xff]
    %v430 = vld [vmem:[#allocation3 + $0xb90] sm:$0xff]
    %v431 = vld [vmem:[#allocation3 + $0xb98] sm:$0xff]
    %v432 = vld [vmem:[#allocation3 + $0xba0] sm:$0xff]
    %v433 = vld [vmem:[#allocation3 + $0xba8] sm:$0xff]
    %v434 = vld [vmem:[#allocation3 + $0xbb0] sm:$0xff]
    %v435 = vld [vmem:[#allocation3 + $0xbb8] sm:$0xff]
    %v436 = vld [vmem:[#allocation3 + $0xbc0] sm:$0xff]
    %v437 = vld [vmem:[#allocation3 + $0xbc8] sm:$0xff]
    %v438 = vld [vmem:[#allocation3 + $0xbd0] sm:$0xff]
    %v439 = vld [vmem:[#allocation3 + $0xbd8] sm:$0xff]
    %v440 = vld [vmem:[#allocation3 + $0xbe0] sm:$0xff]
    %v441 = vld [vmem:[#allocation3 + $0xbe8] sm:$0xff]
    %v442 = vld [vmem:[#allocation3 + $0xbf0] sm:$0xff]
    %v443 = vld [vmem:[#allocation3 + $0xbf8] sm:$0xff]
    %v444 = vld [vmem:[#allocation3 + $0xc00] sm:$0xff]
    %v445 = vld [vmem:[#allocation3 + $0xc08] sm:$0xff]
    %v446 = vld [vmem:[#allocation3 + $0xc10] sm:$0xff]
    %v447 = vld [vmem:[#allocation3 + $0xc18] sm:$0xff]
    %v448 = vld [vmem:[#allocation3 + $0xc20] sm:$0xff]
    %v449 = vld [vmem:[#allocation3 + $0xc28] sm:$0xff]
    %v450 = vld [vmem:[#allocation3 + $0xc30] sm:$0xff]
    %v451 = vld [vmem:[#allocation3 + $0xc38] sm:$0xff]
    %v452 = vld [vmem:[#allocation3 + $0xc40] sm:$0xff]
    %v453 = vld [vmem:[#allocation3 + $0xc48] sm:$0xff]
    %v454 = vld [vmem:[#allocation3 + $0xc50] sm:$0xff]
    %v455 = vld [vmem:[#allocation3 + $0xc58] sm:$0xff]
    %v456 = vld [vmem:[#allocation3 + $0xc60] sm:$0xff]
    %v457 = vld [vmem:[#allocation3 + $0xc68] sm:$0xff]
    %v458 = vld [vmem:[#allocation3 + $0xc70] sm:$0xff]
    %v459 = vld [vmem:[#allocation3 + $0xc78] sm:$0xff]
    %v460 = vld [vmem:[#allocation3 + $0xc80] sm:$0xff]
    %v461 = vld [vmem:[#allocation3 + $0xc88] sm:$0xff]
    %v462 = vld [vmem:[#allocation3 + $0xc90] sm:$0xff]
    %v463 = vld [vmem:[#allocation3 + $0xc98] sm:$0xff]
    %v464 = vld [vmem:[#allocation3 + $0xca0] sm:$0xff]
    %v465 = vld [vmem:[#allocation3 + $0xca8] sm:$0xff]
    %v466 = vld [vmem:[#allocation3 + $0xcb0] sm:$0xff]
    %v467 = vld [vmem:[#allocation3 + $0xcb8] sm:$0xff]
    %v468 = vld [vmem:[#allocation3 + $0xcc0] sm:$0xff]
    %v469 = vld [vmem:[#allocation3 + $0xcc8] sm:$0xff]
    %v470 = vld [vmem:[#allocation3 + $0xcd0] sm:$0xff]
    %v471 = vld [vmem:[#allocation3 + $0xcd8] sm:$0xff]
    %v472 = vld [vmem:[#allocation3 + $0xce0] sm:$0xff]
    %v473 = vld [vmem:[#allocation3 + $0xce8] sm:$0xff]
    %v474 = vld [vmem:[#allocation3 + $0xcf0] sm:$0xff]
    %v475 = vld [vmem:[#allocation3 + $0xcf8] sm:$0xff]
    %v476 = vld [vmem:[#allocation3 + $0xd00] sm:$0xff]
    %v477 = vld [vmem:[#allocation3 + $0xd08] sm:$0xff]
    %v478 = vld [vmem:[#allocation3 + $0xd10] sm:$0xff]
    %v479 = vld [vmem:[#allocation3 + $0xd18] sm:$0xff]
    %v480 = vld [vmem:[#allocation3 + $0xd20] sm:$0xff]
    %v481 = vld [vmem:[#allocation3 + $0xd28] sm:$0xff]
    %v482 = vld [vmem:[#allocation3 + $0xd30] sm:$0xff]
    %v483 = vld [vmem:[#allocation3 + $0xd38] sm:$0xff]
    %v484 = vld [vmem:[#allocation3 + $0xd40] sm:$0xff]
    %v485 = vld [vmem:[#allocation3 + $0xd48] sm:$0xff]
    %v486 = vld [vmem:[#allocation3 + $0xd50] sm:$0xff]
    %v487 = vld [vmem:[#allocation3 + $0xd58] sm:$0xff]
    %v488 = vld [vmem:[#allocation3 + $0xd60] sm:$0xff]
    %v489 = vld [vmem:[#allocation3 + $0xd68] sm:$0xff]
    %v490 = vld [vmem:[#allocation3 + $0xd70] sm:$0xff]
    %v491 = vld [vmem:[#allocation3 + $0xd78] sm:$0xff]
    %v492 = vld [vmem:[#allocation3 + $0xd80] sm:$0xff]
    %v493 = vld [vmem:[#allocation3 + $0xd88] sm:$0xff]
    %v494 = vld [vmem:[#allocation3 + $0xd90] sm:$0xff]
    %v495 = vld [vmem:[#allocation3 + $0xd98] sm:$0xff]
    %v496 = vld [vmem:[#allocation3 + $0xda0] sm:$0xff]
    %v497 = vld [vmem:[#allocation3 + $0xda8] sm:$0xff]
    %v498 = vld [vmem:[#allocation3 + $0xdb0] sm:$0xff]
    %v499 = vld [vmem:[#allocation3 + $0xdb8] sm:$0xff]
    %v500 = vld [vmem:[#allocation3 + $0xdc0] sm:$0xff]
    %v501 = vld [vmem:[#allocation3 + $0xdc8] sm:$0xff]
    %v502 = vld [vmem:[#allocation3 + $0xdd0] sm:$0xff]
    %v503 = vld [vmem:[#allocation3 + $0xdd8] sm:$0xff]
    %v504 = vld [vmem:[#allocation3 + $0xde0] sm:$0xff]
    %v505 = vld [vmem:[#allocation3 + $0xde8] sm:$0xff]
    %v506 = vld [vmem:[#allocation3 + $0xdf0] sm:$0xff]
    %v507 = vld [vmem:[#allocation3 + $0xdf8] sm:$0xff]
    %v508 = vld [vmem:[#allocation3 + $0xe00] sm:$0xff]
    %v509 = vld [vmem:[#allocation3 + $0xe08] sm:$0xff]
    %v510 = vld [vmem:[#allocation3 + $0xe10] sm:$0xff]
    %v511 = vld [vmem:[#allocation3 + $0xe18] sm:$0xff]
    %v512 = vld [vmem:[#allocation3 + $0xe20] sm:$0xff]
    %v513 = vld [vmem:[#allocation3 + $0xe28] sm:$0xff]
    %v514 = vld [vmem:[#allocation3 + $0xe30] sm:$0xff]
    %v515 = vld [vmem:[#allocation3 + $0xe38] sm:$0xff]
    %v516 = vld [vmem:[#allocation3 + $0xe40] sm:$0xff]
    %v517 = vld [vmem:[#allocation3 + $0xe48] sm:$0xff]
    %v518 = vld [vmem:[#allocation3 + $0xe50] sm:$0xff]
    %v519 = vld [vmem:[#allocation3 + $0xe58] sm:$0xff]
    %v520 = vld [vmem:[#allocation3 + $0xe60] sm:$0xff]
    %v521 = vld [vmem:[#allocation3 + $0xe68] sm:$0xff]
    %v522 = vld [vmem:[#allocation3 + $0xe70] sm:$0xff]
    %v523 = vld [vmem:[#allocation3 + $0xe78] sm:$0xff]
    %v524 = vld [vmem:[#allocation3 + $0xe80] sm:$0xff]
    %v525 = vld [vmem:[#allocation3 + $0xe88] sm:$0xff]
    %v526 = vld [vmem:[#allocation3 + $0xe90] sm:$0xff]
    %v527 = vld [vmem:[#allocation3 + $0xe98] sm:$0xff]
    %v528 = vld [vmem:[#allocation3 + $0xea0] sm:$0xff]
    %v529 = vld [vmem:[#allocation3 + $0xea8] sm:$0xff]
    %v530 = vld [vmem:[#allocation3 + $0xeb0] sm:$0xff]
    %v531 = vld [vmem:[#allocation3 + $0xeb8] sm:$0xff]
    %v532 = vld [vmem:[#allocation3 + $0xec0] sm:$0xff]
    %v533 = vld [vmem:[#allocation3 + $0xec8] sm:$0xff]
    %v534 = vld [vmem:[#allocation3 + $0xed0] sm:$0xff]
    %v535 = vld [vmem:[#allocation3 + $0xed8] sm:$0xff]
    %v536 = vld [vmem:[#allocation3 + $0xee0] sm:$0xff]
    %v537 = vld [vmem:[#allocation3 + $0xee8] sm:$0xff]
    %v538 = vld [vmem:[#allocation3 + $0xef0] sm:$0xff]
    %v539 = vld [vmem:[#allocation3 + $0xef8] sm:$0xff]
    %v540 = vld [vmem:[#allocation3 + $0xf00] sm:$0xff]
    %v541 = vld [vmem:[#allocation3 + $0xf08] sm:$0xff]
    %v542 = vld [vmem:[#allocation3 + $0xf10] sm:$0xff]
    %v543 = vld [vmem:[#allocation3 + $0xf18] sm:$0xff]
    %v544 = vld [vmem:[#allocation3 + $0xf20] sm:$0xff]
    %v545 = vld [vmem:[#allocation3 + $0xf28] sm:$0xff]
    %v546 = vld [vmem:[#allocation3 + $0xf30] sm:$0xff]
    %v547 = vld [vmem:[#allocation3 + $0xf38] sm:$0xff]
    %v548 = vld [vmem:[#allocation3 + $0xf40] sm:$0xff]
    %v549 = vld [vmem:[#allocation3 + $0xf48] sm:$0xff]
    %v550 = vld [vmem:[#allocation3 + $0xf50] sm:$0xff]
    %v551 = vld [vmem:[#allocation3 + $0xf58] sm:$0xff]
    %v552 = vld [vmem:[#allocation3 + $0xf60] sm:$0xff]
    %v553 = vld [vmem:[#allocation3 + $0xf68] sm:$0xff]
    %v554 = vld [vmem:[#allocation3 + $0xf70] sm:$0xff]
    %v555 = vld [vmem:[#allocation3 + $0xf78] sm:$0xff]
    %v556 = vld [vmem:[#allocation3 + $0xf80] sm:$0xff]
    %v557 = vld [vmem:[#allocation3 + $0xf88] sm:$0xff]
    %v558 = vld [vmem:[#allocation3 + $0xf90] sm:$0xff]
    %v559 = vld [vmem:[#allocation3 + $0xf98] sm:$0xff]
    %v560 = vld [vmem:[#allocation3 + $0xfa0] sm:$0xff]
    %v561 = vld [vmem:[#allocation3 + $0xfa8] sm:$0xff]
    %v562 = vld [vmem:[#allocation3 + $0xfb0] sm:$0xff]
    %v563 = vld [vmem:[#allocation3 + $0xfb8] sm:$0xff]
    %v564 = vld [vmem:[#allocation3 + $0xfc0] sm:$0xff]
    %v565 = vld [vmem:[#allocation3 + $0xfc8] sm:$0xff]
    %v566 = vld [vmem:[#allocation3 + $0xfd0] sm:$0xff]
    %v567 = vld [vmem:[#allocation3 + $0xfd8] sm:$0xff]
    %v568 = vld [vmem:[#allocation3 + $0xfe0] sm:$0xff]
    %v569 = vld [vmem:[#allocation3 + $0xfe8] sm:$0xff]
    %v570 = vld [vmem:[#allocation3 + $0xff0] sm:$0xff]
    %v571 = vld [vmem:[#allocation3 + $0xff8] sm:$0xff]
    %v572 = vld [vmem:[#allocation3 + $0x1000] sm:$0xff]
    %v573 = vld [vmem:[#allocation3 + $0x1008] sm:$0xff]
    %v574 = vld [vmem:[#allocation3 + $0x1010] sm:$0xff]
    %v575 = vld [vmem:[#allocation3 + $0x1018] sm:$0xff]
    %v576 = vld [vmem:[#allocation3 + $0x1020] sm:$0xff]
    %v577 = vld [vmem:[#allocation3 + $0x1028] sm:$0xff]
    %v578 = vld [vmem:[#allocation3 + $0x1030] sm:$0xff]
    %v579 = vld [vmem:[#allocation3 + $0x1038] sm:$0xff]
    %v580 = vld [vmem:[#allocation3 + $0x1040] sm:$0xff]
    %v581 = vld [vmem:[#allocation3 + $0x1048] sm:$0xff]
    %v582 = vld [vmem:[#allocation3 + $0x1050] sm:$0xff]
    %v583 = vld [vmem:[#allocation3 + $0x1058] sm:$0xff]
    %v584 = vld [vmem:[#allocation3 + $0x1060] sm:$0xff]
    %v585 = vld [vmem:[#allocation3 + $0x1068] sm:$0xff]
    %v586 = vld [vmem:[#allocation3 + $0x1070] sm:$0xff]
    %v587 = vld [vmem:[#allocation3 + $0x1078] sm:$0xff]
    %v588 = vld [vmem:[#allocation3 + $0x1080] sm:$0xff]
    %v589 = vld [vmem:[#allocation3 + $0x1088] sm:$0xff]
    %v590 = vld [vmem:[#allocation3 + $0x1090] sm:$0xff]
    %v591 = vld [vmem:[#allocation3 + $0x1098] sm:$0xff]
    %v592 = vld [vmem:[#allocation3 + $0x10a0] sm:$0xff]
    %v593 = vld [vmem:[#allocation3 + $0x10a8] sm:$0xff]
    %v594 = vld [vmem:[#allocation3 + $0x10b0] sm:$0xff]
    %v595 = vld [vmem:[#allocation3 + $0x10b8] sm:$0xff]
    %v596 = vld [vmem:[#allocation3 + $0x10c0] sm:$0xff]
    %v597 = vld [vmem:[#allocation3 + $0x10c8] sm:$0xff]
    %v598 = vld [vmem:[#allocation3 + $0x10d0] sm:$0xff]
    %v599 = vld [vmem:[#allocation3 + $0x10d8] sm:$0xff]
    %v600 = vld [vmem:[#allocation3 + $0x10e0] sm:$0xff]
    %v601 = vld [vmem:[#allocation3 + $0x10e8] sm:$0xff]
    %v602 = vld [vmem:[#allocation3 + $0x10f0] sm:$0xff]
    %v603 = vld [vmem:[#allocation3 + $0x10f8] sm:$0xff]
    %v604 = vld [vmem:[#allocation3 + $0x1100] sm:$0xff]
    %v605 = vld [vmem:[#allocation3 + $0x1108] sm:$0xff]
    %v606 = vld [vmem:[#allocation3 + $0x1110] sm:$0xff]
    %v607 = vld [vmem:[#allocation3 + $0x1118] sm:$0xff]
    %v608 = vld [vmem:[#allocation3 + $0x1120] sm:$0xff]
    %v609 = vld [vmem:[#allocation3 + $0x1128] sm:$0xff]
    %v610 = vld [vmem:[#allocation3 + $0x1130] sm:$0xff]
    %v611 = vld [vmem:[#allocation3 + $0x1138] sm:$0xff]
    %v612 = vld [vmem:[#allocation3 + $0x1140] sm:$0xff]
    %v613 = vld [vmem:[#allocation3 + $0x1148] sm:$0xff]
    %v614 = vld [vmem:[#allocation3 + $0x1150] sm:$0xff]
    %v615 = vld [vmem:[#allocation3 + $0x1158] sm:$0xff]
    %v616 = vld [vmem:[#allocation3 + $0x1160] sm:$0xff]
    %v617 = vld [vmem:[#allocation3 + $0x1168] sm:$0xff]
    %v618 = vld [vmem:[#allocation3 + $0x1170] sm:$0xff]
    %v619 = vld [vmem:[#allocation3 + $0x1178] sm:$0xff]
    %v620 = vld [vmem:[#allocation3 + $0x1180] sm:$0xff]
    %v621 = vld [vmem:[#allocation3 + $0x1188] sm:$0xff]
    %v622 = vld [vmem:[#allocation3 + $0x1190] sm:$0xff]
    %v623 = vld [vmem:[#allocation3 + $0x1198] sm:$0xff]
    %v624 = vld [vmem:[#allocation3 + $0x11a0] sm:$0xff]
    %v625 = vld [vmem:[#allocation3 + $0x11a8] sm:$0xff]
    %v626 = vld [vmem:[#allocation3 + $0x11b0] sm:$0xff]
    %v627 = vld [vmem:[#allocation3 + $0x11b8] sm:$0xff]
    %v628 = vld [vmem:[#allocation3 + $0x11c0] sm:$0xff]
    %v629 = vld [vmem:[#allocation3 + $0x11c8] sm:$0xff]
    %v630 = vld [vmem:[#allocation3 + $0x11d0] sm:$0xff]
    %v631 = vld [vmem:[#allocation3 + $0x11d8] sm:$0xff]
    %v632 = vld [vmem:[#allocation3 + $0x11e0] sm:$0xff]
    %v633 = vld [vmem:[#allocation3 + $0x11e8] sm:$0xff]
    %v634 = vld [vmem:[#allocation3 + $0x11f0] sm:$0xff]
    %v635 = vld [vmem:[#allocation3 + $0x11f8] sm:$0xff]
    %v636 = vld [vmem:[#allocation3 + $0x1200] sm:$0xff]
    %v637 = vld [vmem:[#allocation3 + $0x1208] sm:$0xff]
    %v638 = vld [vmem:[#allocation3 + $0x1210] sm:$0xff]
    %v639 = vld [vmem:[#allocation3 + $0x1218] sm:$0xff]
    %v640 = vld [vmem:[#allocation3 + $0x1220] sm:$0xff]
    %v641 = vld [vmem:[#allocation3 + $0x1228] sm:$0xff]
    %v642 = vld [vmem:[#allocation3 + $0x1230] sm:$0xff]
    %v643 = vld [vmem:[#allocation3 + $0x1238] sm:$0xff]
    %v644 = vld [vmem:[#allocation3 + $0x1240] sm:$0xff]
    %v645 = vld [vmem:[#allocation3 + $0x1248] sm:$0xff]
    %v646 = vld [vmem:[#allocation3 + $0x1250] sm:$0xff]
    %v647 = vld [vmem:[#allocation3 + $0x1258] sm:$0xff]
    %v648 = vld [vmem:[#allocation3 + $0x1260] sm:$0xff]
    %v649 = vld [vmem:[#allocation3 + $0x1268] sm:$0xff]
    %v650 = vld [vmem:[#allocation3 + $0x1270] sm:$0xff]
    %v651 = vld [vmem:[#allocation3 + $0x1278] sm:$0xff]
    %v652 = vld [vmem:[#allocation3 + $0x1280] sm:$0xff]
    %v653 = vld [vmem:[#allocation3 + $0x1288] sm:$0xff]
    %v654 = vld [vmem:[#allocation3 + $0x1290] sm:$0xff]
    %v655 = vld [vmem:[#allocation3 + $0x1298] sm:$0xff]
    %v656 = vld [vmem:[#allocation3 + $0x12a0] sm:$0xff]
    %v657 = vld [vmem:[#allocation3 + $0x12a8] sm:$0xff]
    %v658 = vld [vmem:[#allocation3 + $0x12b0] sm:$0xff]
    %v659 = vld [vmem:[#allocation3 + $0x12b8] sm:$0xff]
    %v660 = vld [vmem:[#allocation3 + $0x12c0] sm:$0xff]
    %v661 = vld [vmem:[#allocation3 + $0x12c8] sm:$0xff]
    %v662 = vld [vmem:[#allocation3 + $0x12d0] sm:$0xff]
    %v663 = vld [vmem:[#allocation3 + $0x12d8] sm:$0xff]
    %v664 = vld [vmem:[#allocation3 + $0x12e0] sm:$0xff]
    %v665 = vld [vmem:[#allocation3 + $0x12e8] sm:$0xff]
    %v666 = vld [vmem:[#allocation3 + $0x12f0] sm:$0xff]
    %v667 = vld [vmem:[#allocation3 + $0x12f8] sm:$0xff]
    %v668 = vld [vmem:[#allocation3 + $0x1300] sm:$0xff]
    %v669 = vld [vmem:[#allocation3 + $0x1308] sm:$0xff]
    %v670 = vld [vmem:[#allocation3 + $0x1310] sm:$0xff]
    %v671 = vld [vmem:[#allocation3 + $0x1318] sm:$0xff]
    %v672 = vld [vmem:[#allocation3 + $0x1320] sm:$0xff]
    %v673 = vld [vmem:[#allocation3 + $0x1328] sm:$0xff]
    %v674 = vld [vmem:[#allocation3 + $0x1330] sm:$0xff]
    %v675 = vld [vmem:[#allocation3 + $0x1338] sm:$0xff]
    %v676 = vld [vmem:[#allocation3 + $0x1340] sm:$0xff]
    %v677 = vld [vmem:[#allocation3 + $0x1348] sm:$0xff]
    %v678 = vld [vmem:[#allocation3 + $0x1350] sm:$0xff]
    %v679 = vld [vmem:[#allocation3 + $0x1358] sm:$0xff]
    %v680 = vld [vmem:[#allocation3 + $0x1360] sm:$0xff]
    %v681 = vld [vmem:[#allocation3 + $0x1368] sm:$0xff]
    %v682 = vld [vmem:[#allocation3 + $0x1370] sm:$0xff]
    %v683 = vld [vmem:[#allocation3 + $0x1378] sm:$0xff]
    %v684 = vld [vmem:[#allocation3 + $0x1380] sm:$0xff]
    %v685 = vld [vmem:[#allocation3 + $0x1388] sm:$0xff]
    %v686 = vld [vmem:[#allocation3 + $0x1390] sm:$0xff]
    %v687 = vld [vmem:[#allocation3 + $0x1398] sm:$0xff]
    %v688 = vld [vmem:[#allocation3 + $0x13a0] sm:$0xff]
    %v689 = vld [vmem:[#allocation3 + $0x13a8] sm:$0xff]
    %v690 = vld [vmem:[#allocation3 + $0x13b0] sm:$0xff]
    %v691 = vld [vmem:[#allocation3 + $0x13b8] sm:$0xff]
    %v692 = vld [vmem:[#allocation3 + $0x13c0] sm:$0xff]
    %v693 = vld [vmem:[#allocation3 + $0x13c8] sm:$0xff]
    %v694 = vld [vmem:[#allocation3 + $0x13d0] sm:$0xff]
    %v695 = vld [vmem:[#allocation3 + $0x13d8] sm:$0xff]
    %v696 = vld [vmem:[#allocation3 + $0x13e0] sm:$0xff]
    %v697 = vld [vmem:[#allocation3 + $0x13e8] sm:$0xff]
    %v698 = vld [vmem:[#allocation3 + $0x13f0] sm:$0xff]
    %v699 = vld [vmem:[#allocation3 + $0x13f8] sm:$0xff]
    %v700 = vld [vmem:[#allocation5] sm:$0xff]
    %v701 = vld [vmem:[#allocation5 + $0x8] sm:$0x3]
    %v704 = vlaneseq
    %v705 = vshrl.u32 %v704, 7
    %v706 = vsub.s32 0, %v705
    %v707 = vrot.slane %v700, %v706
    %v708 = vlaneseq
    %v709 = vshrl.u32 %v708, 7
    %v710 = vsub.s32 1, %v709
    %v711 = vrot.slane %v700, %v710
    %v712 = vlaneseq
    %v713 = vshrl.u32 %v712, 7
    %v714 = vsub.s32 2, %v713
    %v715 = vrot.slane %v700, %v714
    %v716 = vlaneseq
    %v717 = vshrl.u32 %v716, 7
    %v718 = vsub.s32 3, %v717
    %v719 = vrot.slane %v700, %v718
    %v720 = vlaneseq
    %v721 = vshrl.u32 %v720, 7
    %v722 = vsub.s32 4, %v721
    %v723 = vrot.slane %v700, %v722
    %v724 = vlaneseq
    %v725 = vshrl.u32 %v724, 7
    %v726 = vsub.s32 5, %v725
    %v727 = vrot.slane %v700, %v726
    %v728 = vlaneseq
    %v729 = vshrl.u32 %v728, 7
    %v730 = vsub.s32 6, %v729
    %v731 = vrot.slane %v700, %v730
    %v732 = vlaneseq
    %v733 = vshrl.u32 %v732, 7
    %v734 = vsub.s32 7, %v733
    %v735 = vrot.slane %v700, %v734
    %v736 = vlaneseq
    %v737 = vshrl.u32 %v736, 7
    %v738 = vsub.s32 0, %v737
    %v739 = vrot.slane %v701, %v738
    %v740 = vlaneseq
    %v741 = vshrl.u32 %v740, 7
    %v742 = vsub.s32 1, %v741
    %v743 = vrot.slane %v701, %v742
    %v755 = vcombine.high %v59, %v59
    %v757 = vunpack.c.l.s4 1966171168
    %v758 = vunpack.c.0.s8 %v757
    %v759 = vlaneseq
    %v760 = vshrl.u32 %v759, 7
    %v761 = vsub.s32 %v758, %v760
    %v762 = vrot.slane %v59, %v761
    %v764 = vunpack.c.l.s4 1966171168
    %v765 = vunpack.c.0.s8 %v764
    %v766 = vlaneseq
    %v767 = vshrl.u32 %v766, 7
    %v768 = vsub.s32 %v765, %v767
    %v769 = vrot.slane %v755, %v768
    %v770 = vcombine.high %v762, %v762
    %v771 = vcombine.high %v769, %v769
    %v773 = vunpack.c.l.s4 1966171168
    %v774 = vunpack.c.0.s8 %v773
    %v775 = vlaneseq
    %v776 = vshrl.u32 %v775, 7
    %v777 = vsub.s32 %v774, %v776
    %v778 = vrot.slane %v762, %v777
    %v780 = vunpack.c.l.s4 1966171168
    %v781 = vunpack.c.0.s8 %v780
    %v782 = vlaneseq
    %v783 = vshrl.u32 %v782, 7
    %v784 = vsub.s32 %v781, %v783
    %v785 = vrot.slane %v769, %v784
    %v787 = vunpack.c.l.s4 1966171168
    %v788 = vunpack.c.0.s8 %v787
    %v789 = vlaneseq
    %v790 = vshrl.u32 %v789, 7
    %v791 = vsub.s32 %v788, %v790
    %v792 = vrot.slane %v770, %v791
    %v794 = vunpack.c.l.s4 1966171168
    %v795 = vunpack.c.0.s8 %v794
    %v796 = vlaneseq
    %v797 = vshrl.u32 %v796, 7
    %v798 = vsub.s32 %v795, %v797
    %v799 = vrot.slane %v771, %v798
    %v800 = vcombine.high %v778, %v778
    %v801 = vcombine.high %v785, %v785
    %v802 = vcombine.high %v792, %v792
    %v803 = vcombine.high %v799, %v799
    %v1452 = vunpack.c.l.b16 %v60
    %v1453 = vunpack.c.h.b16 %v60
    %v1454 = vunpack.c.l.b16 %v61
    %v1455 = vunpack.c.h.b16 %v61
    %v1456 = vunpack.c.l.b16 %v62
    %v1457 = vunpack.c.h.b16 %v62
    %v1458 = vunpack.c.l.b16 %v63
    %v1459 = vunpack.c.h.b16 %v63
    %v1460 = vunpack.c.l.b16 %v64
    %v1461 = vunpack.c.h.b16 %v64
    %v1462 = vunpack.c.l.b16 %v65
    %v1463 = vunpack.c.h.b16 %v65
    %v1464 = vunpack.c.l.b16 %v66
    %v1465 = vunpack.c.h.b16 %v66
    %v1466 = vunpack.c.l.b16 %v67
    %v1467 = vunpack.c.h.b16 %v67
    %v1468 = vunpack.c.l.b16 %v68
    %v1469 = vunpack.c.h.b16 %v68
    %v1470 = vunpack.c.l.b16 %v69
    %v1471 = vunpack.c.h.b16 %v69
    %v1472 = vunpack.c.l.b16 %v70
    %v1473 = vunpack.c.h.b16 %v70
    %v1474 = vunpack.c.l.b16 %v71
    %v1475 = vunpack.c.h.b16 %v71
    %v1476 = vunpack.c.l.b16 %v72
    %v1477 = vunpack.c.h.b16 %v72
    %v1478 = vunpack.c.l.b16 %v73
    %v1479 = vunpack.c.h.b16 %v73
    %v1480 = vunpack.c.l.b16 %v74
    %v1481 = vunpack.c.h.b16 %v74
    %v1482 = vunpack.c.l.b16 %v75
    %v1483 = vunpack.c.h.b16 %v75
    %v1484 = vunpack.c.l.b16 %v76
    %v1485 = vunpack.c.h.b16 %v76
    %v1486 = vunpack.c.l.b16 %v77
    %v1487 = vunpack.c.h.b16 %v77
    %v1488 = vunpack.c.l.b16 %v78
    %v1489 = vunpack.c.h.b16 %v78
    %v1490 = vunpack.c.l.b16 %v79
    %v1491 = vunpack.c.h.b16 %v79
    %v1492 = vunpack.c.l.b16 %v80
    %v1493 = vunpack.c.h.b16 %v80
    %v1494 = vunpack.c.l.b16 %v81
    %v1495 = vunpack.c.h.b16 %v81
    %v1496 = vunpack.c.l.b16 %v82
    %v1497 = vunpack.c.h.b16 %v82
    %v1498 = vunpack.c.l.b16 %v83
    %v1499 = vunpack.c.h.b16 %v83
    %v1500 = vunpack.c.l.b16 %v84
    %v1501 = vunpack.c.h.b16 %v84
    %v1502 = vunpack.c.l.b16 %v85
    %v1503 = vunpack.c.h.b16 %v85
    %v1504 = vunpack.c.l.b16 %v86
    %v1505 = vunpack.c.h.b16 %v86
    %v1506 = vunpack.c.l.b16 %v87
    %v1507 = vunpack.c.h.b16 %v87
    %v1508 = vunpack.c.l.b16 %v88
    %v1509 = vunpack.c.h.b16 %v88
    %v1510 = vunpack.c.l.b16 %v89
    %v1511 = vunpack.c.h.b16 %v89
    %v1512 = vunpack.c.l.b16 %v90
    %v1513 = vunpack.c.h.b16 %v90
    %v1514 = vunpack.c.l.b16 %v91
    %v1515 = vunpack.c.h.b16 %v91
    %v1516 = vunpack.c.l.b16 %v92
    %v1517 = vunpack.c.h.b16 %v92
    %v1518 = vunpack.c.l.b16 %v93
    %v1519 = vunpack.c.h.b16 %v93
    %v1520 = vunpack.c.l.b16 %v94
    %v1521 = vunpack.c.h.b16 %v94
    %v1522 = vunpack.c.l.b16 %v95
    %v1523 = vunpack.c.h.b16 %v95
    %v1524 = vunpack.c.l.b16 %v96
    %v1525 = vunpack.c.h.b16 %v96
    %v1526 = vunpack.c.l.b16 %v97
    %v1527 = vunpack.c.h.b16 %v97
    %v1528 = vunpack.c.l.b16 %v98
    %v1529 = vunpack.c.h.b16 %v98
    %v1530 = vunpack.c.l.b16 %v99
    %v1531 = vunpack.c.h.b16 %v99
    %v1532 = vunpack.c.l.b16 %v100
    %v1533 = vunpack.c.h.b16 %v100
    %v1534 = vunpack.c.l.b16 %v101
    %v1535 = vunpack.c.h.b16 %v101
    %v1536 = vunpack.c.l.b16 %v102
    %v1537 = vunpack.c.h.b16 %v102
    %v1538 = vunpack.c.l.b16 %v103
    %v1539 = vunpack.c.h.b16 %v103
    %v1540 = vunpack.c.l.b16 %v104
    %v1541 = vunpack.c.h.b16 %v104
    %v1542 = vunpack.c.l.b16 %v105
    %v1543 = vunpack.c.h.b16 %v105
    %v1544 = vunpack.c.l.b16 %v106
    %v1545 = vunpack.c.h.b16 %v106
    %v1546 = vunpack.c.l.b16 %v107
    %v1547 = vunpack.c.h.b16 %v107
    %v1548 = vunpack.c.l.b16 %v108
    %v1549 = vunpack.c.h.b16 %v108
    %v1550 = vunpack.c.l.b16 %v109
    %v1551 = vunpack.c.h.b16 %v109
    %v1552 = vunpack.c.l.b16 %v110
    %v1553 = vunpack.c.h.b16 %v110
    %v1554 = vunpack.c.l.b16 %v111
    %v1555 = vunpack.c.h.b16 %v111
    %v1556 = vunpack.c.l.b16 %v112
    %v1557 = vunpack.c.h.b16 %v112
    %v1558 = vunpack.c.l.b16 %v113
    %v1559 = vunpack.c.h.b16 %v113
    %v1560 = vunpack.c.l.b16 %v114
    %v1561 = vunpack.c.h.b16 %v114
    %v1562 = vunpack.c.l.b16 %v115
    %v1563 = vunpack.c.h.b16 %v115
    %v1564 = vunpack.c.l.b16 %v116
    %v1565 = vunpack.c.h.b16 %v116
    %v1566 = vunpack.c.l.b16 %v117
    %v1567 = vunpack.c.h.b16 %v117
    %v1568 = vunpack.c.l.b16 %v118
    %v1569 = vunpack.c.h.b16 %v118
    %v1570 = vunpack.c.l.b16 %v119
    %v1571 = vunpack.c.h.b16 %v119
    %v1572 = vunpack.c.l.b16 %v120
    %v1573 = vunpack.c.h.b16 %v120
    %v1574 = vunpack.c.l.b16 %v121
    %v1575 = vunpack.c.h.b16 %v121
    %v1576 = vunpack.c.l.b16 %v122
    %v1577 = vunpack.c.h.b16 %v122
    %v1578 = vunpack.c.l.b16 %v123
    %v1579 = vunpack.c.h.b16 %v123
    %v1580 = vunpack.c.l.b16 %v124
    %v1581 = vunpack.c.h.b16 %v124
    %v1582 = vunpack.c.l.b16 %v125
    %v1583 = vunpack.c.h.b16 %v125
    %v1584 = vunpack.c.l.b16 %v126
    %v1585 = vunpack.c.h.b16 %v126
    %v1586 = vunpack.c.l.b16 %v127
    %v1587 = vunpack.c.h.b16 %v127
    %v1588 = vunpack.c.l.b16 %v128
    %v1589 = vunpack.c.h.b16 %v128
    %v1590 = vunpack.c.l.b16 %v129
    %v1591 = vunpack.c.h.b16 %v129
    %v1592 = vunpack.c.l.b16 %v130
    %v1593 = vunpack.c.h.b16 %v130
    %v1594 = vunpack.c.l.b16 %v131
    %v1595 = vunpack.c.h.b16 %v131
    %v1596 = vunpack.c.l.b16 %v132
    %v1597 = vunpack.c.h.b16 %v132
    %v1598 = vunpack.c.l.b16 %v133
    %v1599 = vunpack.c.h.b16 %v133
    %v1600 = vunpack.c.l.b16 %v134
    %v1601 = vunpack.c.h.b16 %v134
    %v1602 = vunpack.c.l.b16 %v135
    %v1603 = vunpack.c.h.b16 %v135
    %v1604 = vunpack.c.l.b16 %v136
    %v1605 = vunpack.c.h.b16 %v136
    %v1606 = vunpack.c.l.b16 %v137
    %v1607 = vunpack.c.h.b16 %v137
    %v1608 = vunpack.c.l.b16 %v138
    %v1609 = vunpack.c.h.b16 %v138
    %v1610 = vunpack.c.l.b16 %v139
    %v1611 = vunpack.c.h.b16 %v139
    %v1612 = vunpack.c.l.b16 %v140
    %v1613 = vunpack.c.h.b16 %v140
    %v1614 = vunpack.c.l.b16 %v141
    %v1615 = vunpack.c.h.b16 %v141
    %v1616 = vunpack.c.l.b16 %v142
    %v1617 = vunpack.c.h.b16 %v142
    %v1618 = vunpack.c.l.b16 %v143
    %v1619 = vunpack.c.h.b16 %v143
    %v1620 = vunpack.c.l.b16 %v144
    %v1621 = vunpack.c.h.b16 %v144
    %v1622 = vunpack.c.l.b16 %v145
    %v1623 = vunpack.c.h.b16 %v145
    %v1624 = vunpack.c.l.b16 %v146
    %v1625 = vunpack.c.h.b16 %v146
    %v1626 = vunpack.c.l.b16 %v147
    %v1627 = vunpack.c.h.b16 %v147
    %v1628 = vunpack.c.l.b16 %v148
    %v1629 = vunpack.c.h.b16 %v148
    %v1630 = vunpack.c.l.b16 %v149
    %v1631 = vunpack.c.h.b16 %v149
    %v1632 = vunpack.c.l.b16 %v150
    %v1633 = vunpack.c.h.b16 %v150
    %v1634 = vunpack.c.l.b16 %v151
    %v1635 = vunpack.c.h.b16 %v151
    %v1636 = vunpack.c.l.b16 %v152
    %v1637 = vunpack.c.h.b16 %v152
    %v1638 = vunpack.c.l.b16 %v153
    %v1639 = vunpack.c.h.b16 %v153
    %v1640 = vunpack.c.l.b16 %v154
    %v1641 = vunpack.c.h.b16 %v154
    %v1642 = vunpack.c.l.b16 %v155
    %v1643 = vunpack.c.h.b16 %v155
    %v1644 = vunpack.c.l.b16 %v156
    %v1645 = vunpack.c.h.b16 %v156
    %v1646 = vunpack.c.l.b16 %v157
    %v1647 = vunpack.c.h.b16 %v157
    %v1648 = vunpack.c.l.b16 %v158
    %v1649 = vunpack.c.h.b16 %v158
    %v1650 = vunpack.c.l.b16 %v159
    %v1651 = vunpack.c.h.b16 %v159
    %v1652 = vunpack.c.l.b16 %v160
    %v1653 = vunpack.c.h.b16 %v160
    %v1654 = vunpack.c.l.b16 %v161
    %v1655 = vunpack.c.h.b16 %v161
    %v1656 = vunpack.c.l.b16 %v162
    %v1657 = vunpack.c.h.b16 %v162
    %v1658 = vunpack.c.l.b16 %v163
    %v1659 = vunpack.c.h.b16 %v163
    %v1660 = vunpack.c.l.b16 %v164
    %v1661 = vunpack.c.h.b16 %v164
    %v1662 = vunpack.c.l.b16 %v165
    %v1663 = vunpack.c.h.b16 %v165
    %v1664 = vunpack.c.l.b16 %v166
    %v1665 = vunpack.c.h.b16 %v166
    %v1666 = vunpack.c.l.b16 %v167
    %v1667 = vunpack.c.h.b16 %v167
    %v1668 = vunpack.c.l.b16 %v168
    %v1669 = vunpack.c.h.b16 %v168
    %v1670 = vunpack.c.l.b16 %v169
    %v1671 = vunpack.c.h.b16 %v169
    %v1672 = vunpack.c.l.b16 %v170
    %v1673 = vunpack.c.h.b16 %v170
    %v1674 = vunpack.c.l.b16 %v171
    %v1675 = vunpack.c.h.b16 %v171
    %v1676 = vunpack.c.l.b16 %v172
    %v1677 = vunpack.c.h.b16 %v172
    %v1678 = vunpack.c.l.b16 %v173
    %v1679 = vunpack.c.h.b16 %v173
    %v1680 = vunpack.c.l.b16 %v174
    %v1681 = vunpack.c.h.b16 %v174
    %v1682 = vunpack.c.l.b16 %v175
    %v1683 = vunpack.c.h.b16 %v175
    %v1684 = vunpack.c.l.b16 %v176
    %v1685 = vunpack.c.h.b16 %v176
    %v1686 = vunpack.c.l.b16 %v177
    %v1687 = vunpack.c.h.b16 %v177
    %v1688 = vunpack.c.l.b16 %v178
    %v1689 = vunpack.c.h.b16 %v178
    %v1690 = vunpack.c.l.b16 %v179
    %v1691 = vunpack.c.h.b16 %v179
    %v1692 = vunpack.c.l.b16 %v180
    %v1693 = vunpack.c.h.b16 %v180
    %v1694 = vunpack.c.l.b16 %v181
    %v1695 = vunpack.c.h.b16 %v181
    %v1696 = vunpack.c.l.b16 %v182
    %v1697 = vunpack.c.h.b16 %v182
    %v1698 = vunpack.c.l.b16 %v183
    %v1699 = vunpack.c.h.b16 %v183
    %v1700 = vunpack.c.l.b16 %v184
    %v1701 = vunpack.c.h.b16 %v184
    %v1702 = vunpack.c.l.b16 %v185
    %v1703 = vunpack.c.h.b16 %v185
    %v1704 = vunpack.c.l.b16 %v186
    %v1705 = vunpack.c.h.b16 %v186
    %v1706 = vunpack.c.l.b16 %v187
    %v1707 = vunpack.c.h.b16 %v187
    %v1708 = vunpack.c.l.b16 %v188
    %v1709 = vunpack.c.h.b16 %v188
    %v1710 = vunpack.c.l.b16 %v189
    %v1711 = vunpack.c.h.b16 %v189
    %v1712 = vunpack.c.l.b16 %v190
    %v1713 = vunpack.c.h.b16 %v190
    %v1714 = vunpack.c.l.b16 %v191
    %v1715 = vunpack.c.h.b16 %v191
    %v1716 = vunpack.c.l.b16 %v192
    %v1717 = vunpack.c.h.b16 %v192
    %v1718 = vunpack.c.l.b16 %v193
    %v1719 = vunpack.c.h.b16 %v193
    %v1720 = vunpack.c.l.b16 %v194
    %v1721 = vunpack.c.h.b16 %v194
    %v1722 = vunpack.c.l.b16 %v195
    %v1723 = vunpack.c.h.b16 %v195
    %v1724 = vunpack.c.l.b16 %v196
    %v1725 = vunpack.c.h.b16 %v196
    %v1726 = vunpack.c.l.b16 %v197
    %v1727 = vunpack.c.h.b16 %v197
    %v1728 = vunpack.c.l.b16 %v198
    %v1729 = vunpack.c.h.b16 %v198
    %v1730 = vunpack.c.l.b16 %v199
    %v1731 = vunpack.c.h.b16 %v199
    %v1732 = vunpack.c.l.b16 %v200
    %v1733 = vunpack.c.h.b16 %v200
    %v1734 = vunpack.c.l.b16 %v201
    %v1735 = vunpack.c.h.b16 %v201
    %v1736 = vunpack.c.l.b16 %v202
    %v1737 = vunpack.c.h.b16 %v202
    %v1738 = vunpack.c.l.b16 %v203
    %v1739 = vunpack.c.h.b16 %v203
    %v1740 = vunpack.c.l.b16 %v204
    %v1741 = vunpack.c.h.b16 %v204
    %v1742 = vunpack.c.l.b16 %v205
    %v1743 = vunpack.c.h.b16 %v205
    %v1744 = vunpack.c.l.b16 %v206
    %v1745 = vunpack.c.h.b16 %v206
    %v1746 = vunpack.c.l.b16 %v207
    %v1747 = vunpack.c.h.b16 %v207
    %v1748 = vunpack.c.l.b16 %v208
    %v1749 = vunpack.c.h.b16 %v208
    %v1750 = vunpack.c.l.b16 %v209
    %v1751 = vunpack.c.h.b16 %v209
    %v1752 = vunpack.c.l.b16 %v210
    %v1753 = vunpack.c.h.b16 %v210
    %v1754 = vunpack.c.l.b16 %v211
    %v1755 = vunpack.c.h.b16 %v211
    %v1756 = vunpack.c.l.b16 %v212
    %v1757 = vunpack.c.h.b16 %v212
    %v1758 = vunpack.c.l.b16 %v213
    %v1759 = vunpack.c.h.b16 %v213
    %v1760 = vunpack.c.l.b16 %v214
    %v1761 = vunpack.c.h.b16 %v214
    %v1762 = vunpack.c.l.b16 %v215
    %v1763 = vunpack.c.h.b16 %v215
    %v1764 = vunpack.c.l.b16 %v216
    %v1765 = vunpack.c.h.b16 %v216
    %v1766 = vunpack.c.l.b16 %v217
    %v1767 = vunpack.c.h.b16 %v217
    %v1768 = vunpack.c.l.b16 %v218
    %v1769 = vunpack.c.h.b16 %v218
    %v1770 = vunpack.c.l.b16 %v219
    %v1771 = vunpack.c.h.b16 %v219
    %v1772 = vunpack.c.l.b16 %v220
    %v1773 = vunpack.c.h.b16 %v220
    %v1774 = vunpack.c.l.b16 %v221
    %v1775 = vunpack.c.h.b16 %v221
    %v1776 = vunpack.c.l.b16 %v222
    %v1777 = vunpack.c.h.b16 %v222
    %v1778 = vunpack.c.l.b16 %v223
    %v1779 = vunpack.c.h.b16 %v223
    %v1780 = vunpack.c.l.b16 %v224
    %v1781 = vunpack.c.h.b16 %v224
    %v1782 = vunpack.c.l.b16 %v225
    %v1783 = vunpack.c.h.b16 %v225
    %v1784 = vunpack.c.l.b16 %v226
    %v1785 = vunpack.c.h.b16 %v226
    %v1786 = vunpack.c.l.b16 %v227
    %v1787 = vunpack.c.h.b16 %v227
    %v1788 = vunpack.c.l.b16 %v228
    %v1789 = vunpack.c.h.b16 %v228
    %v1790 = vunpack.c.l.b16 %v229
    %v1791 = vunpack.c.h.b16 %v229
    %v1792 = vunpack.c.l.b16 %v230
    %v1793 = vunpack.c.h.b16 %v230
    %v1794 = vunpack.c.l.b16 %v231
    %v1795 = vunpack.c.h.b16 %v231
    %v1796 = vunpack.c.l.b16 %v232
    %v1797 = vunpack.c.h.b16 %v232
    %v1798 = vunpack.c.l.b16 %v233
    %v1799 = vunpack.c.h.b16 %v233
    %v1800 = vunpack.c.l.b16 %v234
    %v1801 = vunpack.c.h.b16 %v234
    %v1802 = vunpack.c.l.b16 %v235
    %v1803 = vunpack.c.h.b16 %v235
    %v1804 = vunpack.c.l.b16 %v236
    %v1805 = vunpack.c.h.b16 %v236
    %v1806 = vunpack.c.l.b16 %v237
    %v1807 = vunpack.c.h.b16 %v237
    %v1808 = vunpack.c.l.b16 %v238
    %v1809 = vunpack.c.h.b16 %v238
    %v1810 = vunpack.c.l.b16 %v239
    %v1811 = vunpack.c.h.b16 %v239
    %v1812 = vunpack.c.l.b16 %v240
    %v1813 = vunpack.c.h.b16 %v240
    %v1814 = vunpack.c.l.b16 %v241
    %v1815 = vunpack.c.h.b16 %v241
    %v1816 = vunpack.c.l.b16 %v242
    %v1817 = vunpack.c.h.b16 %v242
    %v1818 = vunpack.c.l.b16 %v243
    %v1819 = vunpack.c.h.b16 %v243
    %v1820 = vunpack.c.l.b16 %v244
    %v1821 = vunpack.c.h.b16 %v244
    %v1822 = vunpack.c.l.b16 %v245
    %v1823 = vunpack.c.h.b16 %v245
    %v1824 = vunpack.c.l.b16 %v246
    %v1825 = vunpack.c.h.b16 %v246
    %v1826 = vunpack.c.l.b16 %v247
    %v1827 = vunpack.c.h.b16 %v247
    %v1828 = vunpack.c.l.b16 %v248
    %v1829 = vunpack.c.h.b16 %v248
    %v1830 = vunpack.c.l.b16 %v249
    %v1831 = vunpack.c.h.b16 %v249
    %v1832 = vunpack.c.l.b16 %v250
    %v1833 = vunpack.c.h.b16 %v250
    %v1834 = vunpack.c.l.b16 %v251
    %v1835 = vunpack.c.h.b16 %v251
    %v1836 = vunpack.c.l.b16 %v252
    %v1837 = vunpack.c.h.b16 %v252
    %v1838 = vunpack.c.l.b16 %v253
    %v1839 = vunpack.c.h.b16 %v253
    %v1840 = vunpack.c.l.b16 %v254
    %v1841 = vunpack.c.h.b16 %v254
    %v1842 = vunpack.c.l.b16 %v255
    %v1843 = vunpack.c.h.b16 %v255
    %v1844 = vunpack.c.l.b16 %v256
    %v1845 = vunpack.c.h.b16 %v256
    %v1846 = vunpack.c.l.b16 %v257
    %v1847 = vunpack.c.h.b16 %v257
    %v1848 = vunpack.c.l.b16 %v258
    %v1849 = vunpack.c.h.b16 %v258
    %v1850 = vunpack.c.l.b16 %v259
    %v1851 = vunpack.c.h.b16 %v259
    %v1852 = vunpack.c.l.b16 %v260
    %v1853 = vunpack.c.h.b16 %v260
    %v1854 = vunpack.c.l.b16 %v261
    %v1855 = vunpack.c.h.b16 %v261
    %v1856 = vunpack.c.l.b16 %v262
    %v1857 = vunpack.c.h.b16 %v262
    %v1858 = vunpack.c.l.b16 %v263
    %v1859 = vunpack.c.h.b16 %v263
    %v1860 = vunpack.c.l.b16 %v264
    %v1861 = vunpack.c.h.b16 %v264
    %v1862 = vunpack.c.l.b16 %v265
    %v1863 = vunpack.c.h.b16 %v265
    %v1864 = vunpack.c.l.b16 %v266
    %v1865 = vunpack.c.h.b16 %v266
    %v1866 = vunpack.c.l.b16 %v267
    %v1867 = vunpack.c.h.b16 %v267
    %v1868 = vunpack.c.l.b16 %v268
    %v1869 = vunpack.c.h.b16 %v268
    %v1870 = vunpack.c.l.b16 %v269
    %v1871 = vunpack.c.h.b16 %v269
    %v1872 = vunpack.c.l.b16 %v270
    %v1873 = vunpack.c.h.b16 %v270
    %v1874 = vunpack.c.l.b16 %v271
    %v1875 = vunpack.c.h.b16 %v271
    %v1876 = vunpack.c.l.b16 %v272
    %v1877 = vunpack.c.h.b16 %v272
    %v1878 = vunpack.c.l.b16 %v273
    %v1879 = vunpack.c.h.b16 %v273
    %v1880 = vunpack.c.l.b16 %v274
    %v1881 = vunpack.c.h.b16 %v274
    %v1882 = vunpack.c.l.b16 %v275
    %v1883 = vunpack.c.h.b16 %v275
    %v1884 = vunpack.c.l.b16 %v276
    %v1885 = vunpack.c.h.b16 %v276
    %v1886 = vunpack.c.l.b16 %v277
    %v1887 = vunpack.c.h.b16 %v277
    %v1888 = vunpack.c.l.b16 %v278
    %v1889 = vunpack.c.h.b16 %v278
    %v1890 = vunpack.c.l.b16 %v279
    %v1891 = vunpack.c.h.b16 %v279
    %v1892 = vunpack.c.l.b16 %v280
    %v1893 = vunpack.c.h.b16 %v280
    %v1894 = vunpack.c.l.b16 %v281
    %v1895 = vunpack.c.h.b16 %v281
    %v1896 = vunpack.c.l.b16 %v282
    %v1897 = vunpack.c.h.b16 %v282
    %v1898 = vunpack.c.l.b16 %v283
    %v1899 = vunpack.c.h.b16 %v283
    %v1900 = vunpack.c.l.b16 %v284
    %v1901 = vunpack.c.h.b16 %v284
    %v1902 = vunpack.c.l.b16 %v285
    %v1903 = vunpack.c.h.b16 %v285
    %v1904 = vunpack.c.l.b16 %v286
    %v1905 = vunpack.c.h.b16 %v286
    %v1906 = vunpack.c.l.b16 %v287
    %v1907 = vunpack.c.h.b16 %v287
    %v1908 = vunpack.c.l.b16 %v288
    %v1909 = vunpack.c.h.b16 %v288
    %v1910 = vunpack.c.l.b16 %v289
    %v1911 = vunpack.c.h.b16 %v289
    %v1912 = vunpack.c.l.b16 %v290
    %v1913 = vunpack.c.h.b16 %v290
    %v1914 = vunpack.c.l.b16 %v291
    %v1915 = vunpack.c.h.b16 %v291
    %v1916 = vunpack.c.l.b16 %v292
    %v1917 = vunpack.c.h.b16 %v292
    %v1918 = vunpack.c.l.b16 %v293
    %v1919 = vunpack.c.h.b16 %v293
    %v1920 = vunpack.c.l.b16 %v294
    %v1921 = vunpack.c.h.b16 %v294
    %v1922 = vunpack.c.l.b16 %v295
    %v1923 = vunpack.c.h.b16 %v295
    %v1924 = vunpack.c.l.b16 %v296
    %v1925 = vunpack.c.h.b16 %v296
    %v1926 = vunpack.c.l.b16 %v297
    %v1927 = vunpack.c.h.b16 %v297
    %v1928 = vunpack.c.l.b16 %v298
    %v1929 = vunpack.c.h.b16 %v298
    %v1930 = vunpack.c.l.b16 %v299
    %v1931 = vunpack.c.h.b16 %v299
    %v1932 = vunpack.c.l.b16 %v300
    %v1933 = vunpack.c.h.b16 %v300
    %v1934 = vunpack.c.l.b16 %v301
    %v1935 = vunpack.c.h.b16 %v301
    %v1936 = vunpack.c.l.b16 %v302
    %v1937 = vunpack.c.h.b16 %v302
    %v1938 = vunpack.c.l.b16 %v303
    %v1939 = vunpack.c.h.b16 %v303
    %v1940 = vunpack.c.l.b16 %v304
    %v1941 = vunpack.c.h.b16 %v304
    %v1942 = vunpack.c.l.b16 %v305
    %v1943 = vunpack.c.h.b16 %v305
    %v1944 = vunpack.c.l.b16 %v306
    %v1945 = vunpack.c.h.b16 %v306
    %v1946 = vunpack.c.l.b16 %v307
    %v1947 = vunpack.c.h.b16 %v307
    %v1948 = vunpack.c.l.b16 %v308
    %v1949 = vunpack.c.h.b16 %v308
    %v1950 = vunpack.c.l.b16 %v309
    %v1951 = vunpack.c.h.b16 %v309
    %v1952 = vunpack.c.l.b16 %v310
    %v1953 = vunpack.c.h.b16 %v310
    %v1954 = vunpack.c.l.b16 %v311
    %v1955 = vunpack.c.h.b16 %v311
    %v1956 = vunpack.c.l.b16 %v312
    %v1957 = vunpack.c.h.b16 %v312
    %v1958 = vunpack.c.l.b16 %v313
    %v1959 = vunpack.c.h.b16 %v313
    %v1960 = vunpack.c.l.b16 %v314
    %v1961 = vunpack.c.h.b16 %v314
    %v1962 = vunpack.c.l.b16 %v315
    %v1963 = vunpack.c.h.b16 %v315
    %v1964 = vunpack.c.l.b16 %v316
    %v1965 = vunpack.c.h.b16 %v316
    %v1966 = vunpack.c.l.b16 %v317
    %v1967 = vunpack.c.h.b16 %v317
    %v1968 = vunpack.c.l.b16 %v318
    %v1969 = vunpack.c.h.b16 %v318
    %v1970 = vunpack.c.l.b16 %v319
    %v1971 = vunpack.c.h.b16 %v319
    %v1972 = vunpack.c.l.b16 %v320
    %v1973 = vunpack.c.h.b16 %v320
    %v1974 = vunpack.c.l.b16 %v321
    %v1975 = vunpack.c.h.b16 %v321
    %v1976 = vunpack.c.l.b16 %v322
    %v1977 = vunpack.c.h.b16 %v322
    %v1978 = vunpack.c.l.b16 %v323
    %v1979 = vunpack.c.h.b16 %v323
    %v1980 = vunpack.c.l.b16 %v324
    %v1981 = vunpack.c.h.b16 %v324
    %v1982 = vunpack.c.l.b16 %v325
    %v1983 = vunpack.c.h.b16 %v325
    %v1984 = vunpack.c.l.b16 %v326
    %v1985 = vunpack.c.h.b16 %v326
    %v1986 = vunpack.c.l.b16 %v327
    %v1987 = vunpack.c.h.b16 %v327
    %v1988 = vunpack.c.l.b16 %v328
    %v1989 = vunpack.c.h.b16 %v328
    %v1990 = vunpack.c.l.b16 %v329
    %v1991 = vunpack.c.h.b16 %v329
    %v1992 = vunpack.c.l.b16 %v330
    %v1993 = vunpack.c.h.b16 %v330
    %v1994 = vunpack.c.l.b16 %v331
    %v1995 = vunpack.c.h.b16 %v331
    %v1996 = vunpack.c.l.b16 %v332
    %v1997 = vunpack.c.h.b16 %v332
    %v1998 = vunpack.c.l.b16 %v333
    %v1999 = vunpack.c.h.b16 %v333
    %v2000 = vunpack.c.l.b16 %v334
    %v2001 = vunpack.c.h.b16 %v334
    %v2002 = vunpack.c.l.b16 %v335
    %v2003 = vunpack.c.h.b16 %v335
    %v2004 = vunpack.c.l.b16 %v336
    %v2005 = vunpack.c.h.b16 %v336
    %v2006 = vunpack.c.l.b16 %v337
    %v2007 = vunpack.c.h.b16 %v337
    %v2008 = vunpack.c.l.b16 %v338
    %v2009 = vunpack.c.h.b16 %v338
    %v2010 = vunpack.c.l.b16 %v339
    %v2011 = vunpack.c.h.b16 %v339
    %v2012 = vunpack.c.l.b16 %v340
    %v2013 = vunpack.c.h.b16 %v340
    %v2014 = vunpack.c.l.b16 %v341
    %v2015 = vunpack.c.h.b16 %v341
    %v2016 = vunpack.c.l.b16 %v342
    %v2017 = vunpack.c.h.b16 %v342
    %v2018 = vunpack.c.l.b16 %v343
    %v2019 = vunpack.c.h.b16 %v343
    %v2020 = vunpack.c.l.b16 %v344
    %v2021 = vunpack.c.h.b16 %v344
    %v2022 = vunpack.c.l.b16 %v345
    %v2023 = vunpack.c.h.b16 %v345
    %v2024 = vunpack.c.l.b16 %v346
    %v2025 = vunpack.c.h.b16 %v346
    %v2026 = vunpack.c.l.b16 %v347
    %v2027 = vunpack.c.h.b16 %v347
    %v2028 = vunpack.c.l.b16 %v348
    %v2029 = vunpack.c.h.b16 %v348
    %v2030 = vunpack.c.l.b16 %v349
    %v2031 = vunpack.c.h.b16 %v349
    %v2032 = vunpack.c.l.b16 %v350
    %v2033 = vunpack.c.h.b16 %v350
    %v2034 = vunpack.c.l.b16 %v351
    %v2035 = vunpack.c.h.b16 %v351
    %v2036 = vunpack.c.l.b16 %v352
    %v2037 = vunpack.c.h.b16 %v352
    %v2038 = vunpack.c.l.b16 %v353
    %v2039 = vunpack.c.h.b16 %v353
    %v2040 = vunpack.c.l.b16 %v354
    %v2041 = vunpack.c.h.b16 %v354
    %v2042 = vunpack.c.l.b16 %v355
    %v2043 = vunpack.c.h.b16 %v355
    %v2044 = vunpack.c.l.b16 %v356
    %v2045 = vunpack.c.h.b16 %v356
    %v2046 = vunpack.c.l.b16 %v357
    %v2047 = vunpack.c.h.b16 %v357
    %v2048 = vunpack.c.l.b16 %v358
    %v2049 = vunpack.c.h.b16 %v358
    %v2050 = vunpack.c.l.b16 %v359
    %v2051 = vunpack.c.h.b16 %v359
    %v2052 = vunpack.c.l.b16 %v360
    %v2053 = vunpack.c.h.b16 %v360
    %v2054 = vunpack.c.l.b16 %v361
    %v2055 = vunpack.c.h.b16 %v361
    %v2056 = vunpack.c.l.b16 %v362
    %v2057 = vunpack.c.h.b16 %v362
    %v2058 = vunpack.c.l.b16 %v363
    %v2059 = vunpack.c.h.b16 %v363
    %v2060 = vunpack.c.l.b16 %v364
    %v2061 = vunpack.c.h.b16 %v364
    %v2062 = vunpack.c.l.b16 %v365
    %v2063 = vunpack.c.h.b16 %v365
    %v2064 = vunpack.c.l.b16 %v366
    %v2065 = vunpack.c.h.b16 %v366
    %v2066 = vunpack.c.l.b16 %v367
    %v2067 = vunpack.c.h.b16 %v367
    %v2068 = vunpack.c.l.b16 %v368
    %v2069 = vunpack.c.h.b16 %v368
    %v2070 = vunpack.c.l.b16 %v369
    %v2071 = vunpack.c.h.b16 %v369
    %v2072 = vunpack.c.l.b16 %v370
    %v2073 = vunpack.c.h.b16 %v370
    %v2074 = vunpack.c.l.b16 %v371
    %v2075 = vunpack.c.h.b16 %v371
    %v2076 = vunpack.c.l.b16 %v372
    %v2077 = vunpack.c.h.b16 %v372
    %v2078 = vunpack.c.l.b16 %v373
    %v2079 = vunpack.c.h.b16 %v373
    %v2080 = vunpack.c.l.b16 %v374
    %v2081 = vunpack.c.h.b16 %v374
    %v2082 = vunpack.c.l.b16 %v375
    %v2083 = vunpack.c.h.b16 %v375
    %v2084 = vunpack.c.l.b16 %v376
    %v2085 = vunpack.c.h.b16 %v376
    %v2086 = vunpack.c.l.b16 %v377
    %v2087 = vunpack.c.h.b16 %v377
    %v2088 = vunpack.c.l.b16 %v378
    %v2089 = vunpack.c.h.b16 %v378
    %v2090 = vunpack.c.l.b16 %v379
    %v2091 = vunpack.c.h.b16 %v379
    %v2092 = vunpack.c.l.b16 %v380
    %v2093 = vunpack.c.h.b16 %v380
    %v2094 = vunpack.c.l.b16 %v381
    %v2095 = vunpack.c.h.b16 %v381
    %v2096 = vunpack.c.l.b16 %v382
    %v2097 = vunpack.c.h.b16 %v382
    %v2098 = vunpack.c.l.b16 %v383
    %v2099 = vunpack.c.h.b16 %v383
    %v2100 = vunpack.c.l.b16 %v384
    %v2101 = vunpack.c.h.b16 %v384
    %v2102 = vunpack.c.l.b16 %v385
    %v2103 = vunpack.c.h.b16 %v385
    %v2104 = vunpack.c.l.b16 %v386
    %v2105 = vunpack.c.h.b16 %v386
    %v2106 = vunpack.c.l.b16 %v387
    %v2107 = vunpack.c.h.b16 %v387
    %v2108 = vunpack.c.l.b16 %v388
    %v2109 = vunpack.c.h.b16 %v388
    %v2110 = vunpack.c.l.b16 %v389
    %v2111 = vunpack.c.h.b16 %v389
    %v2112 = vunpack.c.l.b16 %v390
    %v2113 = vunpack.c.h.b16 %v390
    %v2114 = vunpack.c.l.b16 %v391
    %v2115 = vunpack.c.h.b16 %v391
    %v2116 = vunpack.c.l.b16 %v392
    %v2117 = vunpack.c.h.b16 %v392
    %v2118 = vunpack.c.l.b16 %v393
    %v2119 = vunpack.c.h.b16 %v393
    %v2120 = vunpack.c.l.b16 %v394
    %v2121 = vunpack.c.h.b16 %v394
    %v2122 = vunpack.c.l.b16 %v395
    %v2123 = vunpack.c.h.b16 %v395
    %v2124 = vunpack.c.l.b16 %v396
    %v2125 = vunpack.c.h.b16 %v396
    %v2126 = vunpack.c.l.b16 %v397
    %v2127 = vunpack.c.h.b16 %v397
    %v2128 = vunpack.c.l.b16 %v398
    %v2129 = vunpack.c.h.b16 %v398
    %v2130 = vunpack.c.l.b16 %v399
    %v2131 = vunpack.c.h.b16 %v399
    %v2132 = vunpack.c.l.b16 %v400
    %v2133 = vunpack.c.h.b16 %v400
    %v2134 = vunpack.c.l.b16 %v401
    %v2135 = vunpack.c.h.b16 %v401
    %v2136 = vunpack.c.l.b16 %v402
    %v2137 = vunpack.c.h.b16 %v402
    %v2138 = vunpack.c.l.b16 %v403
    %v2139 = vunpack.c.h.b16 %v403
    %v2140 = vunpack.c.l.b16 %v404
    %v2141 = vunpack.c.h.b16 %v404
    %v2142 = vunpack.c.l.b16 %v405
    %v2143 = vunpack.c.h.b16 %v405
    %v2144 = vunpack.c.l.b16 %v406
    %v2145 = vunpack.c.h.b16 %v406
    %v2146 = vunpack.c.l.b16 %v407
    %v2147 = vunpack.c.h.b16 %v407
    %v2148 = vunpack.c.l.b16 %v408
    %v2149 = vunpack.c.h.b16 %v408
    %v2150 = vunpack.c.l.b16 %v409
    %v2151 = vunpack.c.h.b16 %v409
    %v2152 = vunpack.c.l.b16 %v410
    %v2153 = vunpack.c.h.b16 %v410
    %v2154 = vunpack.c.l.b16 %v411
    %v2155 = vunpack.c.h.b16 %v411
    %v2156 = vunpack.c.l.b16 %v412
    %v2157 = vunpack.c.h.b16 %v412
    %v2158 = vunpack.c.l.b16 %v413
    %v2159 = vunpack.c.h.b16 %v413
    %v2160 = vunpack.c.l.b16 %v414
    %v2161 = vunpack.c.h.b16 %v414
    %v2162 = vunpack.c.l.b16 %v415
    %v2163 = vunpack.c.h.b16 %v415
    %v2164 = vunpack.c.l.b16 %v416
    %v2165 = vunpack.c.h.b16 %v416
    %v2166 = vunpack.c.l.b16 %v417
    %v2167 = vunpack.c.h.b16 %v417
    %v2168 = vunpack.c.l.b16 %v418
    %v2169 = vunpack.c.h.b16 %v418
    %v2170 = vunpack.c.l.b16 %v419
    %v2171 = vunpack.c.h.b16 %v419
    %v2172 = vunpack.c.l.b16 %v420
    %v2173 = vunpack.c.h.b16 %v420
    %v2174 = vunpack.c.l.b16 %v421
    %v2175 = vunpack.c.h.b16 %v421
    %v2176 = vunpack.c.l.b16 %v422
    %v2177 = vunpack.c.h.b16 %v422
    %v2178 = vunpack.c.l.b16 %v423
    %v2179 = vunpack.c.h.b16 %v423
    %v2180 = vunpack.c.l.b16 %v424
    %v2181 = vunpack.c.h.b16 %v424
    %v2182 = vunpack.c.l.b16 %v425
    %v2183 = vunpack.c.h.b16 %v425
    %v2184 = vunpack.c.l.b16 %v426
    %v2185 = vunpack.c.h.b16 %v426
    %v2186 = vunpack.c.l.b16 %v427
    %v2187 = vunpack.c.h.b16 %v427
    %v2188 = vunpack.c.l.b16 %v428
    %v2189 = vunpack.c.h.b16 %v428
    %v2190 = vunpack.c.l.b16 %v429
    %v2191 = vunpack.c.h.b16 %v429
    %v2192 = vunpack.c.l.b16 %v430
    %v2193 = vunpack.c.h.b16 %v430
    %v2194 = vunpack.c.l.b16 %v431
    %v2195 = vunpack.c.h.b16 %v431
    %v2196 = vunpack.c.l.b16 %v432
    %v2197 = vunpack.c.h.b16 %v432
    %v2198 = vunpack.c.l.b16 %v433
    %v2199 = vunpack.c.h.b16 %v433
    %v2200 = vunpack.c.l.b16 %v434
    %v2201 = vunpack.c.h.b16 %v434
    %v2202 = vunpack.c.l.b16 %v435
    %v2203 = vunpack.c.h.b16 %v435
    %v2204 = vunpack.c.l.b16 %v436
    %v2205 = vunpack.c.h.b16 %v436
    %v2206 = vunpack.c.l.b16 %v437
    %v2207 = vunpack.c.h.b16 %v437
    %v2208 = vunpack.c.l.b16 %v438
    %v2209 = vunpack.c.h.b16 %v438
    %v2210 = vunpack.c.l.b16 %v439
    %v2211 = vunpack.c.h.b16 %v439
    %v2212 = vunpack.c.l.b16 %v440
    %v2213 = vunpack.c.h.b16 %v440
    %v2214 = vunpack.c.l.b16 %v441
    %v2215 = vunpack.c.h.b16 %v441
    %v2216 = vunpack.c.l.b16 %v442
    %v2217 = vunpack.c.h.b16 %v442
    %v2218 = vunpack.c.l.b16 %v443
    %v2219 = vunpack.c.h.b16 %v443
    %v2220 = vunpack.c.l.b16 %v444
    %v2221 = vunpack.c.h.b16 %v444
    %v2222 = vunpack.c.l.b16 %v445
    %v2223 = vunpack.c.h.b16 %v445
    %v2224 = vunpack.c.l.b16 %v446
    %v2225 = vunpack.c.h.b16 %v446
    %v2226 = vunpack.c.l.b16 %v447
    %v2227 = vunpack.c.h.b16 %v447
    %v2228 = vunpack.c.l.b16 %v448
    %v2229 = vunpack.c.h.b16 %v448
    %v2230 = vunpack.c.l.b16 %v449
    %v2231 = vunpack.c.h.b16 %v449
    %v2232 = vunpack.c.l.b16 %v450
    %v2233 = vunpack.c.h.b16 %v450
    %v2234 = vunpack.c.l.b16 %v451
    %v2235 = vunpack.c.h.b16 %v451
    %v2236 = vunpack.c.l.b16 %v452
    %v2237 = vunpack.c.h.b16 %v452
    %v2238 = vunpack.c.l.b16 %v453
    %v2239 = vunpack.c.h.b16 %v453
    %v2240 = vunpack.c.l.b16 %v454
    %v2241 = vunpack.c.h.b16 %v454
    %v2242 = vunpack.c.l.b16 %v455
    %v2243 = vunpack.c.h.b16 %v455
    %v2244 = vunpack.c.l.b16 %v456
    %v2245 = vunpack.c.h.b16 %v456
    %v2246 = vunpack.c.l.b16 %v457
    %v2247 = vunpack.c.h.b16 %v457
    %v2248 = vunpack.c.l.b16 %v458
    %v2249 = vunpack.c.h.b16 %v458
    %v2250 = vunpack.c.l.b16 %v459
    %v2251 = vunpack.c.h.b16 %v459
    %v2252 = vunpack.c.l.b16 %v460
    %v2253 = vunpack.c.h.b16 %v460
    %v2254 = vunpack.c.l.b16 %v461
    %v2255 = vunpack.c.h.b16 %v461
    %v2256 = vunpack.c.l.b16 %v462
    %v2257 = vunpack.c.h.b16 %v462
    %v2258 = vunpack.c.l.b16 %v463
    %v2259 = vunpack.c.h.b16 %v463
    %v2260 = vunpack.c.l.b16 %v464
    %v2261 = vunpack.c.h.b16 %v464
    %v2262 = vunpack.c.l.b16 %v465
    %v2263 = vunpack.c.h.b16 %v465
    %v2264 = vunpack.c.l.b16 %v466
    %v2265 = vunpack.c.h.b16 %v466
    %v2266 = vunpack.c.l.b16 %v467
    %v2267 = vunpack.c.h.b16 %v467
    %v2268 = vunpack.c.l.b16 %v468
    %v2269 = vunpack.c.h.b16 %v468
    %v2270 = vunpack.c.l.b16 %v469
    %v2271 = vunpack.c.h.b16 %v469
    %v2272 = vunpack.c.l.b16 %v470
    %v2273 = vunpack.c.h.b16 %v470
    %v2274 = vunpack.c.l.b16 %v471
    %v2275 = vunpack.c.h.b16 %v471
    %v2276 = vunpack.c.l.b16 %v472
    %v2277 = vunpack.c.h.b16 %v472
    %v2278 = vunpack.c.l.b16 %v473
    %v2279 = vunpack.c.h.b16 %v473
    %v2280 = vunpack.c.l.b16 %v474
    %v2281 = vunpack.c.h.b16 %v474
    %v2282 = vunpack.c.l.b16 %v475
    %v2283 = vunpack.c.h.b16 %v475
    %v2284 = vunpack.c.l.b16 %v476
    %v2285 = vunpack.c.h.b16 %v476
    %v2286 = vunpack.c.l.b16 %v477
    %v2287 = vunpack.c.h.b16 %v477
    %v2288 = vunpack.c.l.b16 %v478
    %v2289 = vunpack.c.h.b16 %v478
    %v2290 = vunpack.c.l.b16 %v479
    %v2291 = vunpack.c.h.b16 %v479
    %v2292 = vunpack.c.l.b16 %v480
    %v2293 = vunpack.c.h.b16 %v480
    %v2294 = vunpack.c.l.b16 %v481
    %v2295 = vunpack.c.h.b16 %v481
    %v2296 = vunpack.c.l.b16 %v482
    %v2297 = vunpack.c.h.b16 %v482
    %v2298 = vunpack.c.l.b16 %v483
    %v2299 = vunpack.c.h.b16 %v483
    %v2300 = vunpack.c.l.b16 %v484
    %v2301 = vunpack.c.h.b16 %v484
    %v2302 = vunpack.c.l.b16 %v485
    %v2303 = vunpack.c.h.b16 %v485
    %v2304 = vunpack.c.l.b16 %v486
    %v2305 = vunpack.c.h.b16 %v486
    %v2306 = vunpack.c.l.b16 %v487
    %v2307 = vunpack.c.h.b16 %v487
    %v2308 = vunpack.c.l.b16 %v488
    %v2309 = vunpack.c.h.b16 %v488
    %v2310 = vunpack.c.l.b16 %v489
    %v2311 = vunpack.c.h.b16 %v489
    %v2312 = vunpack.c.l.b16 %v490
    %v2313 = vunpack.c.h.b16 %v490
    %v2314 = vunpack.c.l.b16 %v491
    %v2315 = vunpack.c.h.b16 %v491
    %v2316 = vunpack.c.l.b16 %v492
    %v2317 = vunpack.c.h.b16 %v492
    %v2318 = vunpack.c.l.b16 %v493
    %v2319 = vunpack.c.h.b16 %v493
    %v2320 = vunpack.c.l.b16 %v494
    %v2321 = vunpack.c.h.b16 %v494
    %v2322 = vunpack.c.l.b16 %v495
    %v2323 = vunpack.c.h.b16 %v495
    %v2324 = vunpack.c.l.b16 %v496
    %v2325 = vunpack.c.h.b16 %v496
    %v2326 = vunpack.c.l.b16 %v497
    %v2327 = vunpack.c.h.b16 %v497
    %v2328 = vunpack.c.l.b16 %v498
    %v2329 = vunpack.c.h.b16 %v498
    %v2330 = vunpack.c.l.b16 %v499
    %v2331 = vunpack.c.h.b16 %v499
    %v2332 = vunpack.c.l.b16 %v500
    %v2333 = vunpack.c.h.b16 %v500
    %v2334 = vunpack.c.l.b16 %v501
    %v2335 = vunpack.c.h.b16 %v501
    %v2336 = vunpack.c.l.b16 %v502
    %v2337 = vunpack.c.h.b16 %v502
    %v2338 = vunpack.c.l.b16 %v503
    %v2339 = vunpack.c.h.b16 %v503
    %v2340 = vunpack.c.l.b16 %v504
    %v2341 = vunpack.c.h.b16 %v504
    %v2342 = vunpack.c.l.b16 %v505
    %v2343 = vunpack.c.h.b16 %v505
    %v2344 = vunpack.c.l.b16 %v506
    %v2345 = vunpack.c.h.b16 %v506
    %v2346 = vunpack.c.l.b16 %v507
    %v2347 = vunpack.c.h.b16 %v507
    %v2348 = vunpack.c.l.b16 %v508
    %v2349 = vunpack.c.h.b16 %v508
    %v2350 = vunpack.c.l.b16 %v509
    %v2351 = vunpack.c.h.b16 %v509
    %v2352 = vunpack.c.l.b16 %v510
    %v2353 = vunpack.c.h.b16 %v510
    %v2354 = vunpack.c.l.b16 %v511
    %v2355 = vunpack.c.h.b16 %v511
    %v2356 = vunpack.c.l.b16 %v512
    %v2357 = vunpack.c.h.b16 %v512
    %v2358 = vunpack.c.l.b16 %v513
    %v2359 = vunpack.c.h.b16 %v513
    %v2360 = vunpack.c.l.b16 %v514
    %v2361 = vunpack.c.h.b16 %v514
    %v2362 = vunpack.c.l.b16 %v515
    %v2363 = vunpack.c.h.b16 %v515
    %v2364 = vunpack.c.l.b16 %v516
    %v2365 = vunpack.c.h.b16 %v516
    %v2366 = vunpack.c.l.b16 %v517
    %v2367 = vunpack.c.h.b16 %v517
    %v2368 = vunpack.c.l.b16 %v518
    %v2369 = vunpack.c.h.b16 %v518
    %v2370 = vunpack.c.l.b16 %v519
    %v2371 = vunpack.c.h.b16 %v519
    %v2372 = vunpack.c.l.b16 %v520
    %v2373 = vunpack.c.h.b16 %v520
    %v2374 = vunpack.c.l.b16 %v521
    %v2375 = vunpack.c.h.b16 %v521
    %v2376 = vunpack.c.l.b16 %v522
    %v2377 = vunpack.c.h.b16 %v522
    %v2378 = vunpack.c.l.b16 %v523
    %v2379 = vunpack.c.h.b16 %v523
    %v2380 = vunpack.c.l.b16 %v524
    %v2381 = vunpack.c.h.b16 %v524
    %v2382 = vunpack.c.l.b16 %v525
    %v2383 = vunpack.c.h.b16 %v525
    %v2384 = vunpack.c.l.b16 %v526
    %v2385 = vunpack.c.h.b16 %v526
    %v2386 = vunpack.c.l.b16 %v527
    %v2387 = vunpack.c.h.b16 %v527
    %v2388 = vunpack.c.l.b16 %v528
    %v2389 = vunpack.c.h.b16 %v528
    %v2390 = vunpack.c.l.b16 %v529
    %v2391 = vunpack.c.h.b16 %v529
    %v2392 = vunpack.c.l.b16 %v530
    %v2393 = vunpack.c.h.b16 %v530
    %v2394 = vunpack.c.l.b16 %v531
    %v2395 = vunpack.c.h.b16 %v531
    %v2396 = vunpack.c.l.b16 %v532
    %v2397 = vunpack.c.h.b16 %v532
    %v2398 = vunpack.c.l.b16 %v533
    %v2399 = vunpack.c.h.b16 %v533
    %v2400 = vunpack.c.l.b16 %v534
    %v2401 = vunpack.c.h.b16 %v534
    %v2402 = vunpack.c.l.b16 %v535
    %v2403 = vunpack.c.h.b16 %v535
    %v2404 = vunpack.c.l.b16 %v536
    %v2405 = vunpack.c.h.b16 %v536
    %v2406 = vunpack.c.l.b16 %v537
    %v2407 = vunpack.c.h.b16 %v537
    %v2408 = vunpack.c.l.b16 %v538
    %v2409 = vunpack.c.h.b16 %v538
    %v2410 = vunpack.c.l.b16 %v539
    %v2411 = vunpack.c.h.b16 %v539
    %v2412 = vunpack.c.l.b16 %v540
    %v2413 = vunpack.c.h.b16 %v540
    %v2414 = vunpack.c.l.b16 %v541
    %v2415 = vunpack.c.h.b16 %v541
    %v2416 = vunpack.c.l.b16 %v542
    %v2417 = vunpack.c.h.b16 %v542
    %v2418 = vunpack.c.l.b16 %v543
    %v2419 = vunpack.c.h.b16 %v543
    %v2420 = vunpack.c.l.b16 %v544
    %v2421 = vunpack.c.h.b16 %v544
    %v2422 = vunpack.c.l.b16 %v545
    %v2423 = vunpack.c.h.b16 %v545
    %v2424 = vunpack.c.l.b16 %v546
    %v2425 = vunpack.c.h.b16 %v546
    %v2426 = vunpack.c.l.b16 %v547
    %v2427 = vunpack.c.h.b16 %v547
    %v2428 = vunpack.c.l.b16 %v548
    %v2429 = vunpack.c.h.b16 %v548
    %v2430 = vunpack.c.l.b16 %v549
    %v2431 = vunpack.c.h.b16 %v549
    %v2432 = vunpack.c.l.b16 %v550
    %v2433 = vunpack.c.h.b16 %v550
    %v2434 = vunpack.c.l.b16 %v551
    %v2435 = vunpack.c.h.b16 %v551
    %v2436 = vunpack.c.l.b16 %v552
    %v2437 = vunpack.c.h.b16 %v552
    %v2438 = vunpack.c.l.b16 %v553
    %v2439 = vunpack.c.h.b16 %v553
    %v2440 = vunpack.c.l.b16 %v554
    %v2441 = vunpack.c.h.b16 %v554
    %v2442 = vunpack.c.l.b16 %v555
    %v2443 = vunpack.c.h.b16 %v555
    %v2444 = vunpack.c.l.b16 %v556
    %v2445 = vunpack.c.h.b16 %v556
    %v2446 = vunpack.c.l.b16 %v557
    %v2447 = vunpack.c.h.b16 %v557
    %v2448 = vunpack.c.l.b16 %v558
    %v2449 = vunpack.c.h.b16 %v558
    %v2450 = vunpack.c.l.b16 %v559
    %v2451 = vunpack.c.h.b16 %v559
    %v2452 = vunpack.c.l.b16 %v560
    %v2453 = vunpack.c.h.b16 %v560
    %v2454 = vunpack.c.l.b16 %v561
    %v2455 = vunpack.c.h.b16 %v561
    %v2456 = vunpack.c.l.b16 %v562
    %v2457 = vunpack.c.h.b16 %v562
    %v2458 = vunpack.c.l.b16 %v563
    %v2459 = vunpack.c.h.b16 %v563
    %v2460 = vunpack.c.l.b16 %v564
    %v2461 = vunpack.c.h.b16 %v564
    %v2462 = vunpack.c.l.b16 %v565
    %v2463 = vunpack.c.h.b16 %v565
    %v2464 = vunpack.c.l.b16 %v566
    %v2465 = vunpack.c.h.b16 %v566
    %v2466 = vunpack.c.l.b16 %v567
    %v2467 = vunpack.c.h.b16 %v567
    %v2468 = vunpack.c.l.b16 %v568
    %v2469 = vunpack.c.h.b16 %v568
    %v2470 = vunpack.c.l.b16 %v569
    %v2471 = vunpack.c.h.b16 %v569
    %v2472 = vunpack.c.l.b16 %v570
    %v2473 = vunpack.c.h.b16 %v570
    %v2474 = vunpack.c.l.b16 %v571
    %v2475 = vunpack.c.h.b16 %v571
    %v2476 = vunpack.c.l.b16 %v572
    %v2477 = vunpack.c.h.b16 %v572
    %v2478 = vunpack.c.l.b16 %v573
    %v2479 = vunpack.c.h.b16 %v573
    %v2480 = vunpack.c.l.b16 %v574
    %v2481 = vunpack.c.h.b16 %v574
    %v2482 = vunpack.c.l.b16 %v575
    %v2483 = vunpack.c.h.b16 %v575
    %v2484 = vunpack.c.l.b16 %v576
    %v2485 = vunpack.c.h.b16 %v576
    %v2486 = vunpack.c.l.b16 %v577
    %v2487 = vunpack.c.h.b16 %v577
    %v2488 = vunpack.c.l.b16 %v578
    %v2489 = vunpack.c.h.b16 %v578
    %v2490 = vunpack.c.l.b16 %v579
    %v2491 = vunpack.c.h.b16 %v579
    %v2492 = vunpack.c.l.b16 %v580
    %v2493 = vunpack.c.h.b16 %v580
    %v2494 = vunpack.c.l.b16 %v581
    %v2495 = vunpack.c.h.b16 %v581
    %v2496 = vunpack.c.l.b16 %v582
    %v2497 = vunpack.c.h.b16 %v582
    %v2498 = vunpack.c.l.b16 %v583
    %v2499 = vunpack.c.h.b16 %v583
    %v2500 = vunpack.c.l.b16 %v584
    %v2501 = vunpack.c.h.b16 %v584
    %v2502 = vunpack.c.l.b16 %v585
    %v2503 = vunpack.c.h.b16 %v585
    %v2504 = vunpack.c.l.b16 %v586
    %v2505 = vunpack.c.h.b16 %v586
    %v2506 = vunpack.c.l.b16 %v587
    %v2507 = vunpack.c.h.b16 %v587
    %v2508 = vunpack.c.l.b16 %v588
    %v2509 = vunpack.c.h.b16 %v588
    %v2510 = vunpack.c.l.b16 %v589
    %v2511 = vunpack.c.h.b16 %v589
    %v2512 = vunpack.c.l.b16 %v590
    %v2513 = vunpack.c.h.b16 %v590
    %v2514 = vunpack.c.l.b16 %v591
    %v2515 = vunpack.c.h.b16 %v591
    %v2516 = vunpack.c.l.b16 %v592
    %v2517 = vunpack.c.h.b16 %v592
    %v2518 = vunpack.c.l.b16 %v593
    %v2519 = vunpack.c.h.b16 %v593
    %v2520 = vunpack.c.l.b16 %v594
    %v2521 = vunpack.c.h.b16 %v594
    %v2522 = vunpack.c.l.b16 %v595
    %v2523 = vunpack.c.h.b16 %v595
    %v2524 = vunpack.c.l.b16 %v596
    %v2525 = vunpack.c.h.b16 %v596
    %v2526 = vunpack.c.l.b16 %v597
    %v2527 = vunpack.c.h.b16 %v597
    %v2528 = vunpack.c.l.b16 %v598
    %v2529 = vunpack.c.h.b16 %v598
    %v2530 = vunpack.c.l.b16 %v599
    %v2531 = vunpack.c.h.b16 %v599
    %v2532 = vunpack.c.l.b16 %v600
    %v2533 = vunpack.c.h.b16 %v600
    %v2534 = vunpack.c.l.b16 %v601
    %v2535 = vunpack.c.h.b16 %v601
    %v2536 = vunpack.c.l.b16 %v602
    %v2537 = vunpack.c.h.b16 %v602
    %v2538 = vunpack.c.l.b16 %v603
    %v2539 = vunpack.c.h.b16 %v603
    %v2540 = vunpack.c.l.b16 %v604
    %v2541 = vunpack.c.h.b16 %v604
    %v2542 = vunpack.c.l.b16 %v605
    %v2543 = vunpack.c.h.b16 %v605
    %v2544 = vunpack.c.l.b16 %v606
    %v2545 = vunpack.c.h.b16 %v606
    %v2546 = vunpack.c.l.b16 %v607
    %v2547 = vunpack.c.h.b16 %v607
    %v2548 = vunpack.c.l.b16 %v608
    %v2549 = vunpack.c.h.b16 %v608
    %v2550 = vunpack.c.l.b16 %v609
    %v2551 = vunpack.c.h.b16 %v609
    %v2552 = vunpack.c.l.b16 %v610
    %v2553 = vunpack.c.h.b16 %v610
    %v2554 = vunpack.c.l.b16 %v611
    %v2555 = vunpack.c.h.b16 %v611
    %v2556 = vunpack.c.l.b16 %v612
    %v2557 = vunpack.c.h.b16 %v612
    %v2558 = vunpack.c.l.b16 %v613
    %v2559 = vunpack.c.h.b16 %v613
    %v2560 = vunpack.c.l.b16 %v614
    %v2561 = vunpack.c.h.b16 %v614
    %v2562 = vunpack.c.l.b16 %v615
    %v2563 = vunpack.c.h.b16 %v615
    %v2564 = vunpack.c.l.b16 %v616
    %v2565 = vunpack.c.h.b16 %v616
    %v2566 = vunpack.c.l.b16 %v617
    %v2567 = vunpack.c.h.b16 %v617
    %v2568 = vunpack.c.l.b16 %v618
    %v2569 = vunpack.c.h.b16 %v618
    %v2570 = vunpack.c.l.b16 %v619
    %v2571 = vunpack.c.h.b16 %v619
    %v2572 = vunpack.c.l.b16 %v620
    %v2573 = vunpack.c.h.b16 %v620
    %v2574 = vunpack.c.l.b16 %v621
    %v2575 = vunpack.c.h.b16 %v621
    %v2576 = vunpack.c.l.b16 %v622
    %v2577 = vunpack.c.h.b16 %v622
    %v2578 = vunpack.c.l.b16 %v623
    %v2579 = vunpack.c.h.b16 %v623
    %v2580 = vunpack.c.l.b16 %v624
    %v2581 = vunpack.c.h.b16 %v624
    %v2582 = vunpack.c.l.b16 %v625
    %v2583 = vunpack.c.h.b16 %v625
    %v2584 = vunpack.c.l.b16 %v626
    %v2585 = vunpack.c.h.b16 %v626
    %v2586 = vunpack.c.l.b16 %v627
    %v2587 = vunpack.c.h.b16 %v627
    %v2588 = vunpack.c.l.b16 %v628
    %v2589 = vunpack.c.h.b16 %v628
    %v2590 = vunpack.c.l.b16 %v629
    %v2591 = vunpack.c.h.b16 %v629
    %v2592 = vunpack.c.l.b16 %v630
    %v2593 = vunpack.c.h.b16 %v630
    %v2594 = vunpack.c.l.b16 %v631
    %v2595 = vunpack.c.h.b16 %v631
    %v2596 = vunpack.c.l.b16 %v632
    %v2597 = vunpack.c.h.b16 %v632
    %v2598 = vunpack.c.l.b16 %v633
    %v2599 = vunpack.c.h.b16 %v633
    %v2600 = vunpack.c.l.b16 %v634
    %v2601 = vunpack.c.h.b16 %v634
    %v2602 = vunpack.c.l.b16 %v635
    %v2603 = vunpack.c.h.b16 %v635
    %v2604 = vunpack.c.l.b16 %v636
    %v2605 = vunpack.c.h.b16 %v636
    %v2606 = vunpack.c.l.b16 %v637
    %v2607 = vunpack.c.h.b16 %v637
    %v2608 = vunpack.c.l.b16 %v638
    %v2609 = vunpack.c.h.b16 %v638
    %v2610 = vunpack.c.l.b16 %v639
    %v2611 = vunpack.c.h.b16 %v639
    %v2612 = vunpack.c.l.b16 %v640
    %v2613 = vunpack.c.h.b16 %v640
    %v2614 = vunpack.c.l.b16 %v641
    %v2615 = vunpack.c.h.b16 %v641
    %v2616 = vunpack.c.l.b16 %v642
    %v2617 = vunpack.c.h.b16 %v642
    %v2618 = vunpack.c.l.b16 %v643
    %v2619 = vunpack.c.h.b16 %v643
    %v2620 = vunpack.c.l.b16 %v644
    %v2621 = vunpack.c.h.b16 %v644
    %v2622 = vunpack.c.l.b16 %v645
    %v2623 = vunpack.c.h.b16 %v645
    %v2624 = vunpack.c.l.b16 %v646
    %v2625 = vunpack.c.h.b16 %v646
    %v2626 = vunpack.c.l.b16 %v647
    %v2627 = vunpack.c.h.b16 %v647
    %v2628 = vunpack.c.l.b16 %v648
    %v2629 = vunpack.c.h.b16 %v648
    %v2630 = vunpack.c.l.b16 %v649
    %v2631 = vunpack.c.h.b16 %v649
    %v2632 = vunpack.c.l.b16 %v650
    %v2633 = vunpack.c.h.b16 %v650
    %v2634 = vunpack.c.l.b16 %v651
    %v2635 = vunpack.c.h.b16 %v651
    %v2636 = vunpack.c.l.b16 %v652
    %v2637 = vunpack.c.h.b16 %v652
    %v2638 = vunpack.c.l.b16 %v653
    %v2639 = vunpack.c.h.b16 %v653
    %v2640 = vunpack.c.l.b16 %v654
    %v2641 = vunpack.c.h.b16 %v654
    %v2642 = vunpack.c.l.b16 %v655
    %v2643 = vunpack.c.h.b16 %v655
    %v2644 = vunpack.c.l.b16 %v656
    %v2645 = vunpack.c.h.b16 %v656
    %v2646 = vunpack.c.l.b16 %v657
    %v2647 = vunpack.c.h.b16 %v657
    %v2648 = vunpack.c.l.b16 %v658
    %v2649 = vunpack.c.h.b16 %v658
    %v2650 = vunpack.c.l.b16 %v659
    %v2651 = vunpack.c.h.b16 %v659
    %v2652 = vunpack.c.l.b16 %v660
    %v2653 = vunpack.c.h.b16 %v660
    %v2654 = vunpack.c.l.b16 %v661
    %v2655 = vunpack.c.h.b16 %v661
    %v2656 = vunpack.c.l.b16 %v662
    %v2657 = vunpack.c.h.b16 %v662
    %v2658 = vunpack.c.l.b16 %v663
    %v2659 = vunpack.c.h.b16 %v663
    %v2660 = vunpack.c.l.b16 %v664
    %v2661 = vunpack.c.h.b16 %v664
    %v2662 = vunpack.c.l.b16 %v665
    %v2663 = vunpack.c.h.b16 %v665
    %v2664 = vunpack.c.l.b16 %v666
    %v2665 = vunpack.c.h.b16 %v666
    %v2666 = vunpack.c.l.b16 %v667
    %v2667 = vunpack.c.h.b16 %v667
    %v2668 = vunpack.c.l.b16 %v668
    %v2669 = vunpack.c.h.b16 %v668
    %v2670 = vunpack.c.l.b16 %v669
    %v2671 = vunpack.c.h.b16 %v669
    %v2672 = vunpack.c.l.b16 %v670
    %v2673 = vunpack.c.h.b16 %v670
    %v2674 = vunpack.c.l.b16 %v671
    %v2675 = vunpack.c.h.b16 %v671
    %v2676 = vunpack.c.l.b16 %v672
    %v2677 = vunpack.c.h.b16 %v672
    %v2678 = vunpack.c.l.b16 %v673
    %v2679 = vunpack.c.h.b16 %v673
    %v2680 = vunpack.c.l.b16 %v674
    %v2681 = vunpack.c.h.b16 %v674
    %v2682 = vunpack.c.l.b16 %v675
    %v2683 = vunpack.c.h.b16 %v675
    %v2684 = vunpack.c.l.b16 %v676
    %v2685 = vunpack.c.h.b16 %v676
    %v2686 = vunpack.c.l.b16 %v677
    %v2687 = vunpack.c.h.b16 %v677
    %v2688 = vunpack.c.l.b16 %v678
    %v2689 = vunpack.c.h.b16 %v678
    %v2690 = vunpack.c.l.b16 %v679
    %v2691 = vunpack.c.h.b16 %v679
    %v2692 = vunpack.c.l.b16 %v680
    %v2693 = vunpack.c.h.b16 %v680
    %v2694 = vunpack.c.l.b16 %v681
    %v2695 = vunpack.c.h.b16 %v681
    %v2696 = vunpack.c.l.b16 %v682
    %v2697 = vunpack.c.h.b16 %v682
    %v2698 = vunpack.c.l.b16 %v683
    %v2699 = vunpack.c.h.b16 %v683
    %v2700 = vunpack.c.l.b16 %v684
    %v2701 = vunpack.c.h.b16 %v684
    %v2702 = vunpack.c.l.b16 %v685
    %v2703 = vunpack.c.h.b16 %v685
    %v2704 = vunpack.c.l.b16 %v686
    %v2705 = vunpack.c.h.b16 %v686
    %v2706 = vunpack.c.l.b16 %v687
    %v2707 = vunpack.c.h.b16 %v687
    %v2708 = vunpack.c.l.b16 %v688
    %v2709 = vunpack.c.h.b16 %v688
    %v2710 = vunpack.c.l.b16 %v689
    %v2711 = vunpack.c.h.b16 %v689
    %v2712 = vunpack.c.l.b16 %v690
    %v2713 = vunpack.c.h.b16 %v690
    %v2714 = vunpack.c.l.b16 %v691
    %v2715 = vunpack.c.h.b16 %v691
    %v2716 = vunpack.c.l.b16 %v692
    %v2717 = vunpack.c.h.b16 %v692
    %v2718 = vunpack.c.l.b16 %v693
    %v2719 = vunpack.c.h.b16 %v693
    %v2720 = vunpack.c.l.b16 %v694
    %v2721 = vunpack.c.h.b16 %v694
    %v2722 = vunpack.c.l.b16 %v695
    %v2723 = vunpack.c.h.b16 %v695
    %v2724 = vunpack.c.l.b16 %v696
    %v2725 = vunpack.c.h.b16 %v696
    %v2726 = vunpack.c.l.b16 %v697
    %v2727 = vunpack.c.h.b16 %v697
    %v2728 = vunpack.c.l.b16 %v698
    %v2729 = vunpack.c.h.b16 %v698
    %v2730 = vunpack.c.l.b16 %v699
    %v2731 = vunpack.c.h.b16 %v699
    %v2732 = vpack.c.b16 %v1462, %v1452
    %v2733 = vpack.c.b16 %v1463, %v1453
    %v2734 = vpack.c.b16 %v1464, %v1454
    %v2735 = vpack.c.b16 %v1465, %v1455
    %v2736 = vpack.c.b16 %v1466, %v1456
    %v2737 = vpack.c.b16 %v1467, %v1457
    %v2738 = vpack.c.b16 %v1468, %v1458
    %v2739 = vpack.c.b16 %v1469, %v1459
    %v2740 = vpack.c.b16 %v1470, %v1460
    %v2741 = vpack.c.b16 %v1471, %v1461
    %v2742 = vpack.c.b16 %v1482, %v1472
    %v2743 = vpack.c.b16 %v1483, %v1473
    %v2744 = vpack.c.b16 %v1484, %v1474
    %v2745 = vpack.c.b16 %v1485, %v1475
    %v2746 = vpack.c.b16 %v1486, %v1476
    %v2747 = vpack.c.b16 %v1487, %v1477
    %v2748 = vpack.c.b16 %v1488, %v1478
    %v2749 = vpack.c.b16 %v1489, %v1479
    %v2750 = vpack.c.b16 %v1490, %v1480
    %v2751 = vpack.c.b16 %v1491, %v1481
    %v2752 = vpack.c.b16 %v1502, %v1492
    %v2753 = vpack.c.b16 %v1503, %v1493
    %v2754 = vpack.c.b16 %v1504, %v1494
    %v2755 = vpack.c.b16 %v1505, %v1495
    %v2756 = vpack.c.b16 %v1506, %v1496
    %v2757 = vpack.c.b16 %v1507, %v1497
    %v2758 = vpack.c.b16 %v1508, %v1498
    %v2759 = vpack.c.b16 %v1509, %v1499
    %v2760 = vpack.c.b16 %v1510, %v1500
    %v2761 = vpack.c.b16 %v1511, %v1501
    %v2762 = vpack.c.b16 %v1522, %v1512
    %v2763 = vpack.c.b16 %v1523, %v1513
    %v2764 = vpack.c.b16 %v1524, %v1514
    %v2765 = vpack.c.b16 %v1525, %v1515
    %v2766 = vpack.c.b16 %v1526, %v1516
    %v2767 = vpack.c.b16 %v1527, %v1517
    %v2768 = vpack.c.b16 %v1528, %v1518
    %v2769 = vpack.c.b16 %v1529, %v1519
    %v2770 = vpack.c.b16 %v1530, %v1520
    %v2771 = vpack.c.b16 %v1531, %v1521
    %v2772 = vpack.c.b16 %v1542, %v1532
    %v2773 = vpack.c.b16 %v1543, %v1533
    %v2774 = vpack.c.b16 %v1544, %v1534
    %v2775 = vpack.c.b16 %v1545, %v1535
    %v2776 = vpack.c.b16 %v1546, %v1536
    %v2777 = vpack.c.b16 %v1547, %v1537
    %v2778 = vpack.c.b16 %v1548, %v1538
    %v2779 = vpack.c.b16 %v1549, %v1539
    %v2780 = vpack.c.b16 %v1550, %v1540
    %v2781 = vpack.c.b16 %v1551, %v1541
    %v2782 = vpack.c.b16 %v1562, %v1552
    %v2783 = vpack.c.b16 %v1563, %v1553
    %v2784 = vpack.c.b16 %v1564, %v1554
    %v2785 = vpack.c.b16 %v1565, %v1555
    %v2786 = vpack.c.b16 %v1566, %v1556
    %v2787 = vpack.c.b16 %v1567, %v1557
    %v2788 = vpack.c.b16 %v1568, %v1558
    %v2789 = vpack.c.b16 %v1569, %v1559
    %v2790 = vpack.c.b16 %v1570, %v1560
    %v2791 = vpack.c.b16 %v1571, %v1561
    %v2792 = vpack.c.b16 %v1582, %v1572
    %v2793 = vpack.c.b16 %v1583, %v1573
    %v2794 = vpack.c.b16 %v1584, %v1574
    %v2795 = vpack.c.b16 %v1585, %v1575
    %v2796 = vpack.c.b16 %v1586, %v1576
    %v2797 = vpack.c.b16 %v1587, %v1577
    %v2798 = vpack.c.b16 %v1588, %v1578
    %v2799 = vpack.c.b16 %v1589, %v1579
    %v2800 = vpack.c.b16 %v1590, %v1580
    %v2801 = vpack.c.b16 %v1591, %v1581
    %v2802 = vpack.c.b16 %v1602, %v1592
    %v2803 = vpack.c.b16 %v1603, %v1593
    %v2804 = vpack.c.b16 %v1604, %v1594
    %v2805 = vpack.c.b16 %v1605, %v1595
    %v2806 = vpack.c.b16 %v1606, %v1596
    %v2807 = vpack.c.b16 %v1607, %v1597
    %v2808 = vpack.c.b16 %v1608, %v1598
    %v2809 = vpack.c.b16 %v1609, %v1599
    %v2810 = vpack.c.b16 %v1610, %v1600
    %v2811 = vpack.c.b16 %v1611, %v1601
    %v2812 = vpack.c.b16 %v1622, %v1612
    %v2813 = vpack.c.b16 %v1623, %v1613
    %v2814 = vpack.c.b16 %v1624, %v1614
    %v2815 = vpack.c.b16 %v1625, %v1615
    %v2816 = vpack.c.b16 %v1626, %v1616
    %v2817 = vpack.c.b16 %v1627, %v1617
    %v2818 = vpack.c.b16 %v1628, %v1618
    %v2819 = vpack.c.b16 %v1629, %v1619
    %v2820 = vpack.c.b16 %v1630, %v1620
    %v2821 = vpack.c.b16 %v1631, %v1621
    %v2822 = vpack.c.b16 %v1642, %v1632
    %v2823 = vpack.c.b16 %v1643, %v1633
    %v2824 = vpack.c.b16 %v1644, %v1634
    %v2825 = vpack.c.b16 %v1645, %v1635
    %v2826 = vpack.c.b16 %v1646, %v1636
    %v2827 = vpack.c.b16 %v1647, %v1637
    %v2828 = vpack.c.b16 %v1648, %v1638
    %v2829 = vpack.c.b16 %v1649, %v1639
    %v2830 = vpack.c.b16 %v1650, %v1640
    %v2831 = vpack.c.b16 %v1651, %v1641
    %v2832 = vpack.c.b16 %v1662, %v1652
    %v2833 = vpack.c.b16 %v1663, %v1653
    %v2834 = vpack.c.b16 %v1664, %v1654
    %v2835 = vpack.c.b16 %v1665, %v1655
    %v2836 = vpack.c.b16 %v1666, %v1656
    %v2837 = vpack.c.b16 %v1667, %v1657
    %v2838 = vpack.c.b16 %v1668, %v1658
    %v2839 = vpack.c.b16 %v1669, %v1659
    %v2840 = vpack.c.b16 %v1670, %v1660
    %v2841 = vpack.c.b16 %v1671, %v1661
    %v2842 = vpack.c.b16 %v1682, %v1672
    %v2843 = vpack.c.b16 %v1683, %v1673
    %v2844 = vpack.c.b16 %v1684, %v1674
    %v2845 = vpack.c.b16 %v1685, %v1675
    %v2846 = vpack.c.b16 %v1686, %v1676
    %v2847 = vpack.c.b16 %v1687, %v1677
    %v2848 = vpack.c.b16 %v1688, %v1678
    %v2849 = vpack.c.b16 %v1689, %v1679
    %v2850 = vpack.c.b16 %v1690, %v1680
    %v2851 = vpack.c.b16 %v1691, %v1681
    %v2852 = vpack.c.b16 %v1702, %v1692
    %v2853 = vpack.c.b16 %v1703, %v1693
    %v2854 = vpack.c.b16 %v1704, %v1694
    %v2855 = vpack.c.b16 %v1705, %v1695
    %v2856 = vpack.c.b16 %v1706, %v1696
    %v2857 = vpack.c.b16 %v1707, %v1697
    %v2858 = vpack.c.b16 %v1708, %v1698
    %v2859 = vpack.c.b16 %v1709, %v1699
    %v2860 = vpack.c.b16 %v1710, %v1700
    %v2861 = vpack.c.b16 %v1711, %v1701
    %v2862 = vpack.c.b16 %v1722, %v1712
    %v2863 = vpack.c.b16 %v1723, %v1713
    %v2864 = vpack.c.b16 %v1724, %v1714
    %v2865 = vpack.c.b16 %v1725, %v1715
    %v2866 = vpack.c.b16 %v1726, %v1716
    %v2867 = vpack.c.b16 %v1727, %v1717
    %v2868 = vpack.c.b16 %v1728, %v1718
    %v2869 = vpack.c.b16 %v1729, %v1719
    %v2870 = vpack.c.b16 %v1730, %v1720
    %v2871 = vpack.c.b16 %v1731, %v1721
    %v2872 = vpack.c.b16 %v1742, %v1732
    %v2873 = vpack.c.b16 %v1743, %v1733
    %v2874 = vpack.c.b16 %v1744, %v1734
    %v2875 = vpack.c.b16 %v1745, %v1735
    %v2876 = vpack.c.b16 %v1746, %v1736
    %v2877 = vpack.c.b16 %v1747, %v1737
    %v2878 = vpack.c.b16 %v1748, %v1738
    %v2879 = vpack.c.b16 %v1749, %v1739
    %v2880 = vpack.c.b16 %v1750, %v1740
    %v2881 = vpack.c.b16 %v1751, %v1741
    %v2882 = vpack.c.b16 %v1762, %v1752
    %v2883 = vpack.c.b16 %v1763, %v1753
    %v2884 = vpack.c.b16 %v1764, %v1754
    %v2885 = vpack.c.b16 %v1765, %v1755
    %v2886 = vpack.c.b16 %v1766, %v1756
    %v2887 = vpack.c.b16 %v1767, %v1757
    %v2888 = vpack.c.b16 %v1768, %v1758
    %v2889 = vpack.c.b16 %v1769, %v1759
    %v2890 = vpack.c.b16 %v1770, %v1760
    %v2891 = vpack.c.b16 %v1771, %v1761
    %v2892 = vpack.c.b16 %v1782, %v1772
    %v2893 = vpack.c.b16 %v1783, %v1773
    %v2894 = vpack.c.b16 %v1784, %v1774
    %v2895 = vpack.c.b16 %v1785, %v1775
    %v2896 = vpack.c.b16 %v1786, %v1776
    %v2897 = vpack.c.b16 %v1787, %v1777
    %v2898 = vpack.c.b16 %v1788, %v1778
    %v2899 = vpack.c.b16 %v1789, %v1779
    %v2900 = vpack.c.b16 %v1790, %v1780
    %v2901 = vpack.c.b16 %v1791, %v1781
    %v2902 = vpack.c.b16 %v1802, %v1792
    %v2903 = vpack.c.b16 %v1803, %v1793
    %v2904 = vpack.c.b16 %v1804, %v1794
    %v2905 = vpack.c.b16 %v1805, %v1795
    %v2906 = vpack.c.b16 %v1806, %v1796
    %v2907 = vpack.c.b16 %v1807, %v1797
    %v2908 = vpack.c.b16 %v1808, %v1798
    %v2909 = vpack.c.b16 %v1809, %v1799
    %v2910 = vpack.c.b16 %v1810, %v1800
    %v2911 = vpack.c.b16 %v1811, %v1801
    %v2912 = vpack.c.b16 %v1822, %v1812
    %v2913 = vpack.c.b16 %v1823, %v1813
    %v2914 = vpack.c.b16 %v1824, %v1814
    %v2915 = vpack.c.b16 %v1825, %v1815
    %v2916 = vpack.c.b16 %v1826, %v1816
    %v2917 = vpack.c.b16 %v1827, %v1817
    %v2918 = vpack.c.b16 %v1828, %v1818
    %v2919 = vpack.c.b16 %v1829, %v1819
    %v2920 = vpack.c.b16 %v1830, %v1820
    %v2921 = vpack.c.b16 %v1831, %v1821
    %v2922 = vpack.c.b16 %v1842, %v1832
    %v2923 = vpack.c.b16 %v1843, %v1833
    %v2924 = vpack.c.b16 %v1844, %v1834
    %v2925 = vpack.c.b16 %v1845, %v1835
    %v2926 = vpack.c.b16 %v1846, %v1836
    %v2927 = vpack.c.b16 %v1847, %v1837
    %v2928 = vpack.c.b16 %v1848, %v1838
    %v2929 = vpack.c.b16 %v1849, %v1839
    %v2930 = vpack.c.b16 %v1850, %v1840
    %v2931 = vpack.c.b16 %v1851, %v1841
    %v2932 = vpack.c.b16 %v1862, %v1852
    %v2933 = vpack.c.b16 %v1863, %v1853
    %v2934 = vpack.c.b16 %v1864, %v1854
    %v2935 = vpack.c.b16 %v1865, %v1855
    %v2936 = vpack.c.b16 %v1866, %v1856
    %v2937 = vpack.c.b16 %v1867, %v1857
    %v2938 = vpack.c.b16 %v1868, %v1858
    %v2939 = vpack.c.b16 %v1869, %v1859
    %v2940 = vpack.c.b16 %v1870, %v1860
    %v2941 = vpack.c.b16 %v1871, %v1861
    %v2942 = vpack.c.b16 %v1882, %v1872
    %v2943 = vpack.c.b16 %v1883, %v1873
    %v2944 = vpack.c.b16 %v1884, %v1874
    %v2945 = vpack.c.b16 %v1885, %v1875
    %v2946 = vpack.c.b16 %v1886, %v1876
    %v2947 = vpack.c.b16 %v1887, %v1877
    %v2948 = vpack.c.b16 %v1888, %v1878
    %v2949 = vpack.c.b16 %v1889, %v1879
    %v2950 = vpack.c.b16 %v1890, %v1880
    %v2951 = vpack.c.b16 %v1891, %v1881
    %v2952 = vpack.c.b16 %v1902, %v1892
    %v2953 = vpack.c.b16 %v1903, %v1893
    %v2954 = vpack.c.b16 %v1904, %v1894
    %v2955 = vpack.c.b16 %v1905, %v1895
    %v2956 = vpack.c.b16 %v1906, %v1896
    %v2957 = vpack.c.b16 %v1907, %v1897
    %v2958 = vpack.c.b16 %v1908, %v1898
    %v2959 = vpack.c.b16 %v1909, %v1899
    %v2960 = vpack.c.b16 %v1910, %v1900
    %v2961 = vpack.c.b16 %v1911, %v1901
    %v2962 = vpack.c.b16 %v1922, %v1912
    %v2963 = vpack.c.b16 %v1923, %v1913
    %v2964 = vpack.c.b16 %v1924, %v1914
    %v2965 = vpack.c.b16 %v1925, %v1915
    %v2966 = vpack.c.b16 %v1926, %v1916
    %v2967 = vpack.c.b16 %v1927, %v1917
    %v2968 = vpack.c.b16 %v1928, %v1918
    %v2969 = vpack.c.b16 %v1929, %v1919
    %v2970 = vpack.c.b16 %v1930, %v1920
    %v2971 = vpack.c.b16 %v1931, %v1921
    %v2972 = vpack.c.b16 %v1942, %v1932
    %v2973 = vpack.c.b16 %v1943, %v1933
    %v2974 = vpack.c.b16 %v1944, %v1934
    %v2975 = vpack.c.b16 %v1945, %v1935
    %v2976 = vpack.c.b16 %v1946, %v1936
    %v2977 = vpack.c.b16 %v1947, %v1937
    %v2978 = vpack.c.b16 %v1948, %v1938
    %v2979 = vpack.c.b16 %v1949, %v1939
    %v2980 = vpack.c.b16 %v1950, %v1940
    %v2981 = vpack.c.b16 %v1951, %v1941
    %v2982 = vpack.c.b16 %v1962, %v1952
    %v2983 = vpack.c.b16 %v1963, %v1953
    %v2984 = vpack.c.b16 %v1964, %v1954
    %v2985 = vpack.c.b16 %v1965, %v1955
    %v2986 = vpack.c.b16 %v1966, %v1956
    %v2987 = vpack.c.b16 %v1967, %v1957
    %v2988 = vpack.c.b16 %v1968, %v1958
    %v2989 = vpack.c.b16 %v1969, %v1959
    %v2990 = vpack.c.b16 %v1970, %v1960
    %v2991 = vpack.c.b16 %v1971, %v1961
    %v2992 = vpack.c.b16 %v1982, %v1972
    %v2993 = vpack.c.b16 %v1983, %v1973
    %v2994 = vpack.c.b16 %v1984, %v1974
    %v2995 = vpack.c.b16 %v1985, %v1975
    %v2996 = vpack.c.b16 %v1986, %v1976
    %v2997 = vpack.c.b16 %v1987, %v1977
    %v2998 = vpack.c.b16 %v1988, %v1978
    %v2999 = vpack.c.b16 %v1989, %v1979
    %v3000 = vpack.c.b16 %v1990, %v1980
    %v3001 = vpack.c.b16 %v1991, %v1981
    %v3002 = vpack.c.b16 %v2002, %v1992
    %v3003 = vpack.c.b16 %v2003, %v1993
    %v3004 = vpack.c.b16 %v2004, %v1994
    %v3005 = vpack.c.b16 %v2005, %v1995
    %v3006 = vpack.c.b16 %v2006, %v1996
    %v3007 = vpack.c.b16 %v2007, %v1997
    %v3008 = vpack.c.b16 %v2008, %v1998
    %v3009 = vpack.c.b16 %v2009, %v1999
    %v3010 = vpack.c.b16 %v2010, %v2000
    %v3011 = vpack.c.b16 %v2011, %v2001
    %v3012 = vpack.c.b16 %v2022, %v2012
    %v3013 = vpack.c.b16 %v2023, %v2013
    %v3014 = vpack.c.b16 %v2024, %v2014
    %v3015 = vpack.c.b16 %v2025, %v2015
    %v3016 = vpack.c.b16 %v2026, %v2016
    %v3017 = vpack.c.b16 %v2027, %v2017
    %v3018 = vpack.c.b16 %v2028, %v2018
    %v3019 = vpack.c.b16 %v2029, %v2019
    %v3020 = vpack.c.b16 %v2030, %v2020
    %v3021 = vpack.c.b16 %v2031, %v2021
    %v3022 = vpack.c.b16 %v2042, %v2032
    %v3023 = vpack.c.b16 %v2043, %v2033
    %v3024 = vpack.c.b16 %v2044, %v2034
    %v3025 = vpack.c.b16 %v2045, %v2035
    %v3026 = vpack.c.b16 %v2046, %v2036
    %v3027 = vpack.c.b16 %v2047, %v2037
    %v3028 = vpack.c.b16 %v2048, %v2038
    %v3029 = vpack.c.b16 %v2049, %v2039
    %v3030 = vpack.c.b16 %v2050, %v2040
    %v3031 = vpack.c.b16 %v2051, %v2041
    %v3032 = vpack.c.b16 %v2062, %v2052
    %v3033 = vpack.c.b16 %v2063, %v2053
    %v3034 = vpack.c.b16 %v2064, %v2054
    %v3035 = vpack.c.b16 %v2065, %v2055
    %v3036 = vpack.c.b16 %v2066, %v2056
    %v3037 = vpack.c.b16 %v2067, %v2057
    %v3038 = vpack.c.b16 %v2068, %v2058
    %v3039 = vpack.c.b16 %v2069, %v2059
    %v3040 = vpack.c.b16 %v2070, %v2060
    %v3041 = vpack.c.b16 %v2071, %v2061
    %v3042 = vpack.c.b16 %v2082, %v2072
    %v3043 = vpack.c.b16 %v2083, %v2073
    %v3044 = vpack.c.b16 %v2084, %v2074
    %v3045 = vpack.c.b16 %v2085, %v2075
    %v3046 = vpack.c.b16 %v2086, %v2076
    %v3047 = vpack.c.b16 %v2087, %v2077
    %v3048 = vpack.c.b16 %v2088, %v2078
    %v3049 = vpack.c.b16 %v2089, %v2079
    %v3050 = vpack.c.b16 %v2090, %v2080
    %v3051 = vpack.c.b16 %v2091, %v2081
    %v3052 = vpack.c.b16 %v2102, %v2092
    %v3053 = vpack.c.b16 %v2103, %v2093
    %v3054 = vpack.c.b16 %v2104, %v2094
    %v3055 = vpack.c.b16 %v2105, %v2095
    %v3056 = vpack.c.b16 %v2106, %v2096
    %v3057 = vpack.c.b16 %v2107, %v2097
    %v3058 = vpack.c.b16 %v2108, %v2098
    %v3059 = vpack.c.b16 %v2109, %v2099
    %v3060 = vpack.c.b16 %v2110, %v2100
    %v3061 = vpack.c.b16 %v2111, %v2101
    %v3062 = vpack.c.b16 %v2122, %v2112
    %v3063 = vpack.c.b16 %v2123, %v2113
    %v3064 = vpack.c.b16 %v2124, %v2114
    %v3065 = vpack.c.b16 %v2125, %v2115
    %v3066 = vpack.c.b16 %v2126, %v2116
    %v3067 = vpack.c.b16 %v2127, %v2117
    %v3068 = vpack.c.b16 %v2128, %v2118
    %v3069 = vpack.c.b16 %v2129, %v2119
    %v3070 = vpack.c.b16 %v2130, %v2120
    %v3071 = vpack.c.b16 %v2131, %v2121
    %v3072 = vpack.c.b16 %v2142, %v2132
    %v3073 = vpack.c.b16 %v2143, %v2133
    %v3074 = vpack.c.b16 %v2144, %v2134
    %v3075 = vpack.c.b16 %v2145, %v2135
    %v3076 = vpack.c.b16 %v2146, %v2136
    %v3077 = vpack.c.b16 %v2147, %v2137
    %v3078 = vpack.c.b16 %v2148, %v2138
    %v3079 = vpack.c.b16 %v2149, %v2139
    %v3080 = vpack.c.b16 %v2150, %v2140
    %v3081 = vpack.c.b16 %v2151, %v2141
    %v3082 = vpack.c.b16 %v2162, %v2152
    %v3083 = vpack.c.b16 %v2163, %v2153
    %v3084 = vpack.c.b16 %v2164, %v2154
    %v3085 = vpack.c.b16 %v2165, %v2155
    %v3086 = vpack.c.b16 %v2166, %v2156
    %v3087 = vpack.c.b16 %v2167, %v2157
    %v3088 = vpack.c.b16 %v2168, %v2158
    %v3089 = vpack.c.b16 %v2169, %v2159
    %v3090 = vpack.c.b16 %v2170, %v2160
    %v3091 = vpack.c.b16 %v2171, %v2161
    %v3092 = vpack.c.b16 %v2182, %v2172
    %v3093 = vpack.c.b16 %v2183, %v2173
    %v3094 = vpack.c.b16 %v2184, %v2174
    %v3095 = vpack.c.b16 %v2185, %v2175
    %v3096 = vpack.c.b16 %v2186, %v2176
    %v3097 = vpack.c.b16 %v2187, %v2177
    %v3098 = vpack.c.b16 %v2188, %v2178
    %v3099 = vpack.c.b16 %v2189, %v2179
    %v3100 = vpack.c.b16 %v2190, %v2180
    %v3101 = vpack.c.b16 %v2191, %v2181
    %v3102 = vpack.c.b16 %v2202, %v2192
    %v3103 = vpack.c.b16 %v2203, %v2193
    %v3104 = vpack.c.b16 %v2204, %v2194
    %v3105 = vpack.c.b16 %v2205, %v2195
    %v3106 = vpack.c.b16 %v2206, %v2196
    %v3107 = vpack.c.b16 %v2207, %v2197
    %v3108 = vpack.c.b16 %v2208, %v2198
    %v3109 = vpack.c.b16 %v2209, %v2199
    %v3110 = vpack.c.b16 %v2210, %v2200
    %v3111 = vpack.c.b16 %v2211, %v2201
    %v3112 = vpack.c.b16 %v2222, %v2212
    %v3113 = vpack.c.b16 %v2223, %v2213
    %v3114 = vpack.c.b16 %v2224, %v2214
    %v3115 = vpack.c.b16 %v2225, %v2215
    %v3116 = vpack.c.b16 %v2226, %v2216
    %v3117 = vpack.c.b16 %v2227, %v2217
    %v3118 = vpack.c.b16 %v2228, %v2218
    %v3119 = vpack.c.b16 %v2229, %v2219
    %v3120 = vpack.c.b16 %v2230, %v2220
    %v3121 = vpack.c.b16 %v2231, %v2221
    %v3122 = vpack.c.b16 %v2242, %v2232
    %v3123 = vpack.c.b16 %v2243, %v2233
    %v3124 = vpack.c.b16 %v2244, %v2234
    %v3125 = vpack.c.b16 %v2245, %v2235
    %v3126 = vpack.c.b16 %v2246, %v2236
    %v3127 = vpack.c.b16 %v2247, %v2237
    %v3128 = vpack.c.b16 %v2248, %v2238
    %v3129 = vpack.c.b16 %v2249, %v2239
    %v3130 = vpack.c.b16 %v2250, %v2240
    %v3131 = vpack.c.b16 %v2251, %v2241
    %v3132 = vpack.c.b16 %v2262, %v2252
    %v3133 = vpack.c.b16 %v2263, %v2253
    %v3134 = vpack.c.b16 %v2264, %v2254
    %v3135 = vpack.c.b16 %v2265, %v2255
    %v3136 = vpack.c.b16 %v2266, %v2256
    %v3137 = vpack.c.b16 %v2267, %v2257
    %v3138 = vpack.c.b16 %v2268, %v2258
    %v3139 = vpack.c.b16 %v2269, %v2259
    %v3140 = vpack.c.b16 %v2270, %v2260
    %v3141 = vpack.c.b16 %v2271, %v2261
    %v3142 = vpack.c.b16 %v2282, %v2272
    %v3143 = vpack.c.b16 %v2283, %v2273
    %v3144 = vpack.c.b16 %v2284, %v2274
    %v3145 = vpack.c.b16 %v2285, %v2275
    %v3146 = vpack.c.b16 %v2286, %v2276
    %v3147 = vpack.c.b16 %v2287, %v2277
    %v3148 = vpack.c.b16 %v2288, %v2278
    %v3149 = vpack.c.b16 %v2289, %v2279
    %v3150 = vpack.c.b16 %v2290, %v2280
    %v3151 = vpack.c.b16 %v2291, %v2281
    %v3152 = vpack.c.b16 %v2302, %v2292
    %v3153 = vpack.c.b16 %v2303, %v2293
    %v3154 = vpack.c.b16 %v2304, %v2294
    %v3155 = vpack.c.b16 %v2305, %v2295
    %v3156 = vpack.c.b16 %v2306, %v2296
    %v3157 = vpack.c.b16 %v2307, %v2297
    %v3158 = vpack.c.b16 %v2308, %v2298
    %v3159 = vpack.c.b16 %v2309, %v2299
    %v3160 = vpack.c.b16 %v2310, %v2300
    %v3161 = vpack.c.b16 %v2311, %v2301
    %v3162 = vpack.c.b16 %v2322, %v2312
    %v3163 = vpack.c.b16 %v2323, %v2313
    %v3164 = vpack.c.b16 %v2324, %v2314
    %v3165 = vpack.c.b16 %v2325, %v2315
    %v3166 = vpack.c.b16 %v2326, %v2316
    %v3167 = vpack.c.b16 %v2327, %v2317
    %v3168 = vpack.c.b16 %v2328, %v2318
    %v3169 = vpack.c.b16 %v2329, %v2319
    %v3170 = vpack.c.b16 %v2330, %v2320
    %v3171 = vpack.c.b16 %v2331, %v2321
    %v3172 = vpack.c.b16 %v2342, %v2332
    %v3173 = vpack.c.b16 %v2343, %v2333
    %v3174 = vpack.c.b16 %v2344, %v2334
    %v3175 = vpack.c.b16 %v2345, %v2335
    %v3176 = vpack.c.b16 %v2346, %v2336
    %v3177 = vpack.c.b16 %v2347, %v2337
    %v3178 = vpack.c.b16 %v2348, %v2338
    %v3179 = vpack.c.b16 %v2349, %v2339
    %v3180 = vpack.c.b16 %v2350, %v2340
    %v3181 = vpack.c.b16 %v2351, %v2341
    %v3182 = vpack.c.b16 %v2362, %v2352
    %v3183 = vpack.c.b16 %v2363, %v2353
    %v3184 = vpack.c.b16 %v2364, %v2354
    %v3185 = vpack.c.b16 %v2365, %v2355
    %v3186 = vpack.c.b16 %v2366, %v2356
    %v3187 = vpack.c.b16 %v2367, %v2357
    %v3188 = vpack.c.b16 %v2368, %v2358
    %v3189 = vpack.c.b16 %v2369, %v2359
    %v3190 = vpack.c.b16 %v2370, %v2360
    %v3191 = vpack.c.b16 %v2371, %v2361
    %v3192 = vpack.c.b16 %v2382, %v2372
    %v3193 = vpack.c.b16 %v2383, %v2373
    %v3194 = vpack.c.b16 %v2384, %v2374
    %v3195 = vpack.c.b16 %v2385, %v2375
    %v3196 = vpack.c.b16 %v2386, %v2376
    %v3197 = vpack.c.b16 %v2387, %v2377
    %v3198 = vpack.c.b16 %v2388, %v2378
    %v3199 = vpack.c.b16 %v2389, %v2379
    %v3200 = vpack.c.b16 %v2390, %v2380
    %v3201 = vpack.c.b16 %v2391, %v2381
    %v3202 = vpack.c.b16 %v2402, %v2392
    %v3203 = vpack.c.b16 %v2403, %v2393
    %v3204 = vpack.c.b16 %v2404, %v2394
    %v3205 = vpack.c.b16 %v2405, %v2395
    %v3206 = vpack.c.b16 %v2406, %v2396
    %v3207 = vpack.c.b16 %v2407, %v2397
    %v3208 = vpack.c.b16 %v2408, %v2398
    %v3209 = vpack.c.b16 %v2409, %v2399
    %v3210 = vpack.c.b16 %v2410, %v2400
    %v3211 = vpack.c.b16 %v2411, %v2401
    %v3212 = vpack.c.b16 %v2422, %v2412
    %v3213 = vpack.c.b16 %v2423, %v2413
    %v3214 = vpack.c.b16 %v2424, %v2414
    %v3215 = vpack.c.b16 %v2425, %v2415
    %v3216 = vpack.c.b16 %v2426, %v2416
    %v3217 = vpack.c.b16 %v2427, %v2417
    %v3218 = vpack.c.b16 %v2428, %v2418
    %v3219 = vpack.c.b16 %v2429, %v2419
    %v3220 = vpack.c.b16 %v2430, %v2420
    %v3221 = vpack.c.b16 %v2431, %v2421
    %v3222 = vpack.c.b16 %v2442, %v2432
    %v3223 = vpack.c.b16 %v2443, %v2433
    %v3224 = vpack.c.b16 %v2444, %v2434
    %v3225 = vpack.c.b16 %v2445, %v2435
    %v3226 = vpack.c.b16 %v2446, %v2436
    %v3227 = vpack.c.b16 %v2447, %v2437
    %v3228 = vpack.c.b16 %v2448, %v2438
    %v3229 = vpack.c.b16 %v2449, %v2439
    %v3230 = vpack.c.b16 %v2450, %v2440
    %v3231 = vpack.c.b16 %v2451, %v2441
    %v3232 = vpack.c.b16 %v2462, %v2452
    %v3233 = vpack.c.b16 %v2463, %v2453
    %v3234 = vpack.c.b16 %v2464, %v2454
    %v3235 = vpack.c.b16 %v2465, %v2455
    %v3236 = vpack.c.b16 %v2466, %v2456
    %v3237 = vpack.c.b16 %v2467, %v2457
    %v3238 = vpack.c.b16 %v2468, %v2458
    %v3239 = vpack.c.b16 %v2469, %v2459
    %v3240 = vpack.c.b16 %v2470, %v2460
    %v3241 = vpack.c.b16 %v2471, %v2461
    %v3242 = vpack.c.b16 %v2482, %v2472
    %v3243 = vpack.c.b16 %v2483, %v2473
    %v3244 = vpack.c.b16 %v2484, %v2474
    %v3245 = vpack.c.b16 %v2485, %v2475
    %v3246 = vpack.c.b16 %v2486, %v2476
    %v3247 = vpack.c.b16 %v2487, %v2477
    %v3248 = vpack.c.b16 %v2488, %v2478
    %v3249 = vpack.c.b16 %v2489, %v2479
    %v3250 = vpack.c.b16 %v2490, %v2480
    %v3251 = vpack.c.b16 %v2491, %v2481
    %v3252 = vpack.c.b16 %v2502, %v2492
    %v3253 = vpack.c.b16 %v2503, %v2493
    %v3254 = vpack.c.b16 %v2504, %v2494
    %v3255 = vpack.c.b16 %v2505, %v2495
    %v3256 = vpack.c.b16 %v2506, %v2496
    %v3257 = vpack.c.b16 %v2507, %v2497
    %v3258 = vpack.c.b16 %v2508, %v2498
    %v3259 = vpack.c.b16 %v2509, %v2499
    %v3260 = vpack.c.b16 %v2510, %v2500
    %v3261 = vpack.c.b16 %v2511, %v2501
    %v3262 = vpack.c.b16 %v2522, %v2512
    %v3263 = vpack.c.b16 %v2523, %v2513
    %v3264 = vpack.c.b16 %v2524, %v2514
    %v3265 = vpack.c.b16 %v2525, %v2515
    %v3266 = vpack.c.b16 %v2526, %v2516
    %v3267 = vpack.c.b16 %v2527, %v2517
    %v3268 = vpack.c.b16 %v2528, %v2518
    %v3269 = vpack.c.b16 %v2529, %v2519
    %v3270 = vpack.c.b16 %v2530, %v2520
    %v3271 = vpack.c.b16 %v2531, %v2521
    %v3272 = vpack.c.b16 %v2542, %v2532
    %v3273 = vpack.c.b16 %v2543, %v2533
    %v3274 = vpack.c.b16 %v2544, %v2534
    %v3275 = vpack.c.b16 %v2545, %v2535
    %v3276 = vpack.c.b16 %v2546, %v2536
    %v3277 = vpack.c.b16 %v2547, %v2537
    %v3278 = vpack.c.b16 %v2548, %v2538
    %v3279 = vpack.c.b16 %v2549, %v2539
    %v3280 = vpack.c.b16 %v2550, %v2540
    %v3281 = vpack.c.b16 %v2551, %v2541
    %v3282 = vpack.c.b16 %v2562, %v2552
    %v3283 = vpack.c.b16 %v2563, %v2553
    %v3284 = vpack.c.b16 %v2564, %v2554
    %v3285 = vpack.c.b16 %v2565, %v2555
    %v3286 = vpack.c.b16 %v2566, %v2556
    %v3287 = vpack.c.b16 %v2567, %v2557
    %v3288 = vpack.c.b16 %v2568, %v2558
    %v3289 = vpack.c.b16 %v2569, %v2559
    %v3290 = vpack.c.b16 %v2570, %v2560
    %v3291 = vpack.c.b16 %v2571, %v2561
    %v3292 = vpack.c.b16 %v2582, %v2572
    %v3293 = vpack.c.b16 %v2583, %v2573
    %v3294 = vpack.c.b16 %v2584, %v2574
    %v3295 = vpack.c.b16 %v2585, %v2575
    %v3296 = vpack.c.b16 %v2586, %v2576
    %v3297 = vpack.c.b16 %v2587, %v2577
    %v3298 = vpack.c.b16 %v2588, %v2578
    %v3299 = vpack.c.b16 %v2589, %v2579
    %v3300 = vpack.c.b16 %v2590, %v2580
    %v3301 = vpack.c.b16 %v2591, %v2581
    %v3302 = vpack.c.b16 %v2602, %v2592
    %v3303 = vpack.c.b16 %v2603, %v2593
    %v3304 = vpack.c.b16 %v2604, %v2594
    %v3305 = vpack.c.b16 %v2605, %v2595
    %v3306 = vpack.c.b16 %v2606, %v2596
    %v3307 = vpack.c.b16 %v2607, %v2597
    %v3308 = vpack.c.b16 %v2608, %v2598
    %v3309 = vpack.c.b16 %v2609, %v2599
    %v3310 = vpack.c.b16 %v2610, %v2600
    %v3311 = vpack.c.b16 %v2611, %v2601
    %v3312 = vpack.c.b16 %v2622, %v2612
    %v3313 = vpack.c.b16 %v2623, %v2613
    %v3314 = vpack.c.b16 %v2624, %v2614
    %v3315 = vpack.c.b16 %v2625, %v2615
    %v3316 = vpack.c.b16 %v2626, %v2616
    %v3317 = vpack.c.b16 %v2627, %v2617
    %v3318 = vpack.c.b16 %v2628, %v2618
    %v3319 = vpack.c.b16 %v2629, %v2619
    %v3320 = vpack.c.b16 %v2630, %v2620
    %v3321 = vpack.c.b16 %v2631, %v2621
    %v3322 = vpack.c.b16 %v2642, %v2632
    %v3323 = vpack.c.b16 %v2643, %v2633
    %v3324 = vpack.c.b16 %v2644, %v2634
    %v3325 = vpack.c.b16 %v2645, %v2635
    %v3326 = vpack.c.b16 %v2646, %v2636
    %v3327 = vpack.c.b16 %v2647, %v2637
    %v3328 = vpack.c.b16 %v2648, %v2638
    %v3329 = vpack.c.b16 %v2649, %v2639
    %v3330 = vpack.c.b16 %v2650, %v2640
    %v3331 = vpack.c.b16 %v2651, %v2641
    %v3332 = vpack.c.b16 %v2662, %v2652
    %v3333 = vpack.c.b16 %v2663, %v2653
    %v3334 = vpack.c.b16 %v2664, %v2654
    %v3335 = vpack.c.b16 %v2665, %v2655
    %v3336 = vpack.c.b16 %v2666, %v2656
    %v3337 = vpack.c.b16 %v2667, %v2657
    %v3338 = vpack.c.b16 %v2668, %v2658
    %v3339 = vpack.c.b16 %v2669, %v2659
    %v3340 = vpack.c.b16 %v2670, %v2660
    %v3341 = vpack.c.b16 %v2671, %v2661
    %v3342 = vpack.c.b16 %v2682, %v2672
    %v3343 = vpack.c.b16 %v2683, %v2673
    %v3344 = vpack.c.b16 %v2684, %v2674
    %v3345 = vpack.c.b16 %v2685, %v2675
    %v3346 = vpack.c.b16 %v2686, %v2676
    %v3347 = vpack.c.b16 %v2687, %v2677
    %v3348 = vpack.c.b16 %v2688, %v2678
    %v3349 = vpack.c.b16 %v2689, %v2679
    %v3350 = vpack.c.b16 %v2690, %v2680
    %v3351 = vpack.c.b16 %v2691, %v2681
    %v3352 = vpack.c.b16 %v2702, %v2692
    %v3353 = vpack.c.b16 %v2703, %v2693
    %v3354 = vpack.c.b16 %v2704, %v2694
    %v3355 = vpack.c.b16 %v2705, %v2695
    %v3356 = vpack.c.b16 %v2706, %v2696
    %v3357 = vpack.c.b16 %v2707, %v2697
    %v3358 = vpack.c.b16 %v2708, %v2698
    %v3359 = vpack.c.b16 %v2709, %v2699
    %v3360 = vpack.c.b16 %v2710, %v2700
    %v3361 = vpack.c.b16 %v2711, %v2701
    %v3362 = vpack.c.b16 %v2722, %v2712
    %v3363 = vpack.c.b16 %v2723, %v2713
    %v3364 = vpack.c.b16 %v2724, %v2714
    %v3365 = vpack.c.b16 %v2725, %v2715
    %v3366 = vpack.c.b16 %v2726, %v2716
    %v3367 = vpack.c.b16 %v2727, %v2717
    %v3368 = vpack.c.b16 %v2728, %v2718
    %v3369 = vpack.c.b16 %v2729, %v2719
    %v3370 = vpack.c.b16 %v2730, %v2720
    %v3371 = vpack.c.b16 %v2731, %v2721
    %4012 = vmatprep.subr.bf16.mxu0 %v2803
    %4013 = vmatpush1.bf16.msra.mxu0 %v2802
    %4014 = vmatprep.subr.bf16.mxu0 %v2793
    %4015 = vmatpush1.bf16.msra.mxu0 %v2792
    %4016 = vmatprep.subr.bf16.mxu0 %v2783
    %4017 = vmatpush1.bf16.msra.mxu0 %v2782
    %4018 = vmatprep.subr.bf16.mxu0 %v2773
    %4019 = vmatpush1.bf16.msra.mxu0 %v2772
    %4020 = vmatprep.subr.bf16.mxu0 %v2763
    %4021 = vmatpush1.bf16.msra.mxu0 %v2762
    %4022 = vmatprep.subr.bf16.mxu0 %v2753
    %4023 = vmatpush1.bf16.msra.mxu0 %v2752
    %4024 = vmatprep.subr.bf16.mxu0 %v2743
    %4025 = vmatpush1.bf16.msra.mxu0 %v2742
    %4026 = vmatprep.subr.bf16.mxu0 %v2733
    %4027 = vmatpush1.bf16.msra.mxu0 %v2732
    %4028 = vmatprep.subr.bf16.mxu0 %v2883
    %4029 = vmatpush2.bf16.msra.mxu0 %v2882
    %4030 = vmatprep.subr.bf16.mxu0 %v2873
    %4031 = vmatpush2.bf16.msra.mxu0 %v2872
    %4032 = vmatprep.subr.bf16.mxu0 %v2863
    %4033 = vmatpush2.bf16.msra.mxu0 %v2862
    %4034 = vmatprep.subr.bf16.mxu0 %v2853
    %4035 = vmatpush2.bf16.msra.mxu0 %v2852
    %4036 = vmatprep.subr.bf16.mxu0 %v2843
    %4037 = vmatpush2.bf16.msra.mxu0 %v2842
    %4038 = vmatprep.subr.bf16.mxu0 %v2833
    %4039 = vmatpush2.bf16.msra.mxu0 %v2832
    %4040 = vmatprep.subr.bf16.mxu0 %v2823
    %4041 = vmatpush2.bf16.msra.mxu0 %v2822
    %4042 = vmatprep.subr.bf16.mxu0 %v2813
    %4043 = vmatpush2.bf16.msra.mxu0 %v2812
    %4044 = vmatprep.mubr.bf16.mxu0 %v792
    %4045 = vmatmul.mubr.bf16.gmra.mxu0 %v778
    %v4046 = vpop.f32.mrf.mxu0
    %v4047 = vadd.f32 %v707, %v4046
    %v4048 = vpop.f32.mrf.mxu0
    %v4049 = vadd.f32 %v711, %v4048
    %v4050 = vpop.f32.mrf.mxu0
    %v4051 = vpop.f32.mrf.mxu0
    %4052 = vdwg.mxu0
    %4053 = vmatprep.subr.bf16.mxu0 %v2963
    %4054 = vmatpush1.bf16.msra.mxu0 %v2962
    %4055 = vmatprep.subr.bf16.mxu0 %v2953
    %4056 = vmatpush1.bf16.msra.mxu0 %v2952
    %4057 = vmatprep.subr.bf16.mxu0 %v2943
    %4058 = vmatpush1.bf16.msra.mxu0 %v2942
    %4059 = vmatprep.subr.bf16.mxu0 %v2933
    %4060 = vmatpush1.bf16.msra.mxu0 %v2932
    %4061 = vmatprep.subr.bf16.mxu0 %v2923
    %4062 = vmatpush1.bf16.msra.mxu0 %v2922
    %4063 = vmatprep.subr.bf16.mxu0 %v2913
    %4064 = vmatpush1.bf16.msra.mxu0 %v2912
    %4065 = vmatprep.subr.bf16.mxu0 %v2903
    %4066 = vmatpush1.bf16.msra.mxu0 %v2902
    %4067 = vmatprep.subr.bf16.mxu0 %v2893
    %4068 = vmatpush1.bf16.msra.mxu0 %v2892
    %4069 = vmatprep.subr.bf16.mxu0 %v3043
    %4070 = vmatpush2.bf16.msra.mxu0 %v3042
    %4071 = vmatprep.subr.bf16.mxu0 %v3033
    %4072 = vmatpush2.bf16.msra.mxu0 %v3032
    %4073 = vmatprep.subr.bf16.mxu0 %v3023
    %4074 = vmatpush2.bf16.msra.mxu0 %v3022
    %4075 = vmatprep.subr.bf16.mxu0 %v3013
    %4076 = vmatpush2.bf16.msra.mxu0 %v3012
    %4077 = vmatprep.subr.bf16.mxu0 %v3003
    %4078 = vmatpush2.bf16.msra.mxu0 %v3002
    %4079 = vmatprep.subr.bf16.mxu0 %v2993
    %4080 = vmatpush2.bf16.msra.mxu0 %v2992
    %4081 = vmatprep.subr.bf16.mxu0 %v2983
    %4082 = vmatpush2.bf16.msra.mxu0 %v2982
    %4083 = vmatprep.subr.bf16.mxu0 %v2973
    %4084 = vmatpush2.bf16.msra.mxu0 %v2972
    %4085 = vmatprep.mubr.bf16.mxu0 %v802
    %4086 = vmatmul.mubr.bf16.gmra.mxu0 %v800
    %v4087 = vpop.f32.mrf.mxu0
    %v4088 = vadd.f32 %v4047, %v4087
    %v4089 = vpop.f32.mrf.mxu0
    %v4090 = vadd.f32 %v4049, %v4089
    %v4091 = vpop.f32.mrf.mxu0
    %v4092 = vpop.f32.mrf.mxu0
    %4093 = vdwg.mxu0
    %4094 = vmatprep.subr.bf16.mxu0 %v3123
    %4095 = vmatpush1.bf16.msra.mxu0 %v3122
    %4096 = vmatprep.subr.bf16.mxu0 %v3113
    %4097 = vmatpush1.bf16.msra.mxu0 %v3112
    %4098 = vmatprep.subr.bf16.mxu0 %v3103
    %4099 = vmatpush1.bf16.msra.mxu0 %v3102
    %4100 = vmatprep.subr.bf16.mxu0 %v3093
    %4101 = vmatpush1.bf16.msra.mxu0 %v3092
    %4102 = vmatprep.subr.bf16.mxu0 %v3083
    %4103 = vmatpush1.bf16.msra.mxu0 %v3082
    %4104 = vmatprep.subr.bf16.mxu0 %v3073
    %4105 = vmatpush1.bf16.msra.mxu0 %v3072
    %4106 = vmatprep.subr.bf16.mxu0 %v3063
    %4107 = vmatpush1.bf16.msra.mxu0 %v3062
    %4108 = vmatprep.subr.bf16.mxu0 %v3053
    %4109 = vmatpush1.bf16.msra.mxu0 %v3052
    %4110 = vmatprep.subr.bf16.mxu0 %v3203
    %4111 = vmatpush2.bf16.msra.mxu0 %v3202
    %4112 = vmatprep.subr.bf16.mxu0 %v3193
    %4113 = vmatpush2.bf16.msra.mxu0 %v3192
    %4114 = vmatprep.subr.bf16.mxu0 %v3183
    %4115 = vmatpush2.bf16.msra.mxu0 %v3182
    %4116 = vmatprep.subr.bf16.mxu0 %v3173
    %4117 = vmatpush2.bf16.msra.mxu0 %v3172
    %4118 = vmatprep.subr.bf16.mxu0 %v3163
    %4119 = vmatpush2.bf16.msra.mxu0 %v3162
    %4120 = vmatprep.subr.bf16.mxu0 %v3153
    %4121 = vmatpush2.bf16.msra.mxu0 %v3152
    %4122 = vmatprep.subr.bf16.mxu0 %v3143
    %4123 = vmatpush2.bf16.msra.mxu0 %v3142
    %4124 = vmatprep.subr.bf16.mxu0 %v3133
    %4125 = vmatpush2.bf16.msra.mxu0 %v3132
    %4126 = vmatprep.mubr.bf16.mxu0 %v799
    %4127 = vmatmul.mubr.bf16.gmra.mxu0 %v785
    %v4128 = vpop.f32.mrf.mxu0
    %v4129 = vadd.f32 %v4088, %v4128
    %v4130 = vpop.f32.mrf.mxu0
    %v4131 = vadd.f32 %v4090, %v4130
    %v4132 = vpop.f32.mrf.mxu0
    %v4133 = vpop.f32.mrf.mxu0
    %4134 = vdwg.mxu0
    %4135 = vmatprep.subr.bf16.mxu0 %v3283
    %4136 = vmatpush1.bf16.msra.mxu0 %v3282
    %4137 = vmatprep.subr.bf16.mxu0 %v3273
    %4138 = vmatpush1.bf16.msra.mxu0 %v3272
    %4139 = vmatprep.subr.bf16.mxu0 %v3263
    %4140 = vmatpush1.bf16.msra.mxu0 %v3262
    %4141 = vmatprep.subr.bf16.mxu0 %v3253
    %4142 = vmatpush1.bf16.msra.mxu0 %v3252
    %4143 = vmatprep.subr.bf16.mxu0 %v3243
    %4144 = vmatpush1.bf16.msra.mxu0 %v3242
    %4145 = vmatprep.subr.bf16.mxu0 %v3233
    %4146 = vmatpush1.bf16.msra.mxu0 %v3232
    %4147 = vmatprep.subr.bf16.mxu0 %v3223
    %4148 = vmatpush1.bf16.msra.mxu0 %v3222
    %4149 = vmatprep.subr.bf16.mxu0 %v3213
    %4150 = vmatpush1.bf16.msra.mxu0 %v3212
    %4151 = vmatprep.subr.bf16.mxu0 %v3363
    %4152 = vmatpush2.bf16.msra.mxu0 %v3362
    %4153 = vmatprep.subr.bf16.mxu0 %v3353
    %4154 = vmatpush2.bf16.msra.mxu0 %v3352
    %4155 = vmatprep.subr.bf16.mxu0 %v3343
    %4156 = vmatpush2.bf16.msra.mxu0 %v3342
    %4157 = vmatprep.subr.bf16.mxu0 %v3333
    %4158 = vmatpush2.bf16.msra.mxu0 %v3332
    %4159 = vmatprep.subr.bf16.mxu0 %v3323
    %4160 = vmatpush2.bf16.msra.mxu0 %v3322
    %4161 = vmatprep.subr.bf16.mxu0 %v3313
    %4162 = vmatpush2.bf16.msra.mxu0 %v3312
    %4163 = vmatprep.subr.bf16.mxu0 %v3303
    %4164 = vmatpush2.bf16.msra.mxu0 %v3302
    %4165 = vmatprep.subr.bf16.mxu0 %v3293
    %4166 = vmatpush2.bf16.msra.mxu0 %v3292
    %4167 = vmatprep.mubr.bf16.mxu0 %v803
    %4168 = vmatmul.mubr.bf16.gmra.mxu0 %v801
    %v4169 = vpop.f32.mrf.mxu0
    %v4170 = vadd.f32 %v4129, %v4169
    %v4171 = vpop.f32.mrf.mxu0
    %v4172 = vadd.f32 %v4131, %v4171
    %v4173 = vpop.f32.mrf.mxu0
    %v4174 = vpop.f32.mrf.mxu0
    %4175 = vdwg.mxu0
    %4176 = vmatprep.subr.bf16.mxu0 %v2805
    %4177 = vmatpush1.bf16.msra.mxu0 %v2804
    %4178 = vmatprep.subr.bf16.mxu0 %v2795
    %4179 = vmatpush1.bf16.msra.mxu0 %v2794
    %4180 = vmatprep.subr.bf16.mxu0 %v2785
    %4181 = vmatpush1.bf16.msra.mxu0 %v2784
    %4182 = vmatprep.subr.bf16.mxu0 %v2775
    %4183 = vmatpush1.bf16.msra.mxu0 %v2774
    %4184 = vmatprep.subr.bf16.mxu0 %v2765
    %4185 = vmatpush1.bf16.msra.mxu0 %v2764
    %4186 = vmatprep.subr.bf16.mxu0 %v2755
    %4187 = vmatpush1.bf16.msra.mxu0 %v2754
    %4188 = vmatprep.subr.bf16.mxu0 %v2745
    %4189 = vmatpush1.bf16.msra.mxu0 %v2744
    %4190 = vmatprep.subr.bf16.mxu0 %v2735
    %4191 = vmatpush1.bf16.msra.mxu0 %v2734
    %4192 = vmatprep.subr.bf16.mxu0 %v2885
    %4193 = vmatpush2.bf16.msra.mxu0 %v2884
    %4194 = vmatprep.subr.bf16.mxu0 %v2875
    %4195 = vmatpush2.bf16.msra.mxu0 %v2874
    %4196 = vmatprep.subr.bf16.mxu0 %v2865
    %4197 = vmatpush2.bf16.msra.mxu0 %v2864
    %4198 = vmatprep.subr.bf16.mxu0 %v2855
    %4199 = vmatpush2.bf16.msra.mxu0 %v2854
    %4200 = vmatprep.subr.bf16.mxu0 %v2845
    %4201 = vmatpush2.bf16.msra.mxu0 %v2844
    %4202 = vmatprep.subr.bf16.mxu0 %v2835
    %4203 = vmatpush2.bf16.msra.mxu0 %v2834
    %4204 = vmatprep.subr.bf16.mxu0 %v2825
    %4205 = vmatpush2.bf16.msra.mxu0 %v2824
    %4206 = vmatprep.subr.bf16.mxu0 %v2815
    %4207 = vmatpush2.bf16.msra.mxu0 %v2814
    %4208 = vmatprep.mubr.bf16.mxu0 %v792
    %4209 = vmatmul.mubr.bf16.gmra.mxu0 %v778
    %v4210 = vpop.f32.mrf.mxu0
    %v4211 = vadd.f32 %v715, %v4210
    %v4212 = vpop.f32.mrf.mxu0
    %v4213 = vadd.f32 %v719, %v4212
    %v4214 = vpop.f32.mrf.mxu0
    %v4215 = vpop.f32.mrf.mxu0
    %4216 = vdwg.mxu0
    %4217 = vmatprep.subr.bf16.mxu0 %v2965
    %4218 = vmatpush1.bf16.msra.mxu0 %v2964
    %4219 = vmatprep.subr.bf16.mxu0 %v2955
    %4220 = vmatpush1.bf16.msra.mxu0 %v2954
    %4221 = vmatprep.subr.bf16.mxu0 %v2945
    %4222 = vmatpush1.bf16.msra.mxu0 %v2944
    %4223 = vmatprep.subr.bf16.mxu0 %v2935
    %4224 = vmatpush1.bf16.msra.mxu0 %v2934
    %4225 = vmatprep.subr.bf16.mxu0 %v2925
    %4226 = vmatpush1.bf16.msra.mxu0 %v2924
    %4227 = vmatprep.subr.bf16.mxu0 %v2915
    %4228 = vmatpush1.bf16.msra.mxu0 %v2914
    %4229 = vmatprep.subr.bf16.mxu0 %v2905
    %4230 = vmatpush1.bf16.msra.mxu0 %v2904
    %4231 = vmatprep.subr.bf16.mxu0 %v2895
    %4232 = vmatpush1.bf16.msra.mxu0 %v2894
    %4233 = vmatprep.subr.bf16.mxu0 %v3045
    %4234 = vmatpush2.bf16.msra.mxu0 %v3044
    %4235 = vmatprep.subr.bf16.mxu0 %v3035
    %4236 = vmatpush2.bf16.msra.mxu0 %v3034
    %4237 = vmatprep.subr.bf16.mxu0 %v3025
    %4238 = vmatpush2.bf16.msra.mxu0 %v3024
    %4239 = vmatprep.subr.bf16.mxu0 %v3015
    %4240 = vmatpush2.bf16.msra.mxu0 %v3014
    %4241 = vmatprep.subr.bf16.mxu0 %v3005
    %4242 = vmatpush2.bf16.msra.mxu0 %v3004
    %4243 = vmatprep.subr.bf16.mxu0 %v2995
    %4244 = vmatpush2.bf16.msra.mxu0 %v2994
    %4245 = vmatprep.subr.bf16.mxu0 %v2985
    %4246 = vmatpush2.bf16.msra.mxu0 %v2984
    %4247 = vmatprep.subr.bf16.mxu0 %v2975
    %4248 = vmatpush2.bf16.msra.mxu0 %v2974
    %4249 = vmatprep.mubr.bf16.mxu0 %v802
    %4250 = vmatmul.mubr.bf16.gmra.mxu0 %v800
    %v4251 = vpop.f32.mrf.mxu0
    %v4252 = vadd.f32 %v4211, %v4251
    %v4253 = vpop.f32.mrf.mxu0
    %v4254 = vadd.f32 %v4213, %v4253
    %v4255 = vpop.f32.mrf.mxu0
    %v4256 = vpop.f32.mrf.mxu0
    %4257 = vdwg.mxu0
    %4258 = vmatprep.subr.bf16.mxu0 %v3125
    %4259 = vmatpush1.bf16.msra.mxu0 %v3124
    %4260 = vmatprep.subr.bf16.mxu0 %v3115
    %4261 = vmatpush1.bf16.msra.mxu0 %v3114
    %4262 = vmatprep.subr.bf16.mxu0 %v3105
    %4263 = vmatpush1.bf16.msra.mxu0 %v3104
    %4264 = vmatprep.subr.bf16.mxu0 %v3095
    %4265 = vmatpush1.bf16.msra.mxu0 %v3094
    %4266 = vmatprep.subr.bf16.mxu0 %v3085
    %4267 = vmatpush1.bf16.msra.mxu0 %v3084
    %4268 = vmatprep.subr.bf16.mxu0 %v3075
    %4269 = vmatpush1.bf16.msra.mxu0 %v3074
    %4270 = vmatprep.subr.bf16.mxu0 %v3065
    %4271 = vmatpush1.bf16.msra.mxu0 %v3064
    %4272 = vmatprep.subr.bf16.mxu0 %v3055
    %4273 = vmatpush1.bf16.msra.mxu0 %v3054
    %4274 = vmatprep.subr.bf16.mxu0 %v3205
    %4275 = vmatpush2.bf16.msra.mxu0 %v3204
    %4276 = vmatprep.subr.bf16.mxu0 %v3195
    %4277 = vmatpush2.bf16.msra.mxu0 %v3194
    %4278 = vmatprep.subr.bf16.mxu0 %v3185
    %4279 = vmatpush2.bf16.msra.mxu0 %v3184
    %4280 = vmatprep.subr.bf16.mxu0 %v3175
    %4281 = vmatpush2.bf16.msra.mxu0 %v3174
    %4282 = vmatprep.subr.bf16.mxu0 %v3165
    %4283 = vmatpush2.bf16.msra.mxu0 %v3164
    %4284 = vmatprep.subr.bf16.mxu0 %v3155
    %4285 = vmatpush2.bf16.msra.mxu0 %v3154
    %4286 = vmatprep.subr.bf16.mxu0 %v3145
    %4287 = vmatpush2.bf16.msra.mxu0 %v3144
    %4288 = vmatprep.subr.bf16.mxu0 %v3135
    %4289 = vmatpush2.bf16.msra.mxu0 %v3134
    %4290 = vmatprep.mubr.bf16.mxu0 %v799
    %4291 = vmatmul.mubr.bf16.gmra.mxu0 %v785
    %v4292 = vpop.f32.mrf.mxu0
    %v4293 = vadd.f32 %v4252, %v4292
    %v4294 = vpop.f32.mrf.mxu0
    %v4295 = vadd.f32 %v4254, %v4294
    %v4296 = vpop.f32.mrf.mxu0
    %v4297 = vpop.f32.mrf.mxu0
    %4298 = vdwg.mxu0
    %4299 = vmatprep.subr.bf16.mxu0 %v3285
    %4300 = vmatpush1.bf16.msra.mxu0 %v3284
    %4301 = vmatprep.subr.bf16.mxu0 %v3275
    %4302 = vmatpush1.bf16.msra.mxu0 %v3274
    %4303 = vmatprep.subr.bf16.mxu0 %v3265
    %4304 = vmatpush1.bf16.msra.mxu0 %v3264
    %4305 = vmatprep.subr.bf16.mxu0 %v3255
    %4306 = vmatpush1.bf16.msra.mxu0 %v3254
    %4307 = vmatprep.subr.bf16.mxu0 %v3245
    %4308 = vmatpush1.bf16.msra.mxu0 %v3244
    %4309 = vmatprep.subr.bf16.mxu0 %v3235
    %4310 = vmatpush1.bf16.msra.mxu0 %v3234
    %4311 = vmatprep.subr.bf16.mxu0 %v3225
    %4312 = vmatpush1.bf16.msra.mxu0 %v3224
    %4313 = vmatprep.subr.bf16.mxu0 %v3215
    %4314 = vmatpush1.bf16.msra.mxu0 %v3214
    %4315 = vmatprep.subr.bf16.mxu0 %v3365
    %4316 = vmatpush2.bf16.msra.mxu0 %v3364
    %4317 = vmatprep.subr.bf16.mxu0 %v3355
    %4318 = vmatpush2.bf16.msra.mxu0 %v3354
    %4319 = vmatprep.subr.bf16.mxu0 %v3345
    %4320 = vmatpush2.bf16.msra.mxu0 %v3344
    %4321 = vmatprep.subr.bf16.mxu0 %v3335
    %4322 = vmatpush2.bf16.msra.mxu0 %v3334
    %4323 = vmatprep.subr.bf16.mxu0 %v3325
    %4324 = vmatpush2.bf16.msra.mxu0 %v3324
    %4325 = vmatprep.subr.bf16.mxu0 %v3315
    %4326 = vmatpush2.bf16.msra.mxu0 %v3314
    %4327 = vmatprep.subr.bf16.mxu0 %v3305
    %4328 = vmatpush2.bf16.msra.mxu0 %v3304
    %4329 = vmatprep.subr.bf16.mxu0 %v3295
    %4330 = vmatpush2.bf16.msra.mxu0 %v3294
    %4331 = vmatprep.mubr.bf16.mxu0 %v803
    %4332 = vmatmul.mubr.bf16.gmra.mxu0 %v801
    %v4333 = vpop.f32.mrf.mxu0
    %v4334 = vadd.f32 %v4293, %v4333
    %v4335 = vpop.f32.mrf.mxu0
    %v4336 = vadd.f32 %v4295, %v4335
    %v4337 = vpop.f32.mrf.mxu0
    %v4338 = vpop.f32.mrf.mxu0
    %4339 = vdwg.mxu0
    %4340 = vmatprep.subr.bf16.mxu0 %v2807
    %4341 = vmatpush1.bf16.msra.mxu0 %v2806
    %4342 = vmatprep.subr.bf16.mxu0 %v2797
    %4343 = vmatpush1.bf16.msra.mxu0 %v2796
    %4344 = vmatprep.subr.bf16.mxu0 %v2787
    %4345 = vmatpush1.bf16.msra.mxu0 %v2786
    %4346 = vmatprep.subr.bf16.mxu0 %v2777
    %4347 = vmatpush1.bf16.msra.mxu0 %v2776
    %4348 = vmatprep.subr.bf16.mxu0 %v2767
    %4349 = vmatpush1.bf16.msra.mxu0 %v2766
    %4350 = vmatprep.subr.bf16.mxu0 %v2757
    %4351 = vmatpush1.bf16.msra.mxu0 %v2756
    %4352 = vmatprep.subr.bf16.mxu0 %v2747
    %4353 = vmatpush1.bf16.msra.mxu0 %v2746
    %4354 = vmatprep.subr.bf16.mxu0 %v2737
    %4355 = vmatpush1.bf16.msra.mxu0 %v2736
    %4356 = vmatprep.subr.bf16.mxu0 %v2887
    %4357 = vmatpush2.bf16.msra.mxu0 %v2886
    %4358 = vmatprep.subr.bf16.mxu0 %v2877
    %4359 = vmatpush2.bf16.msra.mxu0 %v2876
    %4360 = vmatprep.subr.bf16.mxu0 %v2867
    %4361 = vmatpush2.bf16.msra.mxu0 %v2866
    %4362 = vmatprep.subr.bf16.mxu0 %v2857
    %4363 = vmatpush2.bf16.msra.mxu0 %v2856
    %4364 = vmatprep.subr.bf16.mxu0 %v2847
    %4365 = vmatpush2.bf16.msra.mxu0 %v2846
    %4366 = vmatprep.subr.bf16.mxu0 %v2837
    %4367 = vmatpush2.bf16.msra.mxu0 %v2836
    %4368 = vmatprep.subr.bf16.mxu0 %v2827
    %4369 = vmatpush2.bf16.msra.mxu0 %v2826
    %4370 = vmatprep.subr.bf16.mxu0 %v2817
    %4371 = vmatpush2.bf16.msra.mxu0 %v2816
    %4372 = vmatprep.mubr.bf16.mxu0 %v792
    %4373 = vmatmul.mubr.bf16.gmra.mxu0 %v778
    %v4374 = vpop.f32.mrf.mxu0
    %v4375 = vadd.f32 %v723, %v4374
    %v4376 = vpop.f32.mrf.mxu0
    %v4377 = vadd.f32 %v727, %v4376
    %v4378 = vpop.f32.mrf.mxu0
    %v4379 = vpop.f32.mrf.mxu0
    %4380 = vdwg.mxu0
    %4381 = vmatprep.subr.bf16.mxu0 %v2967
    %4382 = vmatpush1.bf16.msra.mxu0 %v2966
    %4383 = vmatprep.subr.bf16.mxu0 %v2957
    %4384 = vmatpush1.bf16.msra.mxu0 %v2956
    %4385 = vmatprep.subr.bf16.mxu0 %v2947
    %4386 = vmatpush1.bf16.msra.mxu0 %v2946
    %4387 = vmatprep.subr.bf16.mxu0 %v2937
    %4388 = vmatpush1.bf16.msra.mxu0 %v2936
    %4389 = vmatprep.subr.bf16.mxu0 %v2927
    %4390 = vmatpush1.bf16.msra.mxu0 %v2926
    %4391 = vmatprep.subr.bf16.mxu0 %v2917
    %4392 = vmatpush1.bf16.msra.mxu0 %v2916
    %4393 = vmatprep.subr.bf16.mxu0 %v2907
    %4394 = vmatpush1.bf16.msra.mxu0 %v2906
    %4395 = vmatprep.subr.bf16.mxu0 %v2897
    %4396 = vmatpush1.bf16.msra.mxu0 %v2896
    %4397 = vmatprep.subr.bf16.mxu0 %v3047
    %4398 = vmatpush2.bf16.msra.mxu0 %v3046
    %4399 = vmatprep.subr.bf16.mxu0 %v3037
    %4400 = vmatpush2.bf16.msra.mxu0 %v3036
    %4401 = vmatprep.subr.bf16.mxu0 %v3027
    %4402 = vmatpush2.bf16.msra.mxu0 %v3026
    %4403 = vmatprep.subr.bf16.mxu0 %v3017
    %4404 = vmatpush2.bf16.msra.mxu0 %v3016
    %4405 = vmatprep.subr.bf16.mxu0 %v3007
    %4406 = vmatpush2.bf16.msra.mxu0 %v3006
    %4407 = vmatprep.subr.bf16.mxu0 %v2997
    %4408 = vmatpush2.bf16.msra.mxu0 %v2996
    %4409 = vmatprep.subr.bf16.mxu0 %v2987
    %4410 = vmatpush2.bf16.msra.mxu0 %v2986
    %4411 = vmatprep.subr.bf16.mxu0 %v2977
    %4412 = vmatpush2.bf16.msra.mxu0 %v2976
    %4413 = vmatprep.mubr.bf16.mxu0 %v802
    %4414 = vmatmul.mubr.bf16.gmra.mxu0 %v800
    %v4415 = vpop.f32.mrf.mxu0
    %v4416 = vadd.f32 %v4375, %v4415
    %v4417 = vpop.f32.mrf.mxu0
    %v4418 = vadd.f32 %v4377, %v4417
    %v4419 = vpop.f32.mrf.mxu0
    %v4420 = vpop.f32.mrf.mxu0
    %4421 = vdwg.mxu0
    %4422 = vmatprep.subr.bf16.mxu0 %v3127
    %4423 = vmatpush1.bf16.msra.mxu0 %v3126
    %4424 = vmatprep.subr.bf16.mxu0 %v3117
    %4425 = vmatpush1.bf16.msra.mxu0 %v3116
    %4426 = vmatprep.subr.bf16.mxu0 %v3107
    %4427 = vmatpush1.bf16.msra.mxu0 %v3106
    %4428 = vmatprep.subr.bf16.mxu0 %v3097
    %4429 = vmatpush1.bf16.msra.mxu0 %v3096
    %4430 = vmatprep.subr.bf16.mxu0 %v3087
    %4431 = vmatpush1.bf16.msra.mxu0 %v3086
    %4432 = vmatprep.subr.bf16.mxu0 %v3077
    %4433 = vmatpush1.bf16.msra.mxu0 %v3076
    %4434 = vmatprep.subr.bf16.mxu0 %v3067
    %4435 = vmatpush1.bf16.msra.mxu0 %v3066
    %4436 = vmatprep.subr.bf16.mxu0 %v3057
    %4437 = vmatpush1.bf16.msra.mxu0 %v3056
    %4438 = vmatprep.subr.bf16.mxu0 %v3207
    %4439 = vmatpush2.bf16.msra.mxu0 %v3206
    %4440 = vmatprep.subr.bf16.mxu0 %v3197
    %4441 = vmatpush2.bf16.msra.mxu0 %v3196
    %4442 = vmatprep.subr.bf16.mxu0 %v3187
    %4443 = vmatpush2.bf16.msra.mxu0 %v3186
    %4444 = vmatprep.subr.bf16.mxu0 %v3177
    %4445 = vmatpush2.bf16.msra.mxu0 %v3176
    %4446 = vmatprep.subr.bf16.mxu0 %v3167
    %4447 = vmatpush2.bf16.msra.mxu0 %v3166
    %4448 = vmatprep.subr.bf16.mxu0 %v3157
    %4449 = vmatpush2.bf16.msra.mxu0 %v3156
    %4450 = vmatprep.subr.bf16.mxu0 %v3147
    %4451 = vmatpush2.bf16.msra.mxu0 %v3146
    %4452 = vmatprep.subr.bf16.mxu0 %v3137
    %4453 = vmatpush2.bf16.msra.mxu0 %v3136
    %4454 = vmatprep.mubr.bf16.mxu0 %v799
    %4455 = vmatmul.mubr.bf16.gmra.mxu0 %v785
    %v4456 = vpop.f32.mrf.mxu0
    %v4457 = vadd.f32 %v4416, %v4456
    %v4458 = vpop.f32.mrf.mxu0
    %v4459 = vadd.f32 %v4418, %v4458
    %v4460 = vpop.f32.mrf.mxu0
    %v4461 = vpop.f32.mrf.mxu0
    %4462 = vdwg.mxu0
    %4463 = vmatprep.subr.bf16.mxu0 %v3287
    %4464 = vmatpush1.bf16.msra.mxu0 %v3286
    %4465 = vmatprep.subr.bf16.mxu0 %v3277
    %4466 = vmatpush1.bf16.msra.mxu0 %v3276
    %4467 = vmatprep.subr.bf16.mxu0 %v3267
    %4468 = vmatpush1.bf16.msra.mxu0 %v3266
    %4469 = vmatprep.subr.bf16.mxu0 %v3257
    %4470 = vmatpush1.bf16.msra.mxu0 %v3256
    %4471 = vmatprep.subr.bf16.mxu0 %v3247
    %4472 = vmatpush1.bf16.msra.mxu0 %v3246
    %4473 = vmatprep.subr.bf16.mxu0 %v3237
    %4474 = vmatpush1.bf16.msra.mxu0 %v3236
    %4475 = vmatprep.subr.bf16.mxu0 %v3227
    %4476 = vmatpush1.bf16.msra.mxu0 %v3226
    %4477 = vmatprep.subr.bf16.mxu0 %v3217
    %4478 = vmatpush1.bf16.msra.mxu0 %v3216
    %4479 = vmatprep.subr.bf16.mxu0 %v3367
    %4480 = vmatpush2.bf16.msra.mxu0 %v3366
    %4481 = vmatprep.subr.bf16.mxu0 %v3357
    %4482 = vmatpush2.bf16.msra.mxu0 %v3356
    %4483 = vmatprep.subr.bf16.mxu0 %v3347
    %4484 = vmatpush2.bf16.msra.mxu0 %v3346
    %4485 = vmatprep.subr.bf16.mxu0 %v3337
    %4486 = vmatpush2.bf16.msra.mxu0 %v3336
    %4487 = vmatprep.subr.bf16.mxu0 %v3327
    %4488 = vmatpush2.bf16.msra.mxu0 %v3326
    %4489 = vmatprep.subr.bf16.mxu0 %v3317
    %4490 = vmatpush2.bf16.msra.mxu0 %v3316
    %4491 = vmatprep.subr.bf16.mxu0 %v3307
    %4492 = vmatpush2.bf16.msra.mxu0 %v3306
    %4493 = vmatprep.subr.bf16.mxu0 %v3297
    %4494 = vmatpush2.bf16.msra.mxu0 %v3296
    %4495 = vmatprep.mubr.bf16.mxu0 %v803
    %4496 = vmatmul.mubr.bf16.gmra.mxu0 %v801
    %v4497 = vpop.f32.mrf.mxu0
    %v4498 = vadd.f32 %v4457, %v4497
    %v4499 = vpop.f32.mrf.mxu0
    %v4500 = vadd.f32 %v4459, %v4499
    %v4501 = vpop.f32.mrf.mxu0
    %v4502 = vpop.f32.mrf.mxu0
    %4503 = vdwg.mxu0
    %4504 = vmatprep.subr.bf16.mxu0 %v2809
    %4505 = vmatpush1.bf16.msra.mxu0 %v2808
    %4506 = vmatprep.subr.bf16.mxu0 %v2799
    %4507 = vmatpush1.bf16.msra.mxu0 %v2798
    %4508 = vmatprep.subr.bf16.mxu0 %v2789
    %4509 = vmatpush1.bf16.msra.mxu0 %v2788
    %4510 = vmatprep.subr.bf16.mxu0 %v2779
    %4511 = vmatpush1.bf16.msra.mxu0 %v2778
    %4512 = vmatprep.subr.bf16.mxu0 %v2769
    %4513 = vmatpush1.bf16.msra.mxu0 %v2768
    %4514 = vmatprep.subr.bf16.mxu0 %v2759
    %4515 = vmatpush1.bf16.msra.mxu0 %v2758
    %4516 = vmatprep.subr.bf16.mxu0 %v2749
    %4517 = vmatpush1.bf16.msra.mxu0 %v2748
    %4518 = vmatprep.subr.bf16.mxu0 %v2739
    %4519 = vmatpush1.bf16.msra.mxu0 %v2738
    %4520 = vmatprep.subr.bf16.mxu0 %v2889
    %4521 = vmatpush2.bf16.msra.mxu0 %v2888
    %4522 = vmatprep.subr.bf16.mxu0 %v2879
    %4523 = vmatpush2.bf16.msra.mxu0 %v2878
    %4524 = vmatprep.subr.bf16.mxu0 %v2869
    %4525 = vmatpush2.bf16.msra.mxu0 %v2868
    %4526 = vmatprep.subr.bf16.mxu0 %v2859
    %4527 = vmatpush2.bf16.msra.mxu0 %v2858
    %4528 = vmatprep.subr.bf16.mxu0 %v2849
    %4529 = vmatpush2.bf16.msra.mxu0 %v2848
    %4530 = vmatprep.subr.bf16.mxu0 %v2839
    %4531 = vmatpush2.bf16.msra.mxu0 %v2838
    %4532 = vmatprep.subr.bf16.mxu0 %v2829
    %4533 = vmatpush2.bf16.msra.mxu0 %v2828
    %4534 = vmatprep.subr.bf16.mxu0 %v2819
    %4535 = vmatpush2.bf16.msra.mxu0 %v2818
    %4536 = vmatprep.mubr.bf16.mxu0 %v792
    %4537 = vmatmul.mubr.bf16.gmra.mxu0 %v778
    %v4538 = vpop.f32.mrf.mxu0
    %v4539 = vadd.f32 %v731, %v4538
    %v4540 = vpop.f32.mrf.mxu0
    %v4541 = vadd.f32 %v735, %v4540
    %v4542 = vpop.f32.mrf.mxu0
    %v4543 = vpop.f32.mrf.mxu0
    %4544 = vdwg.mxu0
    %4545 = vmatprep.subr.bf16.mxu0 %v2969
    %4546 = vmatpush1.bf16.msra.mxu0 %v2968
    %4547 = vmatprep.subr.bf16.mxu0 %v2959
    %4548 = vmatpush1.bf16.msra.mxu0 %v2958
    %4549 = vmatprep.subr.bf16.mxu0 %v2949
    %4550 = vmatpush1.bf16.msra.mxu0 %v2948
    %4551 = vmatprep.subr.bf16.mxu0 %v2939
    %4552 = vmatpush1.bf16.msra.mxu0 %v2938
    %4553 = vmatprep.subr.bf16.mxu0 %v2929
    %4554 = vmatpush1.bf16.msra.mxu0 %v2928
    %4555 = vmatprep.subr.bf16.mxu0 %v2919
    %4556 = vmatpush1.bf16.msra.mxu0 %v2918
    %4557 = vmatprep.subr.bf16.mxu0 %v2909
    %4558 = vmatpush1.bf16.msra.mxu0 %v2908
    %4559 = vmatprep.subr.bf16.mxu0 %v2899
    %4560 = vmatpush1.bf16.msra.mxu0 %v2898
    %4561 = vmatprep.subr.bf16.mxu0 %v3049
    %4562 = vmatpush2.bf16.msra.mxu0 %v3048
    %4563 = vmatprep.subr.bf16.mxu0 %v3039
    %4564 = vmatpush2.bf16.msra.mxu0 %v3038
    %4565 = vmatprep.subr.bf16.mxu0 %v3029
    %4566 = vmatpush2.bf16.msra.mxu0 %v3028
    %4567 = vmatprep.subr.bf16.mxu0 %v3019
    %4568 = vmatpush2.bf16.msra.mxu0 %v3018
    %4569 = vmatprep.subr.bf16.mxu0 %v3009
    %4570 = vmatpush2.bf16.msra.mxu0 %v3008
    %4571 = vmatprep.subr.bf16.mxu0 %v2999
    %4572 = vmatpush2.bf16.msra.mxu0 %v2998
    %4573 = vmatprep.subr.bf16.mxu0 %v2989
    %4574 = vmatpush2.bf16.msra.mxu0 %v2988
    %4575 = vmatprep.subr.bf16.mxu0 %v2979
    %4576 = vmatpush2.bf16.msra.mxu0 %v2978
    %4577 = vmatprep.mubr.bf16.mxu0 %v802
    %4578 = vmatmul.mubr.bf16.gmra.mxu0 %v800
    %v4579 = vpop.f32.mrf.mxu0
    %v4580 = vadd.f32 %v4539, %v4579
    %v4581 = vpop.f32.mrf.mxu0
    %v4582 = vadd.f32 %v4541, %v4581
    %v4583 = vpop.f32.mrf.mxu0
    %v4584 = vpop.f32.mrf.mxu0
    %4585 = vdwg.mxu0
    %4586 = vmatprep.subr.bf16.mxu0 %v3129
    %4587 = vmatpush1.bf16.msra.mxu0 %v3128
    %4588 = vmatprep.subr.bf16.mxu0 %v3119
    %4589 = vmatpush1.bf16.msra.mxu0 %v3118
    %4590 = vmatprep.subr.bf16.mxu0 %v3109
    %4591 = vmatpush1.bf16.msra.mxu0 %v3108
    %4592 = vmatprep.subr.bf16.mxu0 %v3099
    %4593 = vmatpush1.bf16.msra.mxu0 %v3098
    %4594 = vmatprep.subr.bf16.mxu0 %v3089
    %4595 = vmatpush1.bf16.msra.mxu0 %v3088
    %4596 = vmatprep.subr.bf16.mxu0 %v3079
    %4597 = vmatpush1.bf16.msra.mxu0 %v3078
    %4598 = vmatprep.subr.bf16.mxu0 %v3069
    %4599 = vmatpush1.bf16.msra.mxu0 %v3068
    %4600 = vmatprep.subr.bf16.mxu0 %v3059
    %4601 = vmatpush1.bf16.msra.mxu0 %v3058
    %4602 = vmatprep.subr.bf16.mxu0 %v3209
    %4603 = vmatpush2.bf16.msra.mxu0 %v3208
    %4604 = vmatprep.subr.bf16.mxu0 %v3199
    %4605 = vmatpush2.bf16.msra.mxu0 %v3198
    %4606 = vmatprep.subr.bf16.mxu0 %v3189
    %4607 = vmatpush2.bf16.msra.mxu0 %v3188
    %4608 = vmatprep.subr.bf16.mxu0 %v3179
    %4609 = vmatpush2.bf16.msra.mxu0 %v3178
    %4610 = vmatprep.subr.bf16.mxu0 %v3169
    %4611 = vmatpush2.bf16.msra.mxu0 %v3168
    %4612 = vmatprep.subr.bf16.mxu0 %v3159
    %4613 = vmatpush2.bf16.msra.mxu0 %v3158
    %4614 = vmatprep.subr.bf16.mxu0 %v3149
    %4615 = vmatpush2.bf16.msra.mxu0 %v3148
    %4616 = vmatprep.subr.bf16.mxu0 %v3139
    %4617 = vmatpush2.bf16.msra.mxu0 %v3138
    %4618 = vmatprep.mubr.bf16.mxu0 %v799
    %4619 = vmatmul.mubr.bf16.gmra.mxu0 %v785
    %v4620 = vpop.f32.mrf.mxu0
    %v4621 = vadd.f32 %v4580, %v4620
    %v4622 = vpop.f32.mrf.mxu0
    %v4623 = vadd.f32 %v4582, %v4622
    %v4624 = vpop.f32.mrf.mxu0
    %v4625 = vpop.f32.mrf.mxu0
    %4626 = vdwg.mxu0
    %4627 = vmatprep.subr.bf16.mxu0 %v3289
    %4628 = vmatpush1.bf16.msra.mxu0 %v3288
    %4629 = vmatprep.subr.bf16.mxu0 %v3279
    %4630 = vmatpush1.bf16.msra.mxu0 %v3278
    %4631 = vmatprep.subr.bf16.mxu0 %v3269
    %4632 = vmatpush1.bf16.msra.mxu0 %v3268
    %4633 = vmatprep.subr.bf16.mxu0 %v3259
    %4634 = vmatpush1.bf16.msra.mxu0 %v3258
    %4635 = vmatprep.subr.bf16.mxu0 %v3249
    %4636 = vmatpush1.bf16.msra.mxu0 %v3248
    %4637 = vmatprep.subr.bf16.mxu0 %v3239
    %4638 = vmatpush1.bf16.msra.mxu0 %v3238
    %4639 = vmatprep.subr.bf16.mxu0 %v3229
    %4640 = vmatpush1.bf16.msra.mxu0 %v3228
    %4641 = vmatprep.subr.bf16.mxu0 %v3219
    %4642 = vmatpush1.bf16.msra.mxu0 %v3218
    %4643 = vmatprep.subr.bf16.mxu0 %v3369
    %4644 = vmatpush2.bf16.msra.mxu0 %v3368
    %4645 = vmatprep.subr.bf16.mxu0 %v3359
    %4646 = vmatpush2.bf16.msra.mxu0 %v3358
    %4647 = vmatprep.subr.bf16.mxu0 %v3349
    %4648 = vmatpush2.bf16.msra.mxu0 %v3348
    %4649 = vmatprep.subr.bf16.mxu0 %v3339
    %4650 = vmatpush2.bf16.msra.mxu0 %v3338
    %4651 = vmatprep.subr.bf16.mxu0 %v3329
    %4652 = vmatpush2.bf16.msra.mxu0 %v3328
    %4653 = vmatprep.subr.bf16.mxu0 %v3319
    %4654 = vmatpush2.bf16.msra.mxu0 %v3318
    %4655 = vmatprep.subr.bf16.mxu0 %v3309
    %4656 = vmatpush2.bf16.msra.mxu0 %v3308
    %4657 = vmatprep.subr.bf16.mxu0 %v3299
    %4658 = vmatpush2.bf16.msra.mxu0 %v3298
    %4659 = vmatprep.mubr.bf16.mxu0 %v803
    %4660 = vmatmul.mubr.bf16.gmra.mxu0 %v801
    %v4661 = vpop.f32.mrf.mxu0
    %v4662 = vadd.f32 %v4621, %v4661
    %v4663 = vpop.f32.mrf.mxu0
    %v4664 = vadd.f32 %v4623, %v4663
    %v4665 = vpop.f32.mrf.mxu0
    %v4666 = vpop.f32.mrf.mxu0
    %4667 = vdwg.mxu0
    %4668 = vmatprep.subr.bf16.mxu0 %v2811
    %4669 = vmatpush1.bf16.msra.mxu0 %v2810
    %4670 = vmatprep.subr.bf16.mxu0 %v2801
    %4671 = vmatpush1.bf16.msra.mxu0 %v2800
    %4672 = vmatprep.subr.bf16.mxu0 %v2791
    %4673 = vmatpush1.bf16.msra.mxu0 %v2790
    %4674 = vmatprep.subr.bf16.mxu0 %v2781
    %4675 = vmatpush1.bf16.msra.mxu0 %v2780
    %4676 = vmatprep.subr.bf16.mxu0 %v2771
    %4677 = vmatpush1.bf16.msra.mxu0 %v2770
    %4678 = vmatprep.subr.bf16.mxu0 %v2761
    %4679 = vmatpush1.bf16.msra.mxu0 %v2760
    %4680 = vmatprep.subr.bf16.mxu0 %v2751
    %4681 = vmatpush1.bf16.msra.mxu0 %v2750
    %4682 = vmatprep.subr.bf16.mxu0 %v2741
    %4683 = vmatpush1.bf16.msra.mxu0 %v2740
    %4684 = vmatprep.subr.bf16.mxu0 %v2891
    %4685 = vmatpush2.bf16.msra.mxu0 %v2890
    %4686 = vmatprep.subr.bf16.mxu0 %v2881
    %4687 = vmatpush2.bf16.msra.mxu0 %v2880
    %4688 = vmatprep.subr.bf16.mxu0 %v2871
    %4689 = vmatpush2.bf16.msra.mxu0 %v2870
    %4690 = vmatprep.subr.bf16.mxu0 %v2861
    %4691 = vmatpush2.bf16.msra.mxu0 %v2860
    %4692 = vmatprep.subr.bf16.mxu0 %v2851
    %4693 = vmatpush2.bf16.msra.mxu0 %v2850
    %4694 = vmatprep.subr.bf16.mxu0 %v2841
    %4695 = vmatpush2.bf16.msra.mxu0 %v2840
    %4696 = vmatprep.subr.bf16.mxu0 %v2831
    %4697 = vmatpush2.bf16.msra.mxu0 %v2830
    %4698 = vmatprep.subr.bf16.mxu0 %v2821
    %4699 = vmatpush2.bf16.msra.mxu0 %v2820
    %4700 = vmatprep.mubr.bf16.mxu0 %v792
    %4701 = vmatmul.mubr.bf16.gmra.mxu0 %v778
    %v4702 = vpop.f32.mrf.mxu0
    %v4703 = vadd.f32 %v739, %v4702
    %v4704 = vpop.f32.mrf.mxu0
    %v4705 = vadd.f32 %v743, %v4704
    %v4706 = vpop.f32.mrf.mxu0
    %v4707 = vpop.f32.mrf.mxu0
    %4708 = vdwg.mxu0
    %4709 = vmatprep.subr.bf16.mxu0 %v2971
    %4710 = vmatpush1.bf16.msra.mxu0 %v2970
    %4711 = vmatprep.subr.bf16.mxu0 %v2961
    %4712 = vmatpush1.bf16.msra.mxu0 %v2960
    %4713 = vmatprep.subr.bf16.mxu0 %v2951
    %4714 = vmatpush1.bf16.msra.mxu0 %v2950
    %4715 = vmatprep.subr.bf16.mxu0 %v2941
    %4716 = vmatpush1.bf16.msra.mxu0 %v2940
    %4717 = vmatprep.subr.bf16.mxu0 %v2931
    %4718 = vmatpush1.bf16.msra.mxu0 %v2930
    %4719 = vmatprep.subr.bf16.mxu0 %v2921
    %4720 = vmatpush1.bf16.msra.mxu0 %v2920
    %4721 = vmatprep.subr.bf16.mxu0 %v2911
    %4722 = vmatpush1.bf16.msra.mxu0 %v2910
    %4723 = vmatprep.subr.bf16.mxu0 %v2901
    %4724 = vmatpush1.bf16.msra.mxu0 %v2900
    %4725 = vmatprep.subr.bf16.mxu0 %v3051
    %4726 = vmatpush2.bf16.msra.mxu0 %v3050
    %4727 = vmatprep.subr.bf16.mxu0 %v3041
    %4728 = vmatpush2.bf16.msra.mxu0 %v3040
    %4729 = vmatprep.subr.bf16.mxu0 %v3031
    %4730 = vmatpush2.bf16.msra.mxu0 %v3030
    %4731 = vmatprep.subr.bf16.mxu0 %v3021
    %4732 = vmatpush2.bf16.msra.mxu0 %v3020
    %4733 = vmatprep.subr.bf16.mxu0 %v3011
    %4734 = vmatpush2.bf16.msra.mxu0 %v3010
    %4735 = vmatprep.subr.bf16.mxu0 %v3001
    %4736 = vmatpush2.bf16.msra.mxu0 %v3000
    %4737 = vmatprep.subr.bf16.mxu0 %v2991
    %4738 = vmatpush2.bf16.msra.mxu0 %v2990
    %4739 = vmatprep.subr.bf16.mxu0 %v2981
    %4740 = vmatpush2.bf16.msra.mxu0 %v2980
    %4741 = vmatprep.mubr.bf16.mxu0 %v802
    %4742 = vmatmul.mubr.bf16.gmra.mxu0 %v800
    %v4743 = vpop.f32.mrf.mxu0
    %v4744 = vadd.f32 %v4703, %v4743
    %v4745 = vpop.f32.mrf.mxu0
    %v4746 = vadd.f32 %v4705, %v4745
    %v4747 = vpop.f32.mrf.mxu0
    %v4748 = vpop.f32.mrf.mxu0
    %4749 = vdwg.mxu0
    %4750 = vmatprep.subr.bf16.mxu0 %v3131
    %4751 = vmatpush1.bf16.msra.mxu0 %v3130
    %4752 = vmatprep.subr.bf16.mxu0 %v3121
    %4753 = vmatpush1.bf16.msra.mxu0 %v3120
    %4754 = vmatprep.subr.bf16.mxu0 %v3111
    %4755 = vmatpush1.bf16.msra.mxu0 %v3110
    %4756 = vmatprep.subr.bf16.mxu0 %v3101
    %4757 = vmatpush1.bf16.msra.mxu0 %v3100
    %4758 = vmatprep.subr.bf16.mxu0 %v3091
    %4759 = vmatpush1.bf16.msra.mxu0 %v3090
    %4760 = vmatprep.subr.bf16.mxu0 %v3081
    %4761 = vmatpush1.bf16.msra.mxu0 %v3080
    %4762 = vmatprep.subr.bf16.mxu0 %v3071
    %4763 = vmatpush1.bf16.msra.mxu0 %v3070
    %4764 = vmatprep.subr.bf16.mxu0 %v3061
    %4765 = vmatpush1.bf16.msra.mxu0 %v3060
    %4766 = vmatprep.subr.bf16.mxu0 %v3211
    %4767 = vmatpush2.bf16.msra.mxu0 %v3210
    %4768 = vmatprep.subr.bf16.mxu0 %v3201
    %4769 = vmatpush2.bf16.msra.mxu0 %v3200
    %4770 = vmatprep.subr.bf16.mxu0 %v3191
    %4771 = vmatpush2.bf16.msra.mxu0 %v3190
    %4772 = vmatprep.subr.bf16.mxu0 %v3181
    %4773 = vmatpush2.bf16.msra.mxu0 %v3180
    %4774 = vmatprep.subr.bf16.mxu0 %v3171
    %4775 = vmatpush2.bf16.msra.mxu0 %v3170
    %4776 = vmatprep.subr.bf16.mxu0 %v3161
    %4777 = vmatpush2.bf16.msra.mxu0 %v3160
    %4778 = vmatprep.subr.bf16.mxu0 %v3151
    %4779 = vmatpush2.bf16.msra.mxu0 %v3150
    %4780 = vmatprep.subr.bf16.mxu0 %v3141
    %4781 = vmatpush2.bf16.msra.mxu0 %v3140
    %4782 = vmatprep.mubr.bf16.mxu0 %v799
    %4783 = vmatmul.mubr.bf16.gmra.mxu0 %v785
    %v4784 = vpop.f32.mrf.mxu0
    %v4785 = vadd.f32 %v4744, %v4784
    %v4786 = vpop.f32.mrf.mxu0
    %v4787 = vadd.f32 %v4746, %v4786
    %v4788 = vpop.f32.mrf.mxu0
    %v4789 = vpop.f32.mrf.mxu0
    %4790 = vdwg.mxu0
    %4791 = vmatprep.subr.bf16.mxu0 %v3291
    %4792 = vmatpush1.bf16.msra.mxu0 %v3290
    %4793 = vmatprep.subr.bf16.mxu0 %v3281
    %4794 = vmatpush1.bf16.msra.mxu0 %v3280
    %4795 = vmatprep.subr.bf16.mxu0 %v3271
    %4796 = vmatpush1.bf16.msra.mxu0 %v3270
    %4797 = vmatprep.subr.bf16.mxu0 %v3261
    %4798 = vmatpush1.bf16.msra.mxu0 %v3260
    %4799 = vmatprep.subr.bf16.mxu0 %v3251
    %4800 = vmatpush1.bf16.msra.mxu0 %v3250
    %4801 = vmatprep.subr.bf16.mxu0 %v3241
    %4802 = vmatpush1.bf16.msra.mxu0 %v3240
    %4803 = vmatprep.subr.bf16.mxu0 %v3231
    %4804 = vmatpush1.bf16.msra.mxu0 %v3230
    %4805 = vmatprep.subr.bf16.mxu0 %v3221
    %4806 = vmatpush1.bf16.msra.mxu0 %v3220
    %4807 = vmatprep.subr.bf16.mxu0 %v3371
    %4808 = vmatpush2.bf16.msra.mxu0 %v3370
    %4809 = vmatprep.subr.bf16.mxu0 %v3361
    %4810 = vmatpush2.bf16.msra.mxu0 %v3360
    %4811 = vmatprep.subr.bf16.mxu0 %v3351
    %4812 = vmatpush2.bf16.msra.mxu0 %v3350
    %4813 = vmatprep.subr.bf16.mxu0 %v3341
    %4814 = vmatpush2.bf16.msra.mxu0 %v3340
    %4815 = vmatprep.subr.bf16.mxu0 %v3331
    %4816 = vmatpush2.bf16.msra.mxu0 %v3330
    %4817 = vmatprep.subr.bf16.mxu0 %v3321
    %4818 = vmatpush2.bf16.msra.mxu0 %v3320
    %4819 = vmatprep.subr.bf16.mxu0 %v3311
    %4820 = vmatpush2.bf16.msra.mxu0 %v3310
    %4821 = vmatprep.subr.bf16.mxu0 %v3301
    %4822 = vmatpush2.bf16.msra.mxu0 %v3300
    %4823 = vmatprep.mubr.bf16.mxu0 %v803
    %4824 = vmatmul.mubr.bf16.gmra.mxu0 %v801
    %v4825 = vpop.f32.mrf.mxu0
    %v4826 = vadd.f32 %v4785, %v4825
    %v4827 = vpop.f32.mrf.mxu0
    %v4828 = vadd.f32 %v4787, %v4827
    %v4829 = vpop.f32.mrf.mxu0
    %v4830 = vpop.f32.mrf.mxu0
    %4831 = vdwg.mxu0
    %v4834 = vcombine.low %v4170, %v4172
    %v4836 = vunpack.c.l.s4 1983009808
    %v4837 = vunpack.c.0.s8 %v4836
    %v4838 = vlaneseq
    %v4839 = vshrl.u32 %v4838, 7
    %v4840 = vsub.s32 %v4837, %v4839
    %v4841 = vrot.slane %v4834, %v4840
    %4843 = vst [vmem:[%s5] sm:$0xf] %v4841
    %v4844 = vmax.f32 %v4334, 0.0
    %v4845 = vmax.f32 %v4336, 0.0
    %v4846 = vmax.f32 %v4498, 0.0
    %v4847 = vmax.f32 %v4500, 0.0
    %v4848 = vmax.f32 %v4662, 0.0
    %v4849 = vmax.f32 %v4664, 0.0
    %v4850 = vmax.f32 %v4826, 0.0
    %v4851 = vmax.f32 %v4828, 0.0
    %vm4852 = vcmask 1041408
    %v4853 = vsel %vm4852, %v4844, 0.0
    %v4854 = vrot.slane %v4853, 4
    %v4855 = vadd.f32 %v4853, %v4854
    %v4856 = vrot.slane %v4855, 2
    %v4857 = vadd.f32 %v4855, %v4856
    %v4858 = vrot.slane %v4857, 1
    %v4859 = vadd.f32 %v4857, %v4858
    %v4860 = vsel %vm4852, %v4845, 0.0
    %v4861 = vrot.slane %v4860, 4
    %v4862 = vadd.f32 %v4860, %v4861
    %v4863 = vrot.slane %v4862, 2
    %v4864 = vadd.f32 %v4862, %v4863
    %v4865 = vrot.slane %v4864, 1
    %v4866 = vadd.f32 %v4864, %v4865
    %v4867 = vsel %vm4852, %v4846, 0.0
    %v4868 = vrot.slane %v4867, 4
    %v4869 = vadd.f32 %v4867, %v4868
    %v4870 = vrot.slane %v4869, 2
    %v4871 = vadd.f32 %v4869, %v4870
    %v4872 = vrot.slane %v4871, 1
    %v4873 = vadd.f32 %v4871, %v4872
    %v4874 = vsel %vm4852, %v4847, 0.0
    %v4875 = vrot.slane %v4874, 4
    %v4876 = vadd.f32 %v4874, %v4875
    %v4877 = vrot.slane %v4876, 2
    %v4878 = vadd.f32 %v4876, %v4877
    %v4879 = vrot.slane %v4878, 1
    %v4880 = vadd.f32 %v4878, %v4879
    %v4881 = vsel %vm4852, %v4848, 0.0
    %v4882 = vrot.slane %v4881, 4
    %v4883 = vadd.f32 %v4881, %v4882
    %v4884 = vrot.slane %v4883, 2
    %v4885 = vadd.f32 %v4883, %v4884
    %v4886 = vrot.slane %v4885, 1
    %v4887 = vadd.f32 %v4885, %v4886
    %v4888 = vsel %vm4852, %v4849, 0.0
    %v4889 = vrot.slane %v4888, 4
    %v4890 = vadd.f32 %v4888, %v4889
    %v4891 = vrot.slane %v4890, 2
    %v4892 = vadd.f32 %v4890, %v4891
    %v4893 = vrot.slane %v4892, 1
    %v4894 = vadd.f32 %v4892, %v4893
    %v4895 = vsel %vm4852, %v4850, 0.0
    %v4896 = vrot.slane %v4895, 4
    %v4897 = vadd.f32 %v4895, %v4896
    %v4898 = vrot.slane %v4897, 2
    %v4899 = vadd.f32 %v4897, %v4898
    %v4900 = vrot.slane %v4899, 1
    %v4901 = vadd.f32 %v4899, %v4900
    %v4902 = vsel %vm4852, %v4851, 0.0
    %v4903 = vrot.slane %v4902, 4
    %v4904 = vadd.f32 %v4902, %v4903
    %v4905 = vrot.slane %v4904, 2
    %v4906 = vadd.f32 %v4904, %v4905
    %v4907 = vrot.slane %v4906, 1
    %v4908 = vadd.f32 %v4906, %v4907
    %v4909 = vrcp.pop 2.0
    %v4910 = vmul.f32 %v4859, %v4909
    %v4911 = vmul.f32 %v4866, %v4909
    %v4912 = vmul.f32 %v4873, %v4909
    %v4913 = vmul.f32 %v4880, %v4909
    %v4914 = vmul.f32 %v4887, %v4909
    %v4915 = vmul.f32 %v4894, %v4909
    %v4916 = vmul.f32 %v4901, %v4909
    %v4917 = vmul.f32 %v4908, %v4909
    %v4918 = vsub.f32 %v4844, %v4910
    %v4919 = vsub.f32 %v4845, %v4911
    %v4920 = vsub.f32 %v4846, %v4912
    %v4921 = vsub.f32 %v4847, %v4913
    %v4922 = vsub.f32 %v4848, %v4914
    %v4923 = vsub.f32 %v4849, %v4915
    %v4924 = vsub.f32 %v4850, %v4916
    %v4925 = vsub.f32 %v4851, %v4917
    %v4926 = vmul.f32 %v4918, %v4918
    %v4927 = vmul.f32 %v4919, %v4919
    %v4928 = vmul.f32 %v4920, %v4920
    %v4929 = vmul.f32 %v4921, %v4921
    %v4930 = vmul.f32 %v4922, %v4922
    %v4931 = vmul.f32 %v4923, %v4923
    %v4932 = vmul.f32 %v4924, %v4924
    %v4933 = vmul.f32 %v4925, %v4925
    %v4934 = vsel %vm4852, %v4926, 0.0
    %v4935 = vrot.slane %v4934, 4
    %v4936 = vadd.f32 %v4934, %v4935
    %v4937 = vrot.slane %v4936, 2
    %v4938 = vadd.f32 %v4936, %v4937
    %v4939 = vrot.slane %v4938, 1
    %v4940 = vadd.f32 %v4938, %v4939
    %v4941 = vsel %vm4852, %v4927, 0.0
    %v4942 = vrot.slane %v4941, 4
    %v4943 = vadd.f32 %v4941, %v4942
    %v4944 = vrot.slane %v4943, 2
    %v4945 = vadd.f32 %v4943, %v4944
    %v4946 = vrot.slane %v4945, 1
    %v4947 = vadd.f32 %v4945, %v4946
    %v4948 = vsel %vm4852, %v4928, 0.0
    %v4949 = vrot.slane %v4948, 4
    %v4950 = vadd.f32 %v4948, %v4949
    %v4951 = vrot.slane %v4950, 2
    %v4952 = vadd.f32 %v4950, %v4951
    %v4953 = vrot.slane %v4952, 1
    %v4954 = vadd.f32 %v4952, %v4953
    %v4955 = vsel %vm4852, %v4929, 0.0
    %v4956 = vrot.slane %v4955, 4
    %v4957 = vadd.f32 %v4955, %v4956
    %v4958 = vrot.slane %v4957, 2
    %v4959 = vadd.f32 %v4957, %v4958
    %v4960 = vrot.slane %v4959, 1
    %v4961 = vadd.f32 %v4959, %v4960
    %v4962 = vsel %vm4852, %v4930, 0.0
    %v4963 = vrot.slane %v4962, 4
    %v4964 = vadd.f32 %v4962, %v4963
    %v4965 = vrot.slane %v4964, 2
    %v4966 = vadd.f32 %v4964, %v4965
    %v4967 = vrot.slane %v4966, 1
    %v4968 = vadd.f32 %v4966, %v4967
    %v4969 = vsel %vm4852, %v4931, 0.0
    %v4970 = vrot.slane %v4969, 4
    %v4971 = vadd.f32 %v4969, %v4970
    %v4972 = vrot.slane %v4971, 2
    %v4973 = vadd.f32 %v4971, %v4972
    %v4974 = vrot.slane %v4973, 1
    %v4975 = vadd.f32 %v4973, %v4974
    %v4976 = vsel %vm4852, %v4932, 0.0
    %v4977 = vrot.slane %v4976, 4
    %v4978 = vadd.f32 %v4976, %v4977
    %v4979 = vrot.slane %v4978, 2
    %v4980 = vadd.f32 %v4978, %v4979
    %v4981 = vrot.slane %v4980, 1
    %v4982 = vadd.f32 %v4980, %v4981
    %v4983 = vsel %vm4852, %v4933, 0.0
    %v4984 = vrot.slane %v4983, 4
    %v4985 = vadd.f32 %v4983, %v4984
    %v4986 = vrot.slane %v4985, 2
    %v4987 = vadd.f32 %v4985, %v4986
    %v4988 = vrot.slane %v4987, 1
    %v4989 = vadd.f32 %v4987, %v4988
    %v4990 = vmul.f32 %v4940, %v4909
    %v4991 = vmul.f32 %v4947, %v4909
    %v4992 = vmul.f32 %v4954, %v4909
    %v4993 = vmul.f32 %v4961, %v4909
    %v4994 = vmul.f32 %v4968, %v4909
    %v4995 = vmul.f32 %v4975, %v4909
    %v4996 = vmul.f32 %v4982, %v4909
    %v4997 = vmul.f32 %v4989, %v4909
    %v4998 = vadd.f32 %v4990, 1e-05
    %v4999 = vadd.f32 %v4991, 1e-05
    %v5000 = vadd.f32 %v4992, 1e-05
    %v5001 = vadd.f32 %v4993, 1e-05
    %v5002 = vadd.f32 %v4994, 1e-05
    %v5003 = vadd.f32 %v4995, 1e-05
    %v5004 = vadd.f32 %v4996, 1e-05
    %v5005 = vadd.f32 %v4997, 1e-05
    %v5006 = vrsqrt.pop %v4998
    %v5007 = vrsqrt.pop %v4999
    %v5008 = vrsqrt.pop %v5000
    %v5009 = vrsqrt.pop %v5001
    %v5010 = vrsqrt.pop %v5002
    %v5011 = vrsqrt.pop %v5003
    %v5012 = vrsqrt.pop %v5004
    %v5013 = vrsqrt.pop %v5005
    %v5014 = vmul.f32 %v4918, %v5006
    %v5015 = vmul.f32 %v4919, %v5007
    %v5016 = vmul.f32 %v4920, %v5008
    %v5017 = vmul.f32 %v4921, %v5009
    %v5018 = vmul.f32 %v4922, %v5010
    %v5019 = vmul.f32 %v4923, %v5011
    %v5020 = vmul.f32 %v4924, %v5012
    %v5021 = vmul.f32 %v4925, %v5013
    %v5022 = vld [vmem:[#allocation7] sm:$0xff]
    %v5024 = vlaneseq
    %v5025 = vshrl.u32 %v5024, 7
    %v5026 = vsub.s32 0, %v5025
    %v5027 = vrot.slane %v5022, %v5026
    %v5028 = vlaneseq
    %v5029 = vshrl.u32 %v5028, 7
    %v5030 = vsub.s32 1, %v5029
    %v5031 = vrot.slane %v5022, %v5030
    %v5032 = vlaneseq
    %v5033 = vshrl.u32 %v5032, 7
    %v5034 = vsub.s32 2, %v5033
    %v5035 = vrot.slane %v5022, %v5034
    %v5036 = vlaneseq
    %v5037 = vshrl.u32 %v5036, 7
    %v5038 = vsub.s32 3, %v5037
    %v5039 = vrot.slane %v5022, %v5038
    %v5040 = vlaneseq
    %v5041 = vshrl.u32 %v5040, 7
    %v5042 = vsub.s32 4, %v5041
    %v5043 = vrot.slane %v5022, %v5042
    %v5044 = vlaneseq
    %v5045 = vshrl.u32 %v5044, 7
    %v5046 = vsub.s32 5, %v5045
    %v5047 = vrot.slane %v5022, %v5046
    %v5048 = vlaneseq
    %v5049 = vshrl.u32 %v5048, 7
    %v5050 = vsub.s32 6, %v5049
    %v5051 = vrot.slane %v5022, %v5050
    %v5052 = vlaneseq
    %v5053 = vshrl.u32 %v5052, 7
    %v5054 = vsub.s32 7, %v5053
    %v5055 = vrot.slane %v5022, %v5054
    %v5064 = vmul.f32 %v5014, %v5027
    %v5065 = vmul.f32 %v5015, %v5031
    %v5066 = vmul.f32 %v5016, %v5035
    %v5067 = vmul.f32 %v5017, %v5039
    %v5068 = vmul.f32 %v5018, %v5043
    %v5069 = vmul.f32 %v5019, %v5047
    %v5070 = vmul.f32 %v5020, %v5051
    %v5071 = vmul.f32 %v5021, %v5055
    %v5072 = vsel %vm4852, %v5064, 0.0
    %v5073 = vsel %vm4852, %v5065, 0.0
    %v5074 = vadd.f32 %v5072, %v5073
    %v5075 = vsel %vm4852, %v5066, 0.0
    %v5076 = vadd.f32 %v5074, %v5075
    %v5077 = vsel %vm4852, %v5067, 0.0
    %v5078 = vadd.f32 %v5076, %v5077
    %v5079 = vsel %vm4852, %v5068, 0.0
    %v5080 = vadd.f32 %v5078, %v5079
    %v5081 = vsel %vm4852, %v5069, 0.0
    %v5082 = vadd.f32 %v5080, %v5081
    %v5083 = vsel %vm4852, %v5070, 0.0
    %v5084 = vadd.f32 %v5082, %v5083
    %v5085 = vsel %vm4852, %v5071, 0.0
    %v5086 = vadd.f32 %v5084, %v5085
    %5087 = vadd.xlane.f32.xlu0 %v5086
    %v5088 = vpop.xlane.xlu0 %5087
    %v5089 = vld [vmem:[#allocation2] sm:$0x1]
    %v5091 = vlaneseq
    %v5092 = vshrl.u32 %v5091, 7
    %v5093 = vsub.s32 0, %v5092
    %v5094 = vrot.slane %v5089, %v5093
    %v5096 = vadd.f32 %v5088, %v5094
    %v5097 = vsub.f32 0.0, %v5096
    %v5098 = vmul.f32 %v5097, 1.442695
    %v5099 = vpow.pop %v5098
    %v5100 = vadd.f32 %v5099, 1.0
    %v5101 = vrcp.pop %v5100
    %v5102 = vmul.f32 1.0, %v5101
    %5104 = vset.pattern.permute.xlu0 0
    %5105 = vperm.xlu0 %5104, %v5102
    %v5106 = vpop.permute.xlu0 %5105
    %5108 = vst [vmem:[%s5 + $0x4] sm:$0x3] %v5106
    // Predicated region
    $region34: #{selectivenet_forward.1} parent=1 // pred_check
      _
    $region35: #{selectivenet_forward.1} parent=1 // pred_check_branch
      %5110 = sbr.rel (0) target = $region37
    $region36: #{selectivenet_forward.1} parent=1 // pred_region
      _
    $region37: #{selectivenet_forward.1} parent=1 // pred_fallthru
      _
    // Predicated region
    $region38: #{selectivenet_forward.1} parent=1 // pred_check
      _
    $region39: #{selectivenet_forward.1} parent=1 // pred_check_branch
      %5112 = sbr.rel (0) target = $region41
    $region40: #{selectivenet_forward.1} parent=1 // pred_region
      _
    $region41: #{selectivenet_forward.1} parent=1 // pred_fallthru
      _
    %5113 = vsyncpa [#allocation4], 1
    %5114 = vsyncpa [#allocation6], 1

</llo_original>
